<compile_context>
chip_gen: v5e
topology: v5e:2x2
jax: 0.10.0
libtpu: 0.0.40
codegen_flags: <defaults>
</compile_context>

<pallas_src>
import jax
import jax.numpy as jnp
import numpy as np
from jax import lax
from jax.experimental import pallas as pl
from jax.experimental.pallas import tpu as pltpu

K = 7          # conv kernel size (DWConv(2, 1, k=7) -> gcd(2,1)=1 => regular conv)
PAD = K // 2   # autopad(7) = 3
C_TILE = 8     # channel band width for the finale


def _conv7_sigmoid_scaled(z_max, z_mean, w_ref, w_base, bias):
    """2-in-channel 7x7 'same' conv of the Z-pool pair + folded-BN bias + sigmoid,
    pre-scaled by 1/3.  Works entirely on register values (no padded scratch).
    The 7 dx lane shifts are hoisted out of the tap loop and reused for all dy."""
    P, Q = z_max.shape
    acc = jnp.zeros((P, Q), jnp.float32) + bias
    row_pad = jnp.zeros((PAD, Q + 2 * PAD), jnp.float32)
    col_pad = jnp.zeros((P, PAD), jnp.float32)
    for c, z in enumerate((z_max, z_mean)):
        zp = jnp.concatenate([col_pad, z, col_pad], axis=1)        # (P, Q+6)
        zp = jnp.concatenate([row_pad, zp, row_pad], axis=0)       # (P+6, Q+6)
        cols = [zp[:, dx:dx + Q] for dx in range(K)]               # 7 lane-shifted views
        for dy in range(K):
            row = cols[0] * w_ref[w_base + c * K * K + dy * K]
            for dx in range(1, K):
                wv = w_ref[w_base + c * K * K + dy * K + dx]       # scalar from SMEM
                row = row + cols[dx] * wv                          # pure VALU mul+add
            acc = acc + row[dy:dy + P, :]                          # one sublane band per dy
    return jax.nn.sigmoid(acc) * (1.0 / 3.0)


def ta_kernel(x_ref, w_ref, b_ref, y_ref):
    C, H, W = x_ref.shape

    # ---- Z-pool maps straight from the VMEM-resident block (f32 accumulation) ----
    x = x_ref[...]                                                 # native dtype
    zc_max = jnp.max(x, axis=0).astype(jnp.float32)                # (H, W)
    zc_mean = jnp.sum(x, axis=0, dtype=jnp.float32) * (1.0 / C)
    zh_max = jnp.max(x, axis=1).astype(jnp.float32)                # (C, W)
    zh_mean = jnp.sum(x, axis=1, dtype=jnp.float32) * (1.0 / H)
    zw_max = jnp.max(x, axis=2).astype(jnp.float32)                # (C, H)
    zw_mean = jnp.sum(x, axis=2, dtype=jnp.float32) * (1.0 / W)

    # ---- three 7x7 conv + folded-BN + sigmoid branches (already scaled by 1/3) ----
    a1 = _conv7_sigmoid_scaled(zc_max, zc_mean, w_ref, 0 * 2 * K * K, b_ref[0])  # (H, W)
    a2 = _conv7_sigmoid_scaled(zh_max, zh_mean, w_ref, 1 * 2 * K * K, b_ref[1])  # (C, W)
    a3 = _conv7_sigmoid_scaled(zw_max, zw_mean, w_ref, 2 * 2 * K * K, b_ref[2])  # (C, H)

    # ---- banded finale over channel tiles: never materialize a (C,H,W) f32 map ----
    # TODO(synk): v7x micro-opt — pre-transpose a3 and lane-splat per channel to avoid the
    # small per-tile lane->sublane relayout of a3_tile[:, :, None].
    a1b = a1[None, :, :]
    step = min(C_TILE, C)
    for lo in range(0, C, step):
        tc = min(step, C - lo)
        a2t = a2[lo:lo + tc][:, None, :]                           # (tc, 1, W)
        a3t = a3[lo:lo + tc][:, :, None]                           # (tc, H, 1)
        at = a1b + a2t + a3t                                       # (tc, H, W), f32
        xt = x_ref[pl.ds(lo, tc)].astype(jnp.float32)              # VMEM re-read, no HBM cost
        y_ref[pl.ds(lo, tc)] = (xt * at).astype(y_ref.dtype)       # single cast at the store


def triplet_attention(x, w_flat, b):
    B, C, H, W = x.shape
    blk_bytes = C * H * W * x.dtype.itemsize
    # enough for double-buffered in/out blocks + f32 intermediates; >= 32 MiB, <= 100 MiB
    vmem_limit = int(min(max(8 * blk_bytes + (4 << 20), 32 << 20), 100 << 20))
    return pl.pallas_call(
        ta_kernel,
        out_shape=jax.ShapeDtypeStruct((B, C, H, W), x.dtype),
        grid=(B,),
        in_specs=[
            pl.BlockSpec((None, C, H, W), lambda bb: (bb, 0, 0, 0)),
            pl.BlockSpec(memory_space=pltpu.MemorySpace.SMEM),     # folded conv weights
            pl.BlockSpec(memory_space=pltpu.MemorySpace.SMEM),     # folded BN biases
        ],
        out_specs=pl.BlockSpec((None, C, H, W), lambda bb: (bb, 0, 0, 0)),
        compiler_params=pltpu.CompilerParams(
            dimension_semantics=("parallel",),   # batches independent -> megacore sharding
            vmem_limit_bytes=vmem_limit,
        ),
    )(x, w_flat, b)


# -------------------- pure-JAX reference (for correctness check) --------------------
def ta_reference(x, wf1, wf2, wf3, b):
    def branch(xp, w, bias):
        z = jnp.concatenate([jnp.max(xp, axis=1, keepdims=True),
                             jnp.mean(xp, axis=1, keepdims=True)], axis=1)
        a = jax.lax.conv_general_dilated(
            z, w, window_strides=(1, 1), padding=[(PAD, PAD), (PAD, PAD)],
            dimension_numbers=("NCHW", "OIHW", "NCHW"))
        return jax.nn.sigmoid(a + bias)

    a1 = branch(x, wf1, b[0])                                                            # (B,1,H,W)
    a2 = jnp.transpose(branch(jnp.transpose(x, (0, 2, 1, 3)), wf2, b[1]), (0, 2, 1, 3))  # (B,C,1,W)
    a3 = jnp.transpose(branch(jnp.transpose(x, (0, 3, 1, 2)), wf3, b[2]), (0, 2, 3, 1))  # (B,C,H,1)
    return (x * a1 + x * a2 + x * a3) / 3.0


# -------------------- deterministic parameter init (conv + BN folded) ---------------
def init_conv_bn(kw, kg, kb, km):
    # Conv2d(2, 1, 7, pad=3, bias=False) weight
    w = jax.random.normal(kw, (1, 2, K, K), jnp.float32) * (1.0 / (2 * K * K) ** 0.5)
    gamma = 1.0 + 0.1 * jax.random.normal(kg, (1,), jnp.float32)   # BN weight
    beta = 0.1 * jax.random.normal(kb, (1,), jnp.float32)          # BN bias
    rmean = 0.1 * jax.random.normal(km, (1,), jnp.float32)         # running_mean
    rvar = jnp.ones((1,), jnp.float32)                             # running_var
    eps = 1e-3
    scale = gamma / jnp.sqrt(rvar + eps)
    wf = w * scale.reshape(1, 1, 1, 1)          # folded conv weight
    bias = beta - rmean * scale                 # folded bias
    return wf, bias


if __name__ == "__main__":
    B, C, H, W = 2, 4, 16, 16
    keys = jax.random.split(jax.random.PRNGKey(0), 13)
    x = jax.random.normal(keys[0], (B, C, H, W), jnp.float32)

    wf1, b1 = init_conv_bn(keys[1], keys[2], keys[3], keys[4])     # conv_spatial
    wf2, b2 = init_conv_bn(keys[5], keys[6], keys[7], keys[8])     # conv_channel_width
    wf3, b3 = init_conv_bn(keys[9], keys[10], keys[11], keys[12])  # conv_channel_height

    # flatten folded weights [conv][in_ch][ky][kx] into a single SMEM vector
    w_flat = jnp.concatenate([wf1.reshape(-1), wf2.reshape(-1), wf3.reshape(-1)])  # (294,)
    b = jnp.concatenate([b1, b2, b3])                                              # (3,)

    y = jax.jit(triplet_attention)(x, w_flat, b)
    y = jax.block_until_ready(y)

    y_ref = ta_reference(x, wf1, wf2, wf3, b)
    np.testing.assert_allclose(np.asarray(y), np.asarray(y_ref), rtol=1e-4, atol=1e-5)

    print("KERNEL_OK")
</pallas_src>

<mosaic_0001>
module attributes {stable_mosaic.version = 11 : i64} {
  func.func @ta_kernel(%arg0: i32, %arg1: memref<1x4x16x16xf32, #tpu.memory_space<vmem>>, %arg2: memref<294xf32, #tpu.memory_space<smem>>, %arg3: memref<3xf32, #tpu.memory_space<smem>>, %arg4: memref<1x4x16x16xf32, #tpu.memory_space<vmem>>) attributes {dimension_semantics = [#tpu.dimension_semantics<parallel>], iteration_bounds = array<i64: 2>, scalar_prefetch = 0 : i64, scratch_operands = 0 : i64, tpu.core_type = #tpu.core_type<tc>, window_params = [{transform_indices = @transform_0, window_bounds = array<i64: 1, 4, 16, 16>}, {transform_indices = @transform_1, window_bounds = array<i64: 294>}, {transform_indices = @transform_2, window_bounds = array<i64: 3>}, {transform_indices = @transform_3, window_bounds = array<i64: 1, 4, 16, 16>}]} {
    %c0 = arith.constant 0 : index
    %c0_0 = arith.constant 0 : index
    %c0_1 = arith.constant 0 : index
    %c0_2 = arith.constant 0 : index
    %0 = vector.load %arg1[%c0, %c0_0, %c0_1, %c0_2] : memref<1x4x16x16xf32, #tpu.memory_space<vmem>>, vector<1x4x16x16xf32>
    %1 = vector.shape_cast %0 : vector<1x4x16x16xf32> to vector<4x16x16xf32>
    %cst = arith.constant dense<0xFF800000> : vector<16x16xf32>
    %2 = vector.multi_reduction <maximumf>, %1, %cst [0] : vector<4x16x16xf32> to vector<16x16xf32>
    %cst_3 = arith.constant dense<0.000000e+00> : vector<16x16xf32>
    %3 = vector.multi_reduction <add>, %1, %cst_3 [0] : vector<4x16x16xf32> to vector<16x16xf32>
    %cst_4 = arith.constant 2.500000e-01 : f32
    %4 = vector.broadcast %cst_4 : f32 to vector<16x16xf32>
    %5 = arith.mulf %3, %4 : vector<16x16xf32>
    %cst_5 = arith.constant dense<0xFF800000> : vector<4x16xf32>
    %6 = vector.multi_reduction <maximumf>, %1, %cst_5 [1] : vector<4x16x16xf32> to vector<4x16xf32>
    %cst_6 = arith.constant dense<0.000000e+00> : vector<4x16xf32>
    %7 = vector.multi_reduction <add>, %1, %cst_6 [1] : vector<4x16x16xf32> to vector<4x16xf32>
    %cst_7 = arith.constant 6.250000e-02 : f32
    %8 = vector.broadcast %cst_7 : f32 to vector<4x16xf32>
    %9 = arith.mulf %7, %8 : vector<4x16xf32>
    %cst_8 = arith.constant dense<0xFF800000> : vector<4x16xf32>
    %10 = vector.multi_reduction <maximumf>, %1, %cst_8 [2] : vector<4x16x16xf32> to vector<4x16xf32>
    %cst_9 = arith.constant dense<0.000000e+00> : vector<4x16xf32>
    %11 = vector.multi_reduction <add>, %1, %cst_9 [2] : vector<4x16x16xf32> to vector<4x16xf32>
    %cst_10 = arith.constant 6.250000e-02 : f32
    %12 = vector.broadcast %cst_10 : f32 to vector<4x16xf32>
    %13 = arith.mulf %11, %12 : vector<4x16xf32>
    %c0_11 = arith.constant 0 : index
    %14 = memref.load %arg3[%c0_11] : memref<3xf32, #tpu.memory_space<smem>>
    %cst_12 = arith.constant 0.000000e+00 : f32
    %15 = vector.broadcast %cst_12 : f32 to vector<16x16xf32>
    %16 = vector.broadcast %14 : f32 to vector<16x16xf32>
    %17 = arith.addf %15, %16 : vector<16x16xf32>
    %cst_13 = arith.constant 0.000000e+00 : f32
    %18 = vector.broadcast %cst_13 : f32 to vector<3x22xf32>
    %cst_14 = arith.constant 0.000000e+00 : f32
    %19 = vector.broadcast %cst_14 : f32 to vector<16x3xf32>
    %20 = tpu.concatenate %19, %2, %19 in 1 : vector<16x3xf32>, vector<16x16xf32>, vector<16x3xf32> -> vector<16x22xf32>
    %21 = tpu.concatenate %18, %20, %18 in 0 : vector<3x22xf32>, vector<16x22xf32>, vector<3x22xf32> -> vector<22x22xf32>
    %22 = vector.extract_strided_slice %21 {offsets = [0, 0], sizes = [22, 16], strides = [1, 1]} : vector<22x22xf32> to vector<22x16xf32>
    %23 = vector.extract_strided_slice %21 {offsets = [0, 1], sizes = [22, 16], strides = [1, 1]} : vector<22x22xf32> to vector<22x16xf32>
    %24 = vector.extract_strided_slice %21 {offsets = [0, 2], sizes = [22, 16], strides = [1, 1]} : vector<22x22xf32> to vector<22x16xf32>
    %25 = vector.extract_strided_slice %21 {offsets = [0, 3], sizes = [22, 16], strides = [1, 1]} : vector<22x22xf32> to vector<22x16xf32>
    %26 = vector.extract_strided_slice %21 {offsets = [0, 4], sizes = [22, 16], strides = [1, 1]} : vector<22x22xf32> to vector<22x16xf32>
    %27 = vector.extract_strided_slice %21 {offsets = [0, 5], sizes = [22, 16], strides = [1, 1]} : vector<22x22xf32> to vector<22x16xf32>
    %28 = vector.extract_strided_slice %21 {offsets = [0, 6], sizes = [22, 16], strides = [1, 1]} : vector<22x22xf32> to vector<22x16xf32>
    %c0_15 = arith.constant 0 : index
    %29 = memref.load %arg2[%c0_15] : memref<294xf32, #tpu.memory_space<smem>>
    %30 = vector.broadcast %29 : f32 to vector<22x16xf32>
    %31 = arith.mulf %22, %30 : vector<22x16xf32>
    %c1 = arith.constant 1 : index
    %32 = memref.load %arg2[%c1] : memref<294xf32, #tpu.memory_space<smem>>
    %33 = vector.broadcast %32 : f32 to vector<22x16xf32>
    %34 = arith.mulf %23, %33 : vector<22x16xf32>
    %35 = arith.addf %31, %34 : vector<22x16xf32>
    %c2 = arith.constant 2 : index
    %36 = memref.load %arg2[%c2] : memref<294xf32, #tpu.memory_space<smem>>
    %37 = vector.broadcast %36 : f32 to vector<22x16xf32>
    %38 = arith.mulf %24, %37 : vector<22x16xf32>
    %39 = arith.addf %35, %38 : vector<22x16xf32>
    %c3 = arith.constant 3 : index
    %40 = memref.load %arg2[%c3] : memref<294xf32, #tpu.memory_space<smem>>
    %41 = vector.broadcast %40 : f32 to vector<22x16xf32>
    %42 = arith.mulf %25, %41 : vector<22x16xf32>
    %43 = arith.addf %39, %42 : vector<22x16xf32>
    %c4 = arith.constant 4 : index
    %44 = memref.load %arg2[%c4] : memref<294xf32, #tpu.memory_space<smem>>
    %45 = vector.broadcast %44 : f32 to vector<22x16xf32>
    %46 = arith.mulf %26, %45 : vector<22x16xf32>
    %47 = arith.addf %43, %46 : vector<22x16xf32>
    %c5 = arith.constant 5 : index
    %48 = memref.load %arg2[%c5] : memref<294xf32, #tpu.memory_space<smem>>
    %49 = vector.broadcast %48 : f32 to vector<22x16xf32>
    %50 = arith.mulf %27, %49 : vector<22x16xf32>
    %51 = arith.addf %47, %50 : vector<22x16xf32>
    %c6 = arith.constant 6 : index
    %52 = memref.load %arg2[%c6] : memref<294xf32, #tpu.memory_space<smem>>
    %53 = vector.broadcast %52 : f32 to vector<22x16xf32>
    %54 = arith.mulf %28, %53 : vector<22x16xf32>
    %55 = arith.addf %51, %54 : vector<22x16xf32>
    %56 = vector.extract_strided_slice %55 {offsets = [0, 0], sizes = [16, 16], strides = [1, 1]} : vector<22x16xf32> to vector<16x16xf32>
    %57 = arith.addf %17, %56 : vector<16x16xf32>
    %c7 = arith.constant 7 : index
    %58 = memref.load %arg2[%c7] : memref<294xf32, #tpu.memory_space<smem>>
    %59 = vector.broadcast %58 : f32 to vector<22x16xf32>
    %60 = arith.mulf %22, %59 : vector<22x16xf32>
    %c8 = arith.constant 8 : index
    %61 = memref.load %arg2[%c8] : memref<294xf32, #tpu.memory_space<smem>>
    %62 = vector.broadcast %61 : f32 to vector<22x16xf32>
    %63 = arith.mulf %23, %62 : vector<22x16xf32>
    %64 = arith.addf %60, %63 : vector<22x16xf32>
    %c9 = arith.constant 9 : index
    %65 = memref.load %arg2[%c9] : memref<294xf32, #tpu.memory_space<smem>>
    %66 = vector.broadcast %65 : f32 to vector<22x16xf32>
    %67 = arith.mulf %24, %66 : vector<22x16xf32>
    %68 = arith.addf %64, %67 : vector<22x16xf32>
    %c10 = arith.constant 10 : index
    %69 = memref.load %arg2[%c10] : memref<294xf32, #tpu.memory_space<smem>>
    %70 = vector.broadcast %69 : f32 to vector<22x16xf32>
    %71 = arith.mulf %25, %70 : vector<22x16xf32>
    %72 = arith.addf %68, %71 : vector<22x16xf32>
    %c11 = arith.constant 11 : index
    %73 = memref.load %arg2[%c11] : memref<294xf32, #tpu.memory_space<smem>>
    %74 = vector.broadcast %73 : f32 to vector<22x16xf32>
    %75 = arith.mulf %26, %74 : vector<22x16xf32>
    %76 = arith.addf %72, %75 : vector<22x16xf32>
    %c12 = arith.constant 12 : index
    %77 = memref.load %arg2[%c12] : memref<294xf32, #tpu.memory_space<smem>>
    %78 = vector.broadcast %77 : f32 to vector<22x16xf32>
    %79 = arith.mulf %27, %78 : vector<22x16xf32>
    %80 = arith.addf %76, %79 : vector<22x16xf32>
    %c13 = arith.constant 13 : index
    %81 = memref.load %arg2[%c13] : memref<294xf32, #tpu.memory_space<smem>>
    %82 = vector.broadcast %81 : f32 to vector<22x16xf32>
    %83 = arith.mulf %28, %82 : vector<22x16xf32>
    %84 = arith.addf %80, %83 : vector<22x16xf32>
    %85 = vector.extract_strided_slice %84 {offsets = [1, 0], sizes = [16, 16], strides = [1, 1]} : vector<22x16xf32> to vector<16x16xf32>
    %86 = arith.addf %57, %85 : vector<16x16xf32>
    %c14 = arith.constant 14 : index
    %87 = memref.load %arg2[%c14] : memref<294xf32, #tpu.memory_space<smem>>
    %88 = vector.broadcast %87 : f32 to vector<22x16xf32>
    %89 = arith.mulf %22, %88 : vector<22x16xf32>
    %c15 = arith.constant 15 : index
    %90 = memref.load %arg2[%c15] : memref<294xf32, #tpu.memory_space<smem>>
    %91 = vector.broadcast %90 : f32 to vector<22x16xf32>
    %92 = arith.mulf %23, %91 : vector<22x16xf32>
    %93 = arith.addf %89, %92 : vector<22x16xf32>
    %c16 = arith.constant 16 : index
    %94 = memref.load %arg2[%c16] : memref<294xf32, #tpu.memory_space<smem>>
    %95 = vector.broadcast %94 : f32 to vector<22x16xf32>
    %96 = arith.mulf %24, %95 : vector<22x16xf32>
    %97 = arith.addf %93, %96 : vector<22x16xf32>
    %c17 = arith.constant 17 : index
    %98 = memref.load %arg2[%c17] : memref<294xf32, #tpu.memory_space<smem>>
    %99 = vector.broadcast %98 : f32 to vector<22x16xf32>
    %100 = arith.mulf %25, %99 : vector<22x16xf32>
    %101 = arith.addf %97, %100 : vector<22x16xf32>
    %c18 = arith.constant 18 : index
    %102 = memref.load %arg2[%c18] : memref<294xf32, #tpu.memory_space<smem>>
    %103 = vector.broadcast %102 : f32 to vector<22x16xf32>
    %104 = arith.mulf %26, %103 : vector<22x16xf32>
    %105 = arith.addf %101, %104 : vector<22x16xf32>
    %c19 = arith.constant 19 : index
    %106 = memref.load %arg2[%c19] : memref<294xf32, #tpu.memory_space<smem>>
    %107 = vector.broadcast %106 : f32 to vector<22x16xf32>
    %108 = arith.mulf %27, %107 : vector<22x16xf32>
    %109 = arith.addf %105, %108 : vector<22x16xf32>
    %c20 = arith.constant 20 : index
    %110 = memref.load %arg2[%c20] : memref<294xf32, #tpu.memory_space<smem>>
    %111 = vector.broadcast %110 : f32 to vector<22x16xf32>
    %112 = arith.mulf %28, %111 : vector<22x16xf32>
    %113 = arith.addf %109, %112 : vector<22x16xf32>
    %114 = vector.extract_strided_slice %113 {offsets = [2, 0], sizes = [16, 16], strides = [1, 1]} : vector<22x16xf32> to vector<16x16xf32>
    %115 = arith.addf %86, %114 : vector<16x16xf32>
    %c21 = arith.constant 21 : index
    %116 = memref.load %arg2[%c21] : memref<294xf32, #tpu.memory_space<smem>>
    %117 = vector.broadcast %116 : f32 to vector<22x16xf32>
    %118 = arith.mulf %22, %117 : vector<22x16xf32>
    %c22 = arith.constant 22 : index
    %119 = memref.load %arg2[%c22] : memref<294xf32, #tpu.memory_space<smem>>
    %120 = vector.broadcast %119 : f32 to vector<22x16xf32>
    %121 = arith.mulf %23, %120 : vector<22x16xf32>
    %122 = arith.addf %118, %121 : vector<22x16xf32>
    %c23 = arith.constant 23 : index
    %123 = memref.load %arg2[%c23] : memref<294xf32, #tpu.memory_space<smem>>
    %124 = vector.broadcast %123 : f32 to vector<22x16xf32>
    %125 = arith.mulf %24, %124 : vector<22x16xf32>
    %126 = arith.addf %122, %125 : vector<22x16xf32>
    %c24 = arith.constant 24 : index
    %127 = memref.load %arg2[%c24] : memref<294xf32, #tpu.memory_space<smem>>
    %128 = vector.broadcast %127 : f32 to vector<22x16xf32>
    %129 = arith.mulf %25, %128 : vector<22x16xf32>
    %130 = arith.addf %126, %129 : vector<22x16xf32>
    %c25 = arith.constant 25 : index
    %131 = memref.load %arg2[%c25] : memref<294xf32, #tpu.memory_space<smem>>
    %132 = vector.broadcast %131 : f32 to vector<22x16xf32>
    %133 = arith.mulf %26, %132 : vector<22x16xf32>
    %134 = arith.addf %130, %133 : vector<22x16xf32>
    %c26 = arith.constant 26 : index
    %135 = memref.load %arg2[%c26] : memref<294xf32, #tpu.memory_space<smem>>
    %136 = vector.broadcast %135 : f32 to vector<22x16xf32>
    %137 = arith.mulf %27, %136 : vector<22x16xf32>
    %138 = arith.addf %134, %137 : vector<22x16xf32>
    %c27 = arith.constant 27 : index
    %139 = memref.load %arg2[%c27] : memref<294xf32, #tpu.memory_space<smem>>
    %140 = vector.broadcast %139 : f32 to vector<22x16xf32>
    %141 = arith.mulf %28, %140 : vector<22x16xf32>
    %142 = arith.addf %138, %141 : vector<22x16xf32>
    %143 = vector.extract_strided_slice %142 {offsets = [3, 0], sizes = [16, 16], strides = [1, 1]} : vector<22x16xf32> to vector<16x16xf32>
    %144 = arith.addf %115, %143 : vector<16x16xf32>
    %c28 = arith.constant 28 : index
    %145 = memref.load %arg2[%c28] : memref<294xf32, #tpu.memory_space<smem>>
    %146 = vector.broadcast %145 : f32 to vector<22x16xf32>
    %147 = arith.mulf %22, %146 : vector<22x16xf32>
    %c29 = arith.constant 29 : index
    %148 = memref.load %arg2[%c29] : memref<294xf32, #tpu.memory_space<smem>>
    %149 = vector.broadcast %148 : f32 to vector<22x16xf32>
    %150 = arith.mulf %23, %149 : vector<22x16xf32>
    %151 = arith.addf %147, %150 : vector<22x16xf32>
    %c30 = arith.constant 30 : index
    %152 = memref.load %arg2[%c30] : memref<294xf32, #tpu.memory_space<smem>>
    %153 = vector.broadcast %152 : f32 to vector<22x16xf32>
    %154 = arith.mulf %24, %153 : vector<22x16xf32>
    %155 = arith.addf %151, %154 : vector<22x16xf32>
    %c31 = arith.constant 31 : index
    %156 = memref.load %arg2[%c31] : memref<294xf32, #tpu.memory_space<smem>>
    %157 = vector.broadcast %156 : f32 to vector<22x16xf32>
    %158 = arith.mulf %25, %157 : vector<22x16xf32>
    %159 = arith.addf %155, %158 : vector<22x16xf32>
    %c32 = arith.constant 32 : index
    %160 = memref.load %arg2[%c32] : memref<294xf32, #tpu.memory_space<smem>>
    %161 = vector.broadcast %160 : f32 to vector<22x16xf32>
    %162 = arith.mulf %26, %161 : vector<22x16xf32>
    %163 = arith.addf %159, %162 : vector<22x16xf32>
    %c33 = arith.constant 33 : index
    %164 = memref.load %arg2[%c33] : memref<294xf32, #tpu.memory_space<smem>>
    %165 = vector.broadcast %164 : f32 to vector<22x16xf32>
    %166 = arith.mulf %27, %165 : vector<22x16xf32>
    %167 = arith.addf %163, %166 : vector<22x16xf32>
    %c34 = arith.constant 34 : index
    %168 = memref.load %arg2[%c34] : memref<294xf32, #tpu.memory_space<smem>>
    %169 = vector.broadcast %168 : f32 to vector<22x16xf32>
    %170 = arith.mulf %28, %169 : vector<22x16xf32>
    %171 = arith.addf %167, %170 : vector<22x16xf32>
    %172 = vector.extract_strided_slice %171 {offsets = [4, 0], sizes = [16, 16], strides = [1, 1]} : vector<22x16xf32> to vector<16x16xf32>
    %173 = arith.addf %144, %172 : vector<16x16xf32>
    %c35 = arith.constant 35 : index
    %174 = memref.load %arg2[%c35] : memref<294xf32, #tpu.memory_space<smem>>
    %175 = vector.broadcast %174 : f32 to vector<22x16xf32>
    %176 = arith.mulf %22, %175 : vector<22x16xf32>
    %c36 = arith.constant 36 : index
    %177 = memref.load %arg2[%c36] : memref<294xf32, #tpu.memory_space<smem>>
    %178 = vector.broadcast %177 : f32 to vector<22x16xf32>
    %179 = arith.mulf %23, %178 : vector<22x16xf32>
    %180 = arith.addf %176, %179 : vector<22x16xf32>
    %c37 = arith.constant 37 : index
    %181 = memref.load %arg2[%c37] : memref<294xf32, #tpu.memory_space<smem>>
    %182 = vector.broadcast %181 : f32 to vector<22x16xf32>
    %183 = arith.mulf %24, %182 : vector<22x16xf32>
    %184 = arith.addf %180, %183 : vector<22x16xf32>
    %c38 = arith.constant 38 : index
    %185 = memref.load %arg2[%c38] : memref<294xf32, #tpu.memory_space<smem>>
    %186 = vector.broadcast %185 : f32 to vector<22x16xf32>
    %187 = arith.mulf %25, %186 : vector<22x16xf32>
    %188 = arith.addf %184, %187 : vector<22x16xf32>
    %c39 = arith.constant 39 : index
    %189 = memref.load %arg2[%c39] : memref<294xf32, #tpu.memory_space<smem>>
    %190 = vector.broadcast %189 : f32 to vector<22x16xf32>
    %191 = arith.mulf %26, %190 : vector<22x16xf32>
    %192 = arith.addf %188, %191 : vector<22x16xf32>
    %c40 = arith.constant 40 : index
    %193 = memref.load %arg2[%c40] : memref<294xf32, #tpu.memory_space<smem>>
    %194 = vector.broadcast %193 : f32 to vector<22x16xf32>
    %195 = arith.mulf %27, %194 : vector<22x16xf32>
    %196 = arith.addf %192, %195 : vector<22x16xf32>
    %c41 = arith.constant 41 : index
    %197 = memref.load %arg2[%c41] : memref<294xf32, #tpu.memory_space<smem>>
    %198 = vector.broadcast %197 : f32 to vector<22x16xf32>
    %199 = arith.mulf %28, %198 : vector<22x16xf32>
    %200 = arith.addf %196, %199 : vector<22x16xf32>
    %201 = vector.extract_strided_slice %200 {offsets = [5, 0], sizes = [16, 16], strides = [1, 1]} : vector<22x16xf32> to vector<16x16xf32>
    %202 = arith.addf %173, %201 : vector<16x16xf32>
    %c42 = arith.constant 42 : index
    %203 = memref.load %arg2[%c42] : memref<294xf32, #tpu.memory_space<smem>>
    %204 = vector.broadcast %203 : f32 to vector<22x16xf32>
    %205 = arith.mulf %22, %204 : vector<22x16xf32>
    %c43 = arith.constant 43 : index
    %206 = memref.load %arg2[%c43] : memref<294xf32, #tpu.memory_space<smem>>
    %207 = vector.broadcast %206 : f32 to vector<22x16xf32>
    %208 = arith.mulf %23, %207 : vector<22x16xf32>
    %209 = arith.addf %205, %208 : vector<22x16xf32>
    %c44 = arith.constant 44 : index
    %210 = memref.load %arg2[%c44] : memref<294xf32, #tpu.memory_space<smem>>
    %211 = vector.broadcast %210 : f32 to vector<22x16xf32>
    %212 = arith.mulf %24, %211 : vector<22x16xf32>
    %213 = arith.addf %209, %212 : vector<22x16xf32>
    %c45 = arith.constant 45 : index
    %214 = memref.load %arg2[%c45] : memref<294xf32, #tpu.memory_space<smem>>
    %215 = vector.broadcast %214 : f32 to vector<22x16xf32>
    %216 = arith.mulf %25, %215 : vector<22x16xf32>
    %217 = arith.addf %213, %216 : vector<22x16xf32>
    %c46 = arith.constant 46 : index
    %218 = memref.load %arg2[%c46] : memref<294xf32, #tpu.memory_space<smem>>
    %219 = vector.broadcast %218 : f32 to vector<22x16xf32>
    %220 = arith.mulf %26, %219 : vector<22x16xf32>
    %221 = arith.addf %217, %220 : vector<22x16xf32>
    %c47 = arith.constant 47 : index
    %222 = memref.load %arg2[%c47] : memref<294xf32, #tpu.memory_space<smem>>
    %223 = vector.broadcast %222 : f32 to vector<22x16xf32>
    %224 = arith.mulf %27, %223 : vector<22x16xf32>
    %225 = arith.addf %221, %224 : vector<22x16xf32>
    %c48 = arith.constant 48 : index
    %226 = memref.load %arg2[%c48] : memref<294xf32, #tpu.memory_space<smem>>
    %227 = vector.broadcast %226 : f32 to vector<22x16xf32>
    %228 = arith.mulf %28, %227 : vector<22x16xf32>
    %229 = arith.addf %225, %228 : vector<22x16xf32>
    %230 = vector.extract_strided_slice %229 {offsets = [6, 0], sizes = [16, 16], strides = [1, 1]} : vector<22x16xf32> to vector<16x16xf32>
    %231 = arith.addf %202, %230 : vector<16x16xf32>
    %232 = tpu.concatenate %19, %5, %19 in 1 : vector<16x3xf32>, vector<16x16xf32>, vector<16x3xf32> -> vector<16x22xf32>
    %233 = tpu.concatenate %18, %232, %18 in 0 : vector<3x22xf32>, vector<16x22xf32>, vector<3x22xf32> -> vector<22x22xf32>
    %234 = vector.extract_strided_slice %233 {offsets = [0, 0], sizes = [22, 16], strides = [1, 1]} : vector<22x22xf32> to vector<22x16xf32>
    %235 = vector.extract_strided_slice %233 {offsets = [0, 1], sizes = [22, 16], strides = [1, 1]} : vector<22x22xf32> to vector<22x16xf32>
    %236 = vector.extract_strided_slice %233 {offsets = [0, 2], sizes = [22, 16], strides = [1, 1]} : vector<22x22xf32> to vector<22x16xf32>
    %237 = vector.extract_strided_slice %233 {offsets = [0, 3], sizes = [22, 16], strides = [1, 1]} : vector<22x22xf32> to vector<22x16xf32>
    %238 = vector.extract_strided_slice %233 {offsets = [0, 4], sizes = [22, 16], strides = [1, 1]} : vector<22x22xf32> to vector<22x16xf32>
    %239 = vector.extract_strided_slice %233 {offsets = [0, 5], sizes = [22, 16], strides = [1, 1]} : vector<22x22xf32> to vector<22x16xf32>
    %240 = vector.extract_strided_slice %233 {offsets = [0, 6], sizes = [22, 16], strides = [1, 1]} : vector<22x22xf32> to vector<22x16xf32>
    %c49 = arith.constant 49 : index
    %241 = memref.load %arg2[%c49] : memref<294xf32, #tpu.memory_space<smem>>
    %242 = vector.broadcast %241 : f32 to vector<22x16xf32>
    %243 = arith.mulf %234, %242 : vector<22x16xf32>
    %c50 = arith.constant 50 : index
    %244 = memref.load %arg2[%c50] : memref<294xf32, #tpu.memory_space<smem>>
    %245 = vector.broadcast %244 : f32 to vector<22x16xf32>
    %246 = arith.mulf %235, %245 : vector<22x16xf32>
    %247 = arith.addf %243, %246 : vector<22x16xf32>
    %c51 = arith.constant 51 : index
    %248 = memref.load %arg2[%c51] : memref<294xf32, #tpu.memory_space<smem>>
    %249 = vector.broadcast %248 : f32 to vector<22x16xf32>
    %250 = arith.mulf %236, %249 : vector<22x16xf32>
    %251 = arith.addf %247, %250 : vector<22x16xf32>
    %c52 = arith.constant 52 : index
    %252 = memref.load %arg2[%c52] : memref<294xf32, #tpu.memory_space<smem>>
    %253 = vector.broadcast %252 : f32 to vector<22x16xf32>
    %254 = arith.mulf %237, %253 : vector<22x16xf32>
    %255 = arith.addf %251, %254 : vector<22x16xf32>
    %c53 = arith.constant 53 : index
    %256 = memref.load %arg2[%c53] : memref<294xf32, #tpu.memory_space<smem>>
    %257 = vector.broadcast %256 : f32 to vector<22x16xf32>
    %258 = arith.mulf %238, %257 : vector<22x16xf32>
    %259 = arith.addf %255, %258 : vector<22x16xf32>
    %c54 = arith.constant 54 : index
    %260 = memref.load %arg2[%c54] : memref<294xf32, #tpu.memory_space<smem>>
    %261 = vector.broadcast %260 : f32 to vector<22x16xf32>
    %262 = arith.mulf %239, %261 : vector<22x16xf32>
    %263 = arith.addf %259, %262 : vector<22x16xf32>
    %c55 = arith.constant 55 : index
    %264 = memref.load %arg2[%c55] : memref<294xf32, #tpu.memory_space<smem>>
    %265 = vector.broadcast %264 : f32 to vector<22x16xf32>
    %266 = arith.mulf %240, %265 : vector<22x16xf32>
    %267 = arith.addf %263, %266 : vector<22x16xf32>
    %268 = vector.extract_strided_slice %267 {offsets = [0, 0], sizes = [16, 16], strides = [1, 1]} : vector<22x16xf32> to vector<16x16xf32>
    %269 = arith.addf %231, %268 : vector<16x16xf32>
    %c56 = arith.constant 56 : index
    %270 = memref.load %arg2[%c56] : memref<294xf32, #tpu.memory_space<smem>>
    %271 = vector.broadcast %270 : f32 to vector<22x16xf32>
    %272 = arith.mulf %234, %271 : vector<22x16xf32>
    %c57 = arith.constant 57 : index
    %273 = memref.load %arg2[%c57] : memref<294xf32, #tpu.memory_space<smem>>
    %274 = vector.broadcast %273 : f32 to vector<22x16xf32>
    %275 = arith.mulf %235, %274 : vector<22x16xf32>
    %276 = arith.addf %272, %275 : vector<22x16xf32>
    %c58 = arith.constant 58 : index
    %277 = memref.load %arg2[%c58] : memref<294xf32, #tpu.memory_space<smem>>
    %278 = vector.broadcast %277 : f32 to vector<22x16xf32>
    %279 = arith.mulf %236, %278 : vector<22x16xf32>
    %280 = arith.addf %276, %279 : vector<22x16xf32>
    %c59 = arith.constant 59 : index
    %281 = memref.load %arg2[%c59] : memref<294xf32, #tpu.memory_space<smem>>
    %282 = vector.broadcast %281 : f32 to vector<22x16xf32>
    %283 = arith.mulf %237, %282 : vector<22x16xf32>
    %284 = arith.addf %280, %283 : vector<22x16xf32>
    %c60 = arith.constant 60 : index
    %285 = memref.load %arg2[%c60] : memref<294xf32, #tpu.memory_space<smem>>
    %286 = vector.broadcast %285 : f32 to vector<22x16xf32>
    %287 = arith.mulf %238, %286 : vector<22x16xf32>
    %288 = arith.addf %284, %287 : vector<22x16xf32>
    %c61 = arith.constant 61 : index
    %289 = memref.load %arg2[%c61] : memref<294xf32, #tpu.memory_space<smem>>
    %290 = vector.broadcast %289 : f32 to vector<22x16xf32>
    %291 = arith.mulf %239, %290 : vector<22x16xf32>
    %292 = arith.addf %288, %291 : vector<22x16xf32>
    %c62 = arith.constant 62 : index
    %293 = memref.load %arg2[%c62] : memref<294xf32, #tpu.memory_space<smem>>
    %294 = vector.broadcast %293 : f32 to vector<22x16xf32>
    %295 = arith.mulf %240, %294 : vector<22x16xf32>
    %296 = arith.addf %292, %295 : vector<22x16xf32>
    %297 = vector.extract_strided_slice %296 {offsets = [1, 0], sizes = [16, 16], strides = [1, 1]} : vector<22x16xf32> to vector<16x16xf32>
    %298 = arith.addf %269, %297 : vector<16x16xf32>
    %c63 = arith.constant 63 : index
    %299 = memref.load %arg2[%c63] : memref<294xf32, #tpu.memory_space<smem>>
    %300 = vector.broadcast %299 : f32 to vector<22x16xf32>
    %301 = arith.mulf %234, %300 : vector<22x16xf32>
    %c64 = arith.constant 64 : index
    %302 = memref.load %arg2[%c64] : memref<294xf32, #tpu.memory_space<smem>>
    %303 = vector.broadcast %302 : f32 to vector<22x16xf32>
    %304 = arith.mulf %235, %303 : vector<22x16xf32>
    %305 = arith.addf %301, %304 : vector<22x16xf32>
    %c65 = arith.constant 65 : index
    %306 = memref.load %arg2[%c65] : memref<294xf32, #tpu.memory_space<smem>>
    %307 = vector.broadcast %306 : f32 to vector<22x16xf32>
    %308 = arith.mulf %236, %307 : vector<22x16xf32>
    %309 = arith.addf %305, %308 : vector<22x16xf32>
    %c66 = arith.constant 66 : index
    %310 = memref.load %arg2[%c66] : memref<294xf32, #tpu.memory_space<smem>>
    %311 = vector.broadcast %310 : f32 to vector<22x16xf32>
    %312 = arith.mulf %237, %311 : vector<22x16xf32>
    %313 = arith.addf %309, %312 : vector<22x16xf32>
    %c67 = arith.constant 67 : index
    %314 = memref.load %arg2[%c67] : memref<294xf32, #tpu.memory_space<smem>>
    %315 = vector.broadcast %314 : f32 to vector<22x16xf32>
    %316 = arith.mulf %238, %315 : vector<22x16xf32>
    %317 = arith.addf %313, %316 : vector<22x16xf32>
    %c68 = arith.constant 68 : index
    %318 = memref.load %arg2[%c68] : memref<294xf32, #tpu.memory_space<smem>>
    %319 = vector.broadcast %318 : f32 to vector<22x16xf32>
    %320 = arith.mulf %239, %319 : vector<22x16xf32>
    %321 = arith.addf %317, %320 : vector<22x16xf32>
    %c69 = arith.constant 69 : index
    %322 = memref.load %arg2[%c69] : memref<294xf32, #tpu.memory_space<smem>>
    %323 = vector.broadcast %322 : f32 to vector<22x16xf32>
    %324 = arith.mulf %240, %323 : vector<22x16xf32>
    %325 = arith.addf %321, %324 : vector<22x16xf32>
    %326 = vector.extract_strided_slice %325 {offsets = [2, 0], sizes = [16, 16], strides = [1, 1]} : vector<22x16xf32> to vector<16x16xf32>
    %327 = arith.addf %298, %326 : vector<16x16xf32>
    %c70 = arith.constant 70 : index
    %328 = memref.load %arg2[%c70] : memref<294xf32, #tpu.memory_space<smem>>
    %329 = vector.broadcast %328 : f32 to vector<22x16xf32>
    %330 = arith.mulf %234, %329 : vector<22x16xf32>
    %c71 = arith.constant 71 : index
    %331 = memref.load %arg2[%c71] : memref<294xf32, #tpu.memory_space<smem>>
    %332 = vector.broadcast %331 : f32 to vector<22x16xf32>
    %333 = arith.mulf %235, %332 : vector<22x16xf32>
    %334 = arith.addf %330, %333 : vector<22x16xf32>
    %c72 = arith.constant 72 : index
    %335 = memref.load %arg2[%c72] : memref<294xf32, #tpu.memory_space<smem>>
    %336 = vector.broadcast %335 : f32 to vector<22x16xf32>
    %337 = arith.mulf %236, %336 : vector<22x16xf32>
    %338 = arith.addf %334, %337 : vector<22x16xf32>
    %c73 = arith.constant 73 : index
    %339 = memref.load %arg2[%c73] : memref<294xf32, #tpu.memory_space<smem>>
    %340 = vector.broadcast %339 : f32 to vector<22x16xf32>
    %341 = arith.mulf %237, %340 : vector<22x16xf32>
    %342 = arith.addf %338, %341 : vector<22x16xf32>
    %c74 = arith.constant 74 : index
    %343 = memref.load %arg2[%c74] : memref<294xf32, #tpu.memory_space<smem>>
    %344 = vector.broadcast %343 : f32 to vector<22x16xf32>
    %345 = arith.mulf %238, %344 : vector<22x16xf32>
    %346 = arith.addf %342, %345 : vector<22x16xf32>
    %c75 = arith.constant 75 : index
    %347 = memref.load %arg2[%c75] : memref<294xf32, #tpu.memory_space<smem>>
    %348 = vector.broadcast %347 : f32 to vector<22x16xf32>
    %349 = arith.mulf %239, %348 : vector<22x16xf32>
    %350 = arith.addf %346, %349 : vector<22x16xf32>
    %c76 = arith.constant 76 : index
    %351 = memref.load %arg2[%c76] : memref<294xf32, #tpu.memory_space<smem>>
    %352 = vector.broadcast %351 : f32 to vector<22x16xf32>
    %353 = arith.mulf %240, %352 : vector<22x16xf32>
    %354 = arith.addf %350, %353 : vector<22x16xf32>
    %355 = vector.extract_strided_slice %354 {offsets = [3, 0], sizes = [16, 16], strides = [1, 1]} : vector<22x16xf32> to vector<16x16xf32>
    %356 = arith.addf %327, %355 : vector<16x16xf32>
    %c77 = arith.constant 77 : index
    %357 = memref.load %arg2[%c77] : memref<294xf32, #tpu.memory_space<smem>>
    %358 = vector.broadcast %357 : f32 to vector<22x16xf32>
    %359 = arith.mulf %234, %358 : vector<22x16xf32>
    %c78 = arith.constant 78 : index
    %360 = memref.load %arg2[%c78] : memref<294xf32, #tpu.memory_space<smem>>
    %361 = vector.broadcast %360 : f32 to vector<22x16xf32>
    %362 = arith.mulf %235, %361 : vector<22x16xf32>
    %363 = arith.addf %359, %362 : vector<22x16xf32>
    %c79 = arith.constant 79 : index
    %364 = memref.load %arg2[%c79] : memref<294xf32, #tpu.memory_space<smem>>
    %365 = vector.broadcast %364 : f32 to vector<22x16xf32>
    %366 = arith.mulf %236, %365 : vector<22x16xf32>
    %367 = arith.addf %363, %366 : vector<22x16xf32>
    %c80 = arith.constant 80 : index
    %368 = memref.load %arg2[%c80] : memref<294xf32, #tpu.memory_space<smem>>
    %369 = vector.broadcast %368 : f32 to vector<22x16xf32>
    %370 = arith.mulf %237, %369 : vector<22x16xf32>
    %371 = arith.addf %367, %370 : vector<22x16xf32>
    %c81 = arith.constant 81 : index
    %372 = memref.load %arg2[%c81] : memref<294xf32, #tpu.memory_space<smem>>
    %373 = vector.broadcast %372 : f32 to vector<22x16xf32>
    %374 = arith.mulf %238, %373 : vector<22x16xf32>
    %375 = arith.addf %371, %374 : vector<22x16xf32>
    %c82 = arith.constant 82 : index
    %376 = memref.load %arg2[%c82] : memref<294xf32, #tpu.memory_space<smem>>
    %377 = vector.broadcast %376 : f32 to vector<22x16xf32>
    %378 = arith.mulf %239, %377 : vector<22x16xf32>
    %379 = arith.addf %375, %378 : vector<22x16xf32>
    %c83 = arith.constant 83 : index
    %380 = memref.load %arg2[%c83] : memref<294xf32, #tpu.memory_space<smem>>
    %381 = vector.broadcast %380 : f32 to vector<22x16xf32>
    %382 = arith.mulf %240, %381 : vector<22x16xf32>
    %383 = arith.addf %379, %382 : vector<22x16xf32>
    %384 = vector.extract_strided_slice %383 {offsets = [4, 0], sizes = [16, 16], strides = [1, 1]} : vector<22x16xf32> to vector<16x16xf32>
    %385 = arith.addf %356, %384 : vector<16x16xf32>
    %c84 = arith.constant 84 : index
    %386 = memref.load %arg2[%c84] : memref<294xf32, #tpu.memory_space<smem>>
    %387 = vector.broadcast %386 : f32 to vector<22x16xf32>
    %388 = arith.mulf %234, %387 : vector<22x16xf32>
    %c85 = arith.constant 85 : index
    %389 = memref.load %arg2[%c85] : memref<294xf32, #tpu.memory_space<smem>>
    %390 = vector.broadcast %389 : f32 to vector<22x16xf32>
    %391 = arith.mulf %235, %390 : vector<22x16xf32>
    %392 = arith.addf %388, %391 : vector<22x16xf32>
    %c86 = arith.constant 86 : index
    %393 = memref.load %arg2[%c86] : memref<294xf32, #tpu.memory_space<smem>>
    %394 = vector.broadcast %393 : f32 to vector<22x16xf32>
    %395 = arith.mulf %236, %394 : vector<22x16xf32>
    %396 = arith.addf %392, %395 : vector<22x16xf32>
    %c87 = arith.constant 87 : index
    %397 = memref.load %arg2[%c87] : memref<294xf32, #tpu.memory_space<smem>>
    %398 = vector.broadcast %397 : f32 to vector<22x16xf32>
    %399 = arith.mulf %237, %398 : vector<22x16xf32>
    %400 = arith.addf %396, %399 : vector<22x16xf32>
    %c88 = arith.constant 88 : index
    %401 = memref.load %arg2[%c88] : memref<294xf32, #tpu.memory_space<smem>>
    %402 = vector.broadcast %401 : f32 to vector<22x16xf32>
    %403 = arith.mulf %238, %402 : vector<22x16xf32>
    %404 = arith.addf %400, %403 : vector<22x16xf32>
    %c89 = arith.constant 89 : index
    %405 = memref.load %arg2[%c89] : memref<294xf32, #tpu.memory_space<smem>>
    %406 = vector.broadcast %405 : f32 to vector<22x16xf32>
    %407 = arith.mulf %239, %406 : vector<22x16xf32>
    %408 = arith.addf %404, %407 : vector<22x16xf32>
    %c90 = arith.constant 90 : index
    %409 = memref.load %arg2[%c90] : memref<294xf32, #tpu.memory_space<smem>>
    %410 = vector.broadcast %409 : f32 to vector<22x16xf32>
    %411 = arith.mulf %240, %410 : vector<22x16xf32>
    %412 = arith.addf %408, %411 : vector<22x16xf32>
    %413 = vector.extract_strided_slice %412 {offsets = [5, 0], sizes = [16, 16], strides = [1, 1]} : vector<22x16xf32> to vector<16x16xf32>
    %414 = arith.addf %385, %413 : vector<16x16xf32>
    %c91 = arith.constant 91 : index
    %415 = memref.load %arg2[%c91] : memref<294xf32, #tpu.memory_space<smem>>
    %416 = vector.broadcast %415 : f32 to vector<22x16xf32>
    %417 = arith.mulf %234, %416 : vector<22x16xf32>
    %c92 = arith.constant 92 : index
    %418 = memref.load %arg2[%c92] : memref<294xf32, #tpu.memory_space<smem>>
    %419 = vector.broadcast %418 : f32 to vector<22x16xf32>
    %420 = arith.mulf %235, %419 : vector<22x16xf32>
    %421 = arith.addf %417, %420 : vector<22x16xf32>
    %c93 = arith.constant 93 : index
    %422 = memref.load %arg2[%c93] : memref<294xf32, #tpu.memory_space<smem>>
    %423 = vector.broadcast %422 : f32 to vector<22x16xf32>
    %424 = arith.mulf %236, %423 : vector<22x16xf32>
    %425 = arith.addf %421, %424 : vector<22x16xf32>
    %c94 = arith.constant 94 : index
    %426 = memref.load %arg2[%c94] : memref<294xf32, #tpu.memory_space<smem>>
    %427 = vector.broadcast %426 : f32 to vector<22x16xf32>
    %428 = arith.mulf %237, %427 : vector<22x16xf32>
    %429 = arith.addf %425, %428 : vector<22x16xf32>
    %c95 = arith.constant 95 : index
    %430 = memref.load %arg2[%c95] : memref<294xf32, #tpu.memory_space<smem>>
    %431 = vector.broadcast %430 : f32 to vector<22x16xf32>
    %432 = arith.mulf %238, %431 : vector<22x16xf32>
    %433 = arith.addf %429, %432 : vector<22x16xf32>
    %c96 = arith.constant 96 : index
    %434 = memref.load %arg2[%c96] : memref<294xf32, #tpu.memory_space<smem>>
    %435 = vector.broadcast %434 : f32 to vector<22x16xf32>
    %436 = arith.mulf %239, %435 : vector<22x16xf32>
    %437 = arith.addf %433, %436 : vector<22x16xf32>
    %c97 = arith.constant 97 : index
    %438 = memref.load %arg2[%c97] : memref<294xf32, #tpu.memory_space<smem>>
    %439 = vector.broadcast %438 : f32 to vector<22x16xf32>
    %440 = arith.mulf %240, %439 : vector<22x16xf32>
    %441 = arith.addf %437, %440 : vector<22x16xf32>
    %442 = vector.extract_strided_slice %441 {offsets = [6, 0], sizes = [16, 16], strides = [1, 1]} : vector<22x16xf32> to vector<16x16xf32>
    %443 = arith.addf %414, %442 : vector<16x16xf32>
    %444 = arith.negf %443 : vector<16x16xf32>
    %445 = math.exp %444 : vector<16x16xf32>
    %cst_16 = arith.constant 1.000000e+00 : f32
    %446 = vector.broadcast %cst_16 : f32 to vector<16x16xf32>
    %447 = arith.addf %446, %445 : vector<16x16xf32>
    %448 = arith.divf %446, %447 : vector<16x16xf32>
    %cst_17 = arith.constant 0.333333343 : f32
    %449 = vector.broadcast %cst_17 : f32 to vector<16x16xf32>
    %450 = arith.mulf %448, %449 : vector<16x16xf32>
    %c1_18 = arith.constant 1 : index
    %451 = memref.load %arg3[%c1_18] : memref<3xf32, #tpu.memory_space<smem>>
    %cst_19 = arith.constant 0.000000e+00 : f32
    %452 = vector.broadcast %cst_19 : f32 to vector<4x16xf32>
    %453 = vector.broadcast %451 : f32 to vector<4x16xf32>
    %454 = arith.addf %452, %453 : vector<4x16xf32>
    %cst_20 = arith.constant 0.000000e+00 : f32
    %455 = vector.broadcast %cst_20 : f32 to vector<3x22xf32>
    %cst_21 = arith.constant 0.000000e+00 : f32
    %456 = vector.broadcast %cst_21 : f32 to vector<4x3xf32>
    %457 = tpu.concatenate %456, %6, %456 in 1 : vector<4x3xf32>, vector<4x16xf32>, vector<4x3xf32> -> vector<4x22xf32>
    %458 = tpu.concatenate %455, %457, %455 in 0 : vector<3x22xf32>, vector<4x22xf32>, vector<3x22xf32> -> vector<10x22xf32>
    %459 = vector.extract_strided_slice %458 {offsets = [0, 0], sizes = [10, 16], strides = [1, 1]} : vector<10x22xf32> to vector<10x16xf32>
    %460 = vector.extract_strided_slice %458 {offsets = [0, 1], sizes = [10, 16], strides = [1, 1]} : vector<10x22xf32> to vector<10x16xf32>
    %461 = vector.extract_strided_slice %458 {offsets = [0, 2], sizes = [10, 16], strides = [1, 1]} : vector<10x22xf32> to vector<10x16xf32>
    %462 = vector.extract_strided_slice %458 {offsets = [0, 3], sizes = [10, 16], strides = [1, 1]} : vector<10x22xf32> to vector<10x16xf32>
    %463 = vector.extract_strided_slice %458 {offsets = [0, 4], sizes = [10, 16], strides = [1, 1]} : vector<10x22xf32> to vector<10x16xf32>
    %464 = vector.extract_strided_slice %458 {offsets = [0, 5], sizes = [10, 16], strides = [1, 1]} : vector<10x22xf32> to vector<10x16xf32>
    %465 = vector.extract_strided_slice %458 {offsets = [0, 6], sizes = [10, 16], strides = [1, 1]} : vector<10x22xf32> to vector<10x16xf32>
    %c98 = arith.constant 98 : index
    %466 = memref.load %arg2[%c98] : memref<294xf32, #tpu.memory_space<smem>>
    %467 = vector.broadcast %466 : f32 to vector<10x16xf32>
    %468 = arith.mulf %459, %467 : vector<10x16xf32>
    %c99 = arith.constant 99 : index
    %469 = memref.load %arg2[%c99] : memref<294xf32, #tpu.memory_space<smem>>
    %470 = vector.broadcast %469 : f32 to vector<10x16xf32>
    %471 = arith.mulf %460, %470 : vector<10x16xf32>
    %472 = arith.addf %468, %471 : vector<10x16xf32>
    %c100 = arith.constant 100 : index
    %473 = memref.load %arg2[%c100] : memref<294xf32, #tpu.memory_space<smem>>
    %474 = vector.broadcast %473 : f32 to vector<10x16xf32>
    %475 = arith.mulf %461, %474 : vector<10x16xf32>
    %476 = arith.addf %472, %475 : vector<10x16xf32>
    %c101 = arith.constant 101 : index
    %477 = memref.load %arg2[%c101] : memref<294xf32, #tpu.memory_space<smem>>
    %478 = vector.broadcast %477 : f32 to vector<10x16xf32>
    %479 = arith.mulf %462, %478 : vector<10x16xf32>
    %480 = arith.addf %476, %479 : vector<10x16xf32>
    %c102 = arith.constant 102 : index
    %481 = memref.load %arg2[%c102] : memref<294xf32, #tpu.memory_space<smem>>
    %482 = vector.broadcast %481 : f32 to vector<10x16xf32>
    %483 = arith.mulf %463, %482 : vector<10x16xf32>
    %484 = arith.addf %480, %483 : vector<10x16xf32>
    %c103 = arith.constant 103 : index
    %485 = memref.load %arg2[%c103] : memref<294xf32, #tpu.memory_space<smem>>
    %486 = vector.broadcast %485 : f32 to vector<10x16xf32>
    %487 = arith.mulf %464, %486 : vector<10x16xf32>
    %488 = arith.addf %484, %487 : vector<10x16xf32>
    %c104 = arith.constant 104 : index
    %489 = memref.load %arg2[%c104] : memref<294xf32, #tpu.memory_space<smem>>
    %490 = vector.broadcast %489 : f32 to vector<10x16xf32>
    %491 = arith.mulf %465, %490 : vector<10x16xf32>
    %492 = arith.addf %488, %491 : vector<10x16xf32>
    %493 = vector.extract_strided_slice %492 {offsets = [0, 0], sizes = [4, 16], strides = [1, 1]} : vector<10x16xf32> to vector<4x16xf32>
    %494 = arith.addf %454, %493 : vector<4x16xf32>
    %c105 = arith.constant 105 : index
    %495 = memref.load %arg2[%c105] : memref<294xf32, #tpu.memory_space<smem>>
    %496 = vector.broadcast %495 : f32 to vector<10x16xf32>
    %497 = arith.mulf %459, %496 : vector<10x16xf32>
    %c106 = arith.constant 106 : index
    %498 = memref.load %arg2[%c106] : memref<294xf32, #tpu.memory_space<smem>>
    %499 = vector.broadcast %498 : f32 to vector<10x16xf32>
    %500 = arith.mulf %460, %499 : vector<10x16xf32>
    %501 = arith.addf %497, %500 : vector<10x16xf32>
    %c107 = arith.constant 107 : index
    %502 = memref.load %arg2[%c107] : memref<294xf32, #tpu.memory_space<smem>>
    %503 = vector.broadcast %502 : f32 to vector<10x16xf32>
    %504 = arith.mulf %461, %503 : vector<10x16xf32>
    %505 = arith.addf %501, %504 : vector<10x16xf32>
    %c108 = arith.constant 108 : index
    %506 = memref.load %arg2[%c108] : memref<294xf32, #tpu.memory_space<smem>>
    %507 = vector.broadcast %506 : f32 to vector<10x16xf32>
    %508 = arith.mulf %462, %507 : vector<10x16xf32>
    %509 = arith.addf %505, %508 : vector<10x16xf32>
    %c109 = arith.constant 109 : index
    %510 = memref.load %arg2[%c109] : memref<294xf32, #tpu.memory_space<smem>>
    %511 = vector.broadcast %510 : f32 to vector<10x16xf32>
    %512 = arith.mulf %463, %511 : vector<10x16xf32>
    %513 = arith.addf %509, %512 : vector<10x16xf32>
    %c110 = arith.constant 110 : index
    %514 = memref.load %arg2[%c110] : memref<294xf32, #tpu.memory_space<smem>>
    %515 = vector.broadcast %514 : f32 to vector<10x16xf32>
    %516 = arith.mulf %464, %515 : vector<10x16xf32>
    %517 = arith.addf %513, %516 : vector<10x16xf32>
    %c111 = arith.constant 111 : index
    %518 = memref.load %arg2[%c111] : memref<294xf32, #tpu.memory_space<smem>>
    %519 = vector.broadcast %518 : f32 to vector<10x16xf32>
    %520 = arith.mulf %465, %519 : vector<10x16xf32>
    %521 = arith.addf %517, %520 : vector<10x16xf32>
    %522 = vector.extract_strided_slice %521 {offsets = [1, 0], sizes = [4, 16], strides = [1, 1]} : vector<10x16xf32> to vector<4x16xf32>
    %523 = arith.addf %494, %522 : vector<4x16xf32>
    %c112 = arith.constant 112 : index
    %524 = memref.load %arg2[%c112] : memref<294xf32, #tpu.memory_space<smem>>
    %525 = vector.broadcast %524 : f32 to vector<10x16xf32>
    %526 = arith.mulf %459, %525 : vector<10x16xf32>
    %c113 = arith.constant 113 : index
    %527 = memref.load %arg2[%c113] : memref<294xf32, #tpu.memory_space<smem>>
    %528 = vector.broadcast %527 : f32 to vector<10x16xf32>
    %529 = arith.mulf %460, %528 : vector<10x16xf32>
    %530 = arith.addf %526, %529 : vector<10x16xf32>
    %c114 = arith.constant 114 : index
    %531 = memref.load %arg2[%c114] : memref<294xf32, #tpu.memory_space<smem>>
    %532 = vector.broadcast %531 : f32 to vector<10x16xf32>
    %533 = arith.mulf %461, %532 : vector<10x16xf32>
    %534 = arith.addf %530, %533 : vector<10x16xf32>
    %c115 = arith.constant 115 : index
    %535 = memref.load %arg2[%c115] : memref<294xf32, #tpu.memory_space<smem>>
    %536 = vector.broadcast %535 : f32 to vector<10x16xf32>
    %537 = arith.mulf %462, %536 : vector<10x16xf32>
    %538 = arith.addf %534, %537 : vector<10x16xf32>
    %c116 = arith.constant 116 : index
    %539 = memref.load %arg2[%c116] : memref<294xf32, #tpu.memory_space<smem>>
    %540 = vector.broadcast %539 : f32 to vector<10x16xf32>
    %541 = arith.mulf %463, %540 : vector<10x16xf32>
    %542 = arith.addf %538, %541 : vector<10x16xf32>
    %c117 = arith.constant 117 : index
    %543 = memref.load %arg2[%c117] : memref<294xf32, #tpu.memory_space<smem>>
    %544 = vector.broadcast %543 : f32 to vector<10x16xf32>
    %545 = arith.mulf %464, %544 : vector<10x16xf32>
    %546 = arith.addf %542, %545 : vector<10x16xf32>
    %c118 = arith.constant 118 : index
    %547 = memref.load %arg2[%c118] : memref<294xf32, #tpu.memory_space<smem>>
    %548 = vector.broadcast %547 : f32 to vector<10x16xf32>
    %549 = arith.mulf %465, %548 : vector<10x16xf32>
    %550 = arith.addf %546, %549 : vector<10x16xf32>
    %551 = vector.extract_strided_slice %550 {offsets = [2, 0], sizes = [4, 16], strides = [1, 1]} : vector<10x16xf32> to vector<4x16xf32>
    %552 = arith.addf %523, %551 : vector<4x16xf32>
    %c119 = arith.constant 119 : index
    %553 = memref.load %arg2[%c119] : memref<294xf32, #tpu.memory_space<smem>>
    %554 = vector.broadcast %553 : f32 to vector<10x16xf32>
    %555 = arith.mulf %459, %554 : vector<10x16xf32>
    %c120 = arith.constant 120 : index
    %556 = memref.load %arg2[%c120] : memref<294xf32, #tpu.memory_space<smem>>
    %557 = vector.broadcast %556 : f32 to vector<10x16xf32>
    %558 = arith.mulf %460, %557 : vector<10x16xf32>
    %559 = arith.addf %555, %558 : vector<10x16xf32>
    %c121 = arith.constant 121 : index
    %560 = memref.load %arg2[%c121] : memref<294xf32, #tpu.memory_space<smem>>
    %561 = vector.broadcast %560 : f32 to vector<10x16xf32>
    %562 = arith.mulf %461, %561 : vector<10x16xf32>
    %563 = arith.addf %559, %562 : vector<10x16xf32>
    %c122 = arith.constant 122 : index
    %564 = memref.load %arg2[%c122] : memref<294xf32, #tpu.memory_space<smem>>
    %565 = vector.broadcast %564 : f32 to vector<10x16xf32>
    %566 = arith.mulf %462, %565 : vector<10x16xf32>
    %567 = arith.addf %563, %566 : vector<10x16xf32>
    %c123 = arith.constant 123 : index
    %568 = memref.load %arg2[%c123] : memref<294xf32, #tpu.memory_space<smem>>
    %569 = vector.broadcast %568 : f32 to vector<10x16xf32>
    %570 = arith.mulf %463, %569 : vector<10x16xf32>
    %571 = arith.addf %567, %570 : vector<10x16xf32>
    %c124 = arith.constant 124 : index
    %572 = memref.load %arg2[%c124] : memref<294xf32, #tpu.memory_space<smem>>
    %573 = vector.broadcast %572 : f32 to vector<10x16xf32>
    %574 = arith.mulf %464, %573 : vector<10x16xf32>
    %575 = arith.addf %571, %574 : vector<10x16xf32>
    %c125 = arith.constant 125 : index
    %576 = memref.load %arg2[%c125] : memref<294xf32, #tpu.memory_space<smem>>
    %577 = vector.broadcast %576 : f32 to vector<10x16xf32>
    %578 = arith.mulf %465, %577 : vector<10x16xf32>
    %579 = arith.addf %575, %578 : vector<10x16xf32>
    %580 = vector.extract_strided_slice %579 {offsets = [3, 0], sizes = [4, 16], strides = [1, 1]} : vector<10x16xf32> to vector<4x16xf32>
    %581 = arith.addf %552, %580 : vector<4x16xf32>
    %c126 = arith.constant 126 : index
    %582 = memref.load %arg2[%c126] : memref<294xf32, #tpu.memory_space<smem>>
    %583 = vector.broadcast %582 : f32 to vector<10x16xf32>
    %584 = arith.mulf %459, %583 : vector<10x16xf32>
    %c127 = arith.constant 127 : index
    %585 = memref.load %arg2[%c127] : memref<294xf32, #tpu.memory_space<smem>>
    %586 = vector.broadcast %585 : f32 to vector<10x16xf32>
    %587 = arith.mulf %460, %586 : vector<10x16xf32>
    %588 = arith.addf %584, %587 : vector<10x16xf32>
    %c128 = arith.constant 128 : index
    %589 = memref.load %arg2[%c128] : memref<294xf32, #tpu.memory_space<smem>>
    %590 = vector.broadcast %589 : f32 to vector<10x16xf32>
    %591 = arith.mulf %461, %590 : vector<10x16xf32>
    %592 = arith.addf %588, %591 : vector<10x16xf32>
    %c129 = arith.constant 129 : index
    %593 = memref.load %arg2[%c129] : memref<294xf32, #tpu.memory_space<smem>>
    %594 = vector.broadcast %593 : f32 to vector<10x16xf32>
    %595 = arith.mulf %462, %594 : vector<10x16xf32>
    %596 = arith.addf %592, %595 : vector<10x16xf32>
    %c130 = arith.constant 130 : index
    %597 = memref.load %arg2[%c130] : memref<294xf32, #tpu.memory_space<smem>>
    %598 = vector.broadcast %597 : f32 to vector<10x16xf32>
    %599 = arith.mulf %463, %598 : vector<10x16xf32>
    %600 = arith.addf %596, %599 : vector<10x16xf32>
    %c131 = arith.constant 131 : index
    %601 = memref.load %arg2[%c131] : memref<294xf32, #tpu.memory_space<smem>>
    %602 = vector.broadcast %601 : f32 to vector<10x16xf32>
    %603 = arith.mulf %464, %602 : vector<10x16xf32>
    %604 = arith.addf %600, %603 : vector<10x16xf32>
    %c132 = arith.constant 132 : index
    %605 = memref.load %arg2[%c132] : memref<294xf32, #tpu.memory_space<smem>>
    %606 = vector.broadcast %605 : f32 to vector<10x16xf32>
    %607 = arith.mulf %465, %606 : vector<10x16xf32>
    %608 = arith.addf %604, %607 : vector<10x16xf32>
    %609 = vector.extract_strided_slice %608 {offsets = [4, 0], sizes = [4, 16], strides = [1, 1]} : vector<10x16xf32> to vector<4x16xf32>
    %610 = arith.addf %581, %609 : vector<4x16xf32>
    %c133 = arith.constant 133 : index
    %611 = memref.load %arg2[%c133] : memref<294xf32, #tpu.memory_space<smem>>
    %612 = vector.broadcast %611 : f32 to vector<10x16xf32>
    %613 = arith.mulf %459, %612 : vector<10x16xf32>
    %c134 = arith.constant 134 : index
    %614 = memref.load %arg2[%c134] : memref<294xf32, #tpu.memory_space<smem>>
    %615 = vector.broadcast %614 : f32 to vector<10x16xf32>
    %616 = arith.mulf %460, %615 : vector<10x16xf32>
    %617 = arith.addf %613, %616 : vector<10x16xf32>
    %c135 = arith.constant 135 : index
    %618 = memref.load %arg2[%c135] : memref<294xf32, #tpu.memory_space<smem>>
    %619 = vector.broadcast %618 : f32 to vector<10x16xf32>
    %620 = arith.mulf %461, %619 : vector<10x16xf32>
    %621 = arith.addf %617, %620 : vector<10x16xf32>
    %c136 = arith.constant 136 : index
    %622 = memref.load %arg2[%c136] : memref<294xf32, #tpu.memory_space<smem>>
    %623 = vector.broadcast %622 : f32 to vector<10x16xf32>
    %624 = arith.mulf %462, %623 : vector<10x16xf32>
    %625 = arith.addf %621, %624 : vector<10x16xf32>
    %c137 = arith.constant 137 : index
    %626 = memref.load %arg2[%c137] : memref<294xf32, #tpu.memory_space<smem>>
    %627 = vector.broadcast %626 : f32 to vector<10x16xf32>
    %628 = arith.mulf %463, %627 : vector<10x16xf32>
    %629 = arith.addf %625, %628 : vector<10x16xf32>
    %c138 = arith.constant 138 : index
    %630 = memref.load %arg2[%c138] : memref<294xf32, #tpu.memory_space<smem>>
    %631 = vector.broadcast %630 : f32 to vector<10x16xf32>
    %632 = arith.mulf %464, %631 : vector<10x16xf32>
    %633 = arith.addf %629, %632 : vector<10x16xf32>
    %c139 = arith.constant 139 : index
    %634 = memref.load %arg2[%c139] : memref<294xf32, #tpu.memory_space<smem>>
    %635 = vector.broadcast %634 : f32 to vector<10x16xf32>
    %636 = arith.mulf %465, %635 : vector<10x16xf32>
    %637 = arith.addf %633, %636 : vector<10x16xf32>
    %638 = vector.extract_strided_slice %637 {offsets = [5, 0], sizes = [4, 16], strides = [1, 1]} : vector<10x16xf32> to vector<4x16xf32>
    %639 = arith.addf %610, %638 : vector<4x16xf32>
    %c140 = arith.constant 140 : index
    %640 = memref.load %arg2[%c140] : memref<294xf32, #tpu.memory_space<smem>>
    %641 = vector.broadcast %640 : f32 to vector<10x16xf32>
    %642 = arith.mulf %459, %641 : vector<10x16xf32>
    %c141 = arith.constant 141 : index
    %643 = memref.load %arg2[%c141] : memref<294xf32, #tpu.memory_space<smem>>
    %644 = vector.broadcast %643 : f32 to vector<10x16xf32>
    %645 = arith.mulf %460, %644 : vector<10x16xf32>
    %646 = arith.addf %642, %645 : vector<10x16xf32>
    %c142 = arith.constant 142 : index
    %647 = memref.load %arg2[%c142] : memref<294xf32, #tpu.memory_space<smem>>
    %648 = vector.broadcast %647 : f32 to vector<10x16xf32>
    %649 = arith.mulf %461, %648 : vector<10x16xf32>
    %650 = arith.addf %646, %649 : vector<10x16xf32>
    %c143 = arith.constant 143 : index
    %651 = memref.load %arg2[%c143] : memref<294xf32, #tpu.memory_space<smem>>
    %652 = vector.broadcast %651 : f32 to vector<10x16xf32>
    %653 = arith.mulf %462, %652 : vector<10x16xf32>
    %654 = arith.addf %650, %653 : vector<10x16xf32>
    %c144 = arith.constant 144 : index
    %655 = memref.load %arg2[%c144] : memref<294xf32, #tpu.memory_space<smem>>
    %656 = vector.broadcast %655 : f32 to vector<10x16xf32>
    %657 = arith.mulf %463, %656 : vector<10x16xf32>
    %658 = arith.addf %654, %657 : vector<10x16xf32>
    %c145 = arith.constant 145 : index
    %659 = memref.load %arg2[%c145] : memref<294xf32, #tpu.memory_space<smem>>
    %660 = vector.broadcast %659 : f32 to vector<10x16xf32>
    %661 = arith.mulf %464, %660 : vector<10x16xf32>
    %662 = arith.addf %658, %661 : vector<10x16xf32>
    %c146 = arith.constant 146 : index
    %663 = memref.load %arg2[%c146] : memref<294xf32, #tpu.memory_space<smem>>
    %664 = vector.broadcast %663 : f32 to vector<10x16xf32>
    %665 = arith.mulf %465, %664 : vector<10x16xf32>
    %666 = arith.addf %662, %665 : vector<10x16xf32>
    %667 = vector.extract_strided_slice %666 {offsets = [6, 0], sizes = [4, 16], strides = [1, 1]} : vector<10x16xf32> to vector<4x16xf32>
    %668 = arith.addf %639, %667 : vector<4x16xf32>
    %669 = tpu.concatenate %456, %9, %456 in 1 : vector<4x3xf32>, vector<4x16xf32>, vector<4x3xf32> -> vector<4x22xf32>
    %670 = tpu.concatenate %455, %669, %455 in 0 : vector<3x22xf32>, vector<4x22xf32>, vector<3x22xf32> -> vector<10x22xf32>
    %671 = vector.extract_strided_slice %670 {offsets = [0, 0], sizes = [10, 16], strides = [1, 1]} : vector<10x22xf32> to vector<10x16xf32>
    %672 = vector.extract_strided_slice %670 {offsets = [0, 1], sizes = [10, 16], strides = [1, 1]} : vector<10x22xf32> to vector<10x16xf32>
    %673 = vector.extract_strided_slice %670 {offsets = [0, 2], sizes = [10, 16], strides = [1, 1]} : vector<10x22xf32> to vector<10x16xf32>
    %674 = vector.extract_strided_slice %670 {offsets = [0, 3], sizes = [10, 16], strides = [1, 1]} : vector<10x22xf32> to vector<10x16xf32>
    %675 = vector.extract_strided_slice %670 {offsets = [0, 4], sizes = [10, 16], strides = [1, 1]} : vector<10x22xf32> to vector<10x16xf32>
    %676 = vector.extract_strided_slice %670 {offsets = [0, 5], sizes = [10, 16], strides = [1, 1]} : vector<10x22xf32> to vector<10x16xf32>
    %677 = vector.extract_strided_slice %670 {offsets = [0, 6], sizes = [10, 16], strides = [1, 1]} : vector<10x22xf32> to vector<10x16xf32>
    %c147 = arith.constant 147 : index
    %678 = memref.load %arg2[%c147] : memref<294xf32, #tpu.memory_space<smem>>
    %679 = vector.broadcast %678 : f32 to vector<10x16xf32>
    %680 = arith.mulf %671, %679 : vector<10x16xf32>
    %c148 = arith.constant 148 : index
    %681 = memref.load %arg2[%c148] : memref<294xf32, #tpu.memory_space<smem>>
    %682 = vector.broadcast %681 : f32 to vector<10x16xf32>
    %683 = arith.mulf %672, %682 : vector<10x16xf32>
    %684 = arith.addf %680, %683 : vector<10x16xf32>
    %c149 = arith.constant 149 : index
    %685 = memref.load %arg2[%c149] : memref<294xf32, #tpu.memory_space<smem>>
    %686 = vector.broadcast %685 : f32 to vector<10x16xf32>
    %687 = arith.mulf %673, %686 : vector<10x16xf32>
    %688 = arith.addf %684, %687 : vector<10x16xf32>
    %c150 = arith.constant 150 : index
    %689 = memref.load %arg2[%c150] : memref<294xf32, #tpu.memory_space<smem>>
    %690 = vector.broadcast %689 : f32 to vector<10x16xf32>
    %691 = arith.mulf %674, %690 : vector<10x16xf32>
    %692 = arith.addf %688, %691 : vector<10x16xf32>
    %c151 = arith.constant 151 : index
    %693 = memref.load %arg2[%c151] : memref<294xf32, #tpu.memory_space<smem>>
    %694 = vector.broadcast %693 : f32 to vector<10x16xf32>
    %695 = arith.mulf %675, %694 : vector<10x16xf32>
    %696 = arith.addf %692, %695 : vector<10x16xf32>
    %c152 = arith.constant 152 : index
    %697 = memref.load %arg2[%c152] : memref<294xf32, #tpu.memory_space<smem>>
    %698 = vector.broadcast %697 : f32 to vector<10x16xf32>
    %699 = arith.mulf %676, %698 : vector<10x16xf32>
    %700 = arith.addf %696, %699 : vector<10x16xf32>
    %c153 = arith.constant 153 : index
    %701 = memref.load %arg2[%c153] : memref<294xf32, #tpu.memory_space<smem>>
    %702 = vector.broadcast %701 : f32 to vector<10x16xf32>
    %703 = arith.mulf %677, %702 : vector<10x16xf32>
    %704 = arith.addf %700, %703 : vector<10x16xf32>
    %705 = vector.extract_strided_slice %704 {offsets = [0, 0], sizes = [4, 16], strides = [1, 1]} : vector<10x16xf32> to vector<4x16xf32>
    %706 = arith.addf %668, %705 : vector<4x16xf32>
    %c154 = arith.constant 154 : index
    %707 = memref.load %arg2[%c154] : memref<294xf32, #tpu.memory_space<smem>>
    %708 = vector.broadcast %707 : f32 to vector<10x16xf32>
    %709 = arith.mulf %671, %708 : vector<10x16xf32>
    %c155 = arith.constant 155 : index
    %710 = memref.load %arg2[%c155] : memref<294xf32, #tpu.memory_space<smem>>
    %711 = vector.broadcast %710 : f32 to vector<10x16xf32>
    %712 = arith.mulf %672, %711 : vector<10x16xf32>
    %713 = arith.addf %709, %712 : vector<10x16xf32>
    %c156 = arith.constant 156 : index
    %714 = memref.load %arg2[%c156] : memref<294xf32, #tpu.memory_space<smem>>
    %715 = vector.broadcast %714 : f32 to vector<10x16xf32>
    %716 = arith.mulf %673, %715 : vector<10x16xf32>
    %717 = arith.addf %713, %716 : vector<10x16xf32>
    %c157 = arith.constant 157 : index
    %718 = memref.load %arg2[%c157] : memref<294xf32, #tpu.memory_space<smem>>
    %719 = vector.broadcast %718 : f32 to vector<10x16xf32>
    %720 = arith.mulf %674, %719 : vector<10x16xf32>
    %721 = arith.addf %717, %720 : vector<10x16xf32>
    %c158 = arith.constant 158 : index
    %722 = memref.load %arg2[%c158] : memref<294xf32, #tpu.memory_space<smem>>
    %723 = vector.broadcast %722 : f32 to vector<10x16xf32>
    %724 = arith.mulf %675, %723 : vector<10x16xf32>
    %725 = arith.addf %721, %724 : vector<10x16xf32>
    %c159 = arith.constant 159 : index
    %726 = memref.load %arg2[%c159] : memref<294xf32, #tpu.memory_space<smem>>
    %727 = vector.broadcast %726 : f32 to vector<10x16xf32>
    %728 = arith.mulf %676, %727 : vector<10x16xf32>
    %729 = arith.addf %725, %728 : vector<10x16xf32>
    %c160 = arith.constant 160 : index
    %730 = memref.load %arg2[%c160] : memref<294xf32, #tpu.memory_space<smem>>
    %731 = vector.broadcast %730 : f32 to vector<10x16xf32>
    %732 = arith.mulf %677, %731 : vector<10x16xf32>
    %733 = arith.addf %729, %732 : vector<10x16xf32>
    %734 = vector.extract_strided_slice %733 {offsets = [1, 0], sizes = [4, 16], strides = [1, 1]} : vector<10x16xf32> to vector<4x16xf32>
    %735 = arith.addf %706, %734 : vector<4x16xf32>
    %c161 = arith.constant 161 : index
    %736 = memref.load %arg2[%c161] : memref<294xf32, #tpu.memory_space<smem>>
    %737 = vector.broadcast %736 : f32 to vector<10x16xf32>
    %738 = arith.mulf %671, %737 : vector<10x16xf32>
    %c162 = arith.constant 162 : index
    %739 = memref.load %arg2[%c162] : memref<294xf32, #tpu.memory_space<smem>>
    %740 = vector.broadcast %739 : f32 to vector<10x16xf32>
    %741 = arith.mulf %672, %740 : vector<10x16xf32>
    %742 = arith.addf %738, %741 : vector<10x16xf32>
    %c163 = arith.constant 163 : index
    %743 = memref.load %arg2[%c163] : memref<294xf32, #tpu.memory_space<smem>>
    %744 = vector.broadcast %743 : f32 to vector<10x16xf32>
    %745 = arith.mulf %673, %744 : vector<10x16xf32>
    %746 = arith.addf %742, %745 : vector<10x16xf32>
    %c164 = arith.constant 164 : index
    %747 = memref.load %arg2[%c164] : memref<294xf32, #tpu.memory_space<smem>>
    %748 = vector.broadcast %747 : f32 to vector<10x16xf32>
    %749 = arith.mulf %674, %748 : vector<10x16xf32>
    %750 = arith.addf %746, %749 : vector<10x16xf32>
    %c165 = arith.constant 165 : index
    %751 = memref.load %arg2[%c165] : memref<294xf32, #tpu.memory_space<smem>>
    %752 = vector.broadcast %751 : f32 to vector<10x16xf32>
    %753 = arith.mulf %675, %752 : vector<10x16xf32>
    %754 = arith.addf %750, %753 : vector<10x16xf32>
    %c166 = arith.constant 166 : index
    %755 = memref.load %arg2[%c166] : memref<294xf32, #tpu.memory_space<smem>>
    %756 = vector.broadcast %755 : f32 to vector<10x16xf32>
    %757 = arith.mulf %676, %756 : vector<10x16xf32>
    %758 = arith.addf %754, %757 : vector<10x16xf32>
    %c167 = arith.constant 167 : index
    %759 = memref.load %arg2[%c167] : memref<294xf32, #tpu.memory_space<smem>>
    %760 = vector.broadcast %759 : f32 to vector<10x16xf32>
    %761 = arith.mulf %677, %760 : vector<10x16xf32>
    %762 = arith.addf %758, %761 : vector<10x16xf32>
    %763 = vector.extract_strided_slice %762 {offsets = [2, 0], sizes = [4, 16], strides = [1, 1]} : vector<10x16xf32> to vector<4x16xf32>
    %764 = arith.addf %735, %763 : vector<4x16xf32>
    %c168 = arith.constant 168 : index
    %765 = memref.load %arg2[%c168] : memref<294xf32, #tpu.memory_space<smem>>
    %766 = vector.broadcast %765 : f32 to vector<10x16xf32>
    %767 = arith.mulf %671, %766 : vector<10x16xf32>
    %c169 = arith.constant 169 : index
    %768 = memref.load %arg2[%c169] : memref<294xf32, #tpu.memory_space<smem>>
    %769 = vector.broadcast %768 : f32 to vector<10x16xf32>
    %770 = arith.mulf %672, %769 : vector<10x16xf32>
    %771 = arith.addf %767, %770 : vector<10x16xf32>
    %c170 = arith.constant 170 : index
    %772 = memref.load %arg2[%c170] : memref<294xf32, #tpu.memory_space<smem>>
    %773 = vector.broadcast %772 : f32 to vector<10x16xf32>
    %774 = arith.mulf %673, %773 : vector<10x16xf32>
    %775 = arith.addf %771, %774 : vector<10x16xf32>
    %c171 = arith.constant 171 : index
    %776 = memref.load %arg2[%c171] : memref<294xf32, #tpu.memory_space<smem>>
    %777 = vector.broadcast %776 : f32 to vector<10x16xf32>
    %778 = arith.mulf %674, %777 : vector<10x16xf32>
    %779 = arith.addf %775, %778 : vector<10x16xf32>
    %c172 = arith.constant 172 : index
    %780 = memref.load %arg2[%c172] : memref<294xf32, #tpu.memory_space<smem>>
    %781 = vector.broadcast %780 : f32 to vector<10x16xf32>
    %782 = arith.mulf %675, %781 : vector<10x16xf32>
    %783 = arith.addf %779, %782 : vector<10x16xf32>
    %c173 = arith.constant 173 : index
    %784 = memref.load %arg2[%c173] : memref<294xf32, #tpu.memory_space<smem>>
    %785 = vector.broadcast %784 : f32 to vector<10x16xf32>
    %786 = arith.mulf %676, %785 : vector<10x16xf32>
    %787 = arith.addf %783, %786 : vector<10x16xf32>
    %c174 = arith.constant 174 : index
    %788 = memref.load %arg2[%c174] : memref<294xf32, #tpu.memory_space<smem>>
    %789 = vector.broadcast %788 : f32 to vector<10x16xf32>
    %790 = arith.mulf %677, %789 : vector<10x16xf32>
    %791 = arith.addf %787, %790 : vector<10x16xf32>
    %792 = vector.extract_strided_slice %791 {offsets = [3, 0], sizes = [4, 16], strides = [1, 1]} : vector<10x16xf32> to vector<4x16xf32>
    %793 = arith.addf %764, %792 : vector<4x16xf32>
    %c175 = arith.constant 175 : index
    %794 = memref.load %arg2[%c175] : memref<294xf32, #tpu.memory_space<smem>>
    %795 = vector.broadcast %794 : f32 to vector<10x16xf32>
    %796 = arith.mulf %671, %795 : vector<10x16xf32>
    %c176 = arith.constant 176 : index
    %797 = memref.load %arg2[%c176] : memref<294xf32, #tpu.memory_space<smem>>
    %798 = vector.broadcast %797 : f32 to vector<10x16xf32>
    %799 = arith.mulf %672, %798 : vector<10x16xf32>
    %800 = arith.addf %796, %799 : vector<10x16xf32>
    %c177 = arith.constant 177 : index
    %801 = memref.load %arg2[%c177] : memref<294xf32, #tpu.memory_space<smem>>
    %802 = vector.broadcast %801 : f32 to vector<10x16xf32>
    %803 = arith.mulf %673, %802 : vector<10x16xf32>
    %804 = arith.addf %800, %803 : vector<10x16xf32>
    %c178 = arith.constant 178 : index
    %805 = memref.load %arg2[%c178] : memref<294xf32, #tpu.memory_space<smem>>
    %806 = vector.broadcast %805 : f32 to vector<10x16xf32>
    %807 = arith.mulf %674, %806 : vector<10x16xf32>
    %808 = arith.addf %804, %807 : vector<10x16xf32>
    %c179 = arith.constant 179 : index
    %809 = memref.load %arg2[%c179] : memref<294xf32, #tpu.memory_space<smem>>
    %810 = vector.broadcast %809 : f32 to vector<10x16xf32>
    %811 = arith.mulf %675, %810 : vector<10x16xf32>
    %812 = arith.addf %808, %811 : vector<10x16xf32>
    %c180 = arith.constant 180 : index
    %813 = memref.load %arg2[%c180] : memref<294xf32, #tpu.memory_space<smem>>
    %814 = vector.broadcast %813 : f32 to vector<10x16xf32>
    %815 = arith.mulf %676, %814 : vector<10x16xf32>
    %816 = arith.addf %812, %815 : vector<10x16xf32>
    %c181 = arith.constant 181 : index
    %817 = memref.load %arg2[%c181] : memref<294xf32, #tpu.memory_space<smem>>
    %818 = vector.broadcast %817 : f32 to vector<10x16xf32>
    %819 = arith.mulf %677, %818 : vector<10x16xf32>
    %820 = arith.addf %816, %819 : vector<10x16xf32>
    %821 = vector.extract_strided_slice %820 {offsets = [4, 0], sizes = [4, 16], strides = [1, 1]} : vector<10x16xf32> to vector<4x16xf32>
    %822 = arith.addf %793, %821 : vector<4x16xf32>
    %c182 = arith.constant 182 : index
    %823 = memref.load %arg2[%c182] : memref<294xf32, #tpu.memory_space<smem>>
    %824 = vector.broadcast %823 : f32 to vector<10x16xf32>
    %825 = arith.mulf %671, %824 : vector<10x16xf32>
    %c183 = arith.constant 183 : index
    %826 = memref.load %arg2[%c183] : memref<294xf32, #tpu.memory_space<smem>>
    %827 = vector.broadcast %826 : f32 to vector<10x16xf32>
    %828 = arith.mulf %672, %827 : vector<10x16xf32>
    %829 = arith.addf %825, %828 : vector<10x16xf32>
    %c184 = arith.constant 184 : index
    %830 = memref.load %arg2[%c184] : memref<294xf32, #tpu.memory_space<smem>>
    %831 = vector.broadcast %830 : f32 to vector<10x16xf32>
    %832 = arith.mulf %673, %831 : vector<10x16xf32>
    %833 = arith.addf %829, %832 : vector<10x16xf32>
    %c185 = arith.constant 185 : index
    %834 = memref.load %arg2[%c185] : memref<294xf32, #tpu.memory_space<smem>>
    %835 = vector.broadcast %834 : f32 to vector<10x16xf32>
    %836 = arith.mulf %674, %835 : vector<10x16xf32>
    %837 = arith.addf %833, %836 : vector<10x16xf32>
    %c186 = arith.constant 186 : index
    %838 = memref.load %arg2[%c186] : memref<294xf32, #tpu.memory_space<smem>>
    %839 = vector.broadcast %838 : f32 to vector<10x16xf32>
    %840 = arith.mulf %675, %839 : vector<10x16xf32>
    %841 = arith.addf %837, %840 : vector<10x16xf32>
    %c187 = arith.constant 187 : index
    %842 = memref.load %arg2[%c187] : memref<294xf32, #tpu.memory_space<smem>>
    %843 = vector.broadcast %842 : f32 to vector<10x16xf32>
    %844 = arith.mulf %676, %843 : vector<10x16xf32>
    %845 = arith.addf %841, %844 : vector<10x16xf32>
    %c188 = arith.constant 188 : index
    %846 = memref.load %arg2[%c188] : memref<294xf32, #tpu.memory_space<smem>>
    %847 = vector.broadcast %846 : f32 to vector<10x16xf32>
    %848 = arith.mulf %677, %847 : vector<10x16xf32>
    %849 = arith.addf %845, %848 : vector<10x16xf32>
    %850 = vector.extract_strided_slice %849 {offsets = [5, 0], sizes = [4, 16], strides = [1, 1]} : vector<10x16xf32> to vector<4x16xf32>
    %851 = arith.addf %822, %850 : vector<4x16xf32>
    %c189 = arith.constant 189 : index
    %852 = memref.load %arg2[%c189] : memref<294xf32, #tpu.memory_space<smem>>
    %853 = vector.broadcast %852 : f32 to vector<10x16xf32>
    %854 = arith.mulf %671, %853 : vector<10x16xf32>
    %c190 = arith.constant 190 : index
    %855 = memref.load %arg2[%c190] : memref<294xf32, #tpu.memory_space<smem>>
    %856 = vector.broadcast %855 : f32 to vector<10x16xf32>
    %857 = arith.mulf %672, %856 : vector<10x16xf32>
    %858 = arith.addf %854, %857 : vector<10x16xf32>
    %c191 = arith.constant 191 : index
    %859 = memref.load %arg2[%c191] : memref<294xf32, #tpu.memory_space<smem>>
    %860 = vector.broadcast %859 : f32 to vector<10x16xf32>
    %861 = arith.mulf %673, %860 : vector<10x16xf32>
    %862 = arith.addf %858, %861 : vector<10x16xf32>
    %c192 = arith.constant 192 : index
    %863 = memref.load %arg2[%c192] : memref<294xf32, #tpu.memory_space<smem>>
    %864 = vector.broadcast %863 : f32 to vector<10x16xf32>
    %865 = arith.mulf %674, %864 : vector<10x16xf32>
    %866 = arith.addf %862, %865 : vector<10x16xf32>
    %c193 = arith.constant 193 : index
    %867 = memref.load %arg2[%c193] : memref<294xf32, #tpu.memory_space<smem>>
    %868 = vector.broadcast %867 : f32 to vector<10x16xf32>
    %869 = arith.mulf %675, %868 : vector<10x16xf32>
    %870 = arith.addf %866, %869 : vector<10x16xf32>
    %c194 = arith.constant 194 : index
    %871 = memref.load %arg2[%c194] : memref<294xf32, #tpu.memory_space<smem>>
    %872 = vector.broadcast %871 : f32 to vector<10x16xf32>
    %873 = arith.mulf %676, %872 : vector<10x16xf32>
    %874 = arith.addf %870, %873 : vector<10x16xf32>
    %c195 = arith.constant 195 : index
    %875 = memref.load %arg2[%c195] : memref<294xf32, #tpu.memory_space<smem>>
    %876 = vector.broadcast %875 : f32 to vector<10x16xf32>
    %877 = arith.mulf %677, %876 : vector<10x16xf32>
    %878 = arith.addf %874, %877 : vector<10x16xf32>
    %879 = vector.extract_strided_slice %878 {offsets = [6, 0], sizes = [4, 16], strides = [1, 1]} : vector<10x16xf32> to vector<4x16xf32>
    %880 = arith.addf %851, %879 : vector<4x16xf32>
    %881 = arith.negf %880 : vector<4x16xf32>
    %882 = math.exp %881 : vector<4x16xf32>
    %cst_22 = arith.constant 1.000000e+00 : f32
    %883 = vector.broadcast %cst_22 : f32 to vector<4x16xf32>
    %884 = arith.addf %883, %882 : vector<4x16xf32>
    %885 = arith.divf %883, %884 : vector<4x16xf32>
    %cst_23 = arith.constant 0.333333343 : f32
    %886 = vector.broadcast %cst_23 : f32 to vector<4x16xf32>
    %887 = arith.mulf %885, %886 : vector<4x16xf32>
    %c2_24 = arith.constant 2 : index
    %888 = memref.load %arg3[%c2_24] : memref<3xf32, #tpu.memory_space<smem>>
    %cst_25 = arith.constant 0.000000e+00 : f32
    %889 = vector.broadcast %cst_25 : f32 to vector<4x16xf32>
    %890 = vector.broadcast %888 : f32 to vector<4x16xf32>
    %891 = arith.addf %889, %890 : vector<4x16xf32>
    %cst_26 = arith.constant 0.000000e+00 : f32
    %892 = vector.broadcast %cst_26 : f32 to vector<3x22xf32>
    %cst_27 = arith.constant 0.000000e+00 : f32
    %893 = vector.broadcast %cst_27 : f32 to vector<4x3xf32>
    %894 = tpu.concatenate %893, %10, %893 in 1 : vector<4x3xf32>, vector<4x16xf32>, vector<4x3xf32> -> vector<4x22xf32>
    %895 = tpu.concatenate %892, %894, %892 in 0 : vector<3x22xf32>, vector<4x22xf32>, vector<3x22xf32> -> vector<10x22xf32>
    %896 = vector.extract_strided_slice %895 {offsets = [0, 0], sizes = [10, 16], strides = [1, 1]} : vector<10x22xf32> to vector<10x16xf32>
    %897 = vector.extract_strided_slice %895 {offsets = [0, 1], sizes = [10, 16], strides = [1, 1]} : vector<10x22xf32> to vector<10x16xf32>
    %898 = vector.extract_strided_slice %895 {offsets = [0, 2], sizes = [10, 16], strides = [1, 1]} : vector<10x22xf32> to vector<10x16xf32>
    %899 = vector.extract_strided_slice %895 {offsets = [0, 3], sizes = [10, 16], strides = [1, 1]} : vector<10x22xf32> to vector<10x16xf32>
    %900 = vector.extract_strided_slice %895 {offsets = [0, 4], sizes = [10, 16], strides = [1, 1]} : vector<10x22xf32> to vector<10x16xf32>
    %901 = vector.extract_strided_slice %895 {offsets = [0, 5], sizes = [10, 16], strides = [1, 1]} : vector<10x22xf32> to vector<10x16xf32>
    %902 = vector.extract_strided_slice %895 {offsets = [0, 6], sizes = [10, 16], strides = [1, 1]} : vector<10x22xf32> to vector<10x16xf32>
    %c196 = arith.constant 196 : index
    %903 = memref.load %arg2[%c196] : memref<294xf32, #tpu.memory_space<smem>>
    %904 = vector.broadcast %903 : f32 to vector<10x16xf32>
    %905 = arith.mulf %896, %904 : vector<10x16xf32>
    %c197 = arith.constant 197 : index
    %906 = memref.load %arg2[%c197] : memref<294xf32, #tpu.memory_space<smem>>
    %907 = vector.broadcast %906 : f32 to vector<10x16xf32>
    %908 = arith.mulf %897, %907 : vector<10x16xf32>
    %909 = arith.addf %905, %908 : vector<10x16xf32>
    %c198 = arith.constant 198 : index
    %910 = memref.load %arg2[%c198] : memref<294xf32, #tpu.memory_space<smem>>
    %911 = vector.broadcast %910 : f32 to vector<10x16xf32>
    %912 = arith.mulf %898, %911 : vector<10x16xf32>
    %913 = arith.addf %909, %912 : vector<10x16xf32>
    %c199 = arith.constant 199 : index
    %914 = memref.load %arg2[%c199] : memref<294xf32, #tpu.memory_space<smem>>
    %915 = vector.broadcast %914 : f32 to vector<10x16xf32>
    %916 = arith.mulf %899, %915 : vector<10x16xf32>
    %917 = arith.addf %913, %916 : vector<10x16xf32>
    %c200 = arith.constant 200 : index
    %918 = memref.load %arg2[%c200] : memref<294xf32, #tpu.memory_space<smem>>
    %919 = vector.broadcast %918 : f32 to vector<10x16xf32>
    %920 = arith.mulf %900, %919 : vector<10x16xf32>
    %921 = arith.addf %917, %920 : vector<10x16xf32>
    %c201 = arith.constant 201 : index
    %922 = memref.load %arg2[%c201] : memref<294xf32, #tpu.memory_space<smem>>
    %923 = vector.broadcast %922 : f32 to vector<10x16xf32>
    %924 = arith.mulf %901, %923 : vector<10x16xf32>
    %925 = arith.addf %921, %924 : vector<10x16xf32>
    %c202 = arith.constant 202 : index
    %926 = memref.load %arg2[%c202] : memref<294xf32, #tpu.memory_space<smem>>
    %927 = vector.broadcast %926 : f32 to vector<10x16xf32>
    %928 = arith.mulf %902, %927 : vector<10x16xf32>
    %929 = arith.addf %925, %928 : vector<10x16xf32>
    %930 = vector.extract_strided_slice %929 {offsets = [0, 0], sizes = [4, 16], strides = [1, 1]} : vector<10x16xf32> to vector<4x16xf32>
    %931 = arith.addf %891, %930 : vector<4x16xf32>
    %c203 = arith.constant 203 : index
    %932 = memref.load %arg2[%c203] : memref<294xf32, #tpu.memory_space<smem>>
    %933 = vector.broadcast %932 : f32 to vector<10x16xf32>
    %934 = arith.mulf %896, %933 : vector<10x16xf32>
    %c204 = arith.constant 204 : index
    %935 = memref.load %arg2[%c204] : memref<294xf32, #tpu.memory_space<smem>>
    %936 = vector.broadcast %935 : f32 to vector<10x16xf32>
    %937 = arith.mulf %897, %936 : vector<10x16xf32>
    %938 = arith.addf %934, %937 : vector<10x16xf32>
    %c205 = arith.constant 205 : index
    %939 = memref.load %arg2[%c205] : memref<294xf32, #tpu.memory_space<smem>>
    %940 = vector.broadcast %939 : f32 to vector<10x16xf32>
    %941 = arith.mulf %898, %940 : vector<10x16xf32>
    %942 = arith.addf %938, %941 : vector<10x16xf32>
    %c206 = arith.constant 206 : index
    %943 = memref.load %arg2[%c206] : memref<294xf32, #tpu.memory_space<smem>>
    %944 = vector.broadcast %943 : f32 to vector<10x16xf32>
    %945 = arith.mulf %899, %944 : vector<10x16xf32>
    %946 = arith.addf %942, %945 : vector<10x16xf32>
    %c207 = arith.constant 207 : index
    %947 = memref.load %arg2[%c207] : memref<294xf32, #tpu.memory_space<smem>>
    %948 = vector.broadcast %947 : f32 to vector<10x16xf32>
    %949 = arith.mulf %900, %948 : vector<10x16xf32>
    %950 = arith.addf %946, %949 : vector<10x16xf32>
    %c208 = arith.constant 208 : index
    %951 = memref.load %arg2[%c208] : memref<294xf32, #tpu.memory_space<smem>>
    %952 = vector.broadcast %951 : f32 to vector<10x16xf32>
    %953 = arith.mulf %901, %952 : vector<10x16xf32>
    %954 = arith.addf %950, %953 : vector<10x16xf32>
    %c209 = arith.constant 209 : index
    %955 = memref.load %arg2[%c209] : memref<294xf32, #tpu.memory_space<smem>>
    %956 = vector.broadcast %955 : f32 to vector<10x16xf32>
    %957 = arith.mulf %902, %956 : vector<10x16xf32>
    %958 = arith.addf %954, %957 : vector<10x16xf32>
    %959 = vector.extract_strided_slice %958 {offsets = [1, 0], sizes = [4, 16], strides = [1, 1]} : vector<10x16xf32> to vector<4x16xf32>
    %960 = arith.addf %931, %959 : vector<4x16xf32>
    %c210 = arith.constant 210 : index
    %961 = memref.load %arg2[%c210] : memref<294xf32, #tpu.memory_space<smem>>
    %962 = vector.broadcast %961 : f32 to vector<10x16xf32>
    %963 = arith.mulf %896, %962 : vector<10x16xf32>
    %c211 = arith.constant 211 : index
    %964 = memref.load %arg2[%c211] : memref<294xf32, #tpu.memory_space<smem>>
    %965 = vector.broadcast %964 : f32 to vector<10x16xf32>
    %966 = arith.mulf %897, %965 : vector<10x16xf32>
    %967 = arith.addf %963, %966 : vector<10x16xf32>
    %c212 = arith.constant 212 : index
    %968 = memref.load %arg2[%c212] : memref<294xf32, #tpu.memory_space<smem>>
    %969 = vector.broadcast %968 : f32 to vector<10x16xf32>
    %970 = arith.mulf %898, %969 : vector<10x16xf32>
    %971 = arith.addf %967, %970 : vector<10x16xf32>
    %c213 = arith.constant 213 : index
    %972 = memref.load %arg2[%c213] : memref<294xf32, #tpu.memory_space<smem>>
    %973 = vector.broadcast %972 : f32 to vector<10x16xf32>
    %974 = arith.mulf %899, %973 : vector<10x16xf32>
    %975 = arith.addf %971, %974 : vector<10x16xf32>
    %c214 = arith.constant 214 : index
    %976 = memref.load %arg2[%c214] : memref<294xf32, #tpu.memory_space<smem>>
    %977 = vector.broadcast %976 : f32 to vector<10x16xf32>
    %978 = arith.mulf %900, %977 : vector<10x16xf32>
    %979 = arith.addf %975, %978 : vector<10x16xf32>
    %c215 = arith.constant 215 : index
    %980 = memref.load %arg2[%c215] : memref<294xf32, #tpu.memory_space<smem>>
    %981 = vector.broadcast %980 : f32 to vector<10x16xf32>
    %982 = arith.mulf %901, %981 : vector<10x16xf32>
    %983 = arith.addf %979, %982 : vector<10x16xf32>
    %c216 = arith.constant 216 : index
    %984 = memref.load %arg2[%c216] : memref<294xf32, #tpu.memory_space<smem>>
    %985 = vector.broadcast %984 : f32 to vector<10x16xf32>
    %986 = arith.mulf %902, %985 : vector<10x16xf32>
    %987 = arith.addf %983, %986 : vector<10x16xf32>
    %988 = vector.extract_strided_slice %987 {offsets = [2, 0], sizes = [4, 16], strides = [1, 1]} : vector<10x16xf32> to vector<4x16xf32>
    %989 = arith.addf %960, %988 : vector<4x16xf32>
    %c217 = arith.constant 217 : index
    %990 = memref.load %arg2[%c217] : memref<294xf32, #tpu.memory_space<smem>>
    %991 = vector.broadcast %990 : f32 to vector<10x16xf32>
    %992 = arith.mulf %896, %991 : vector<10x16xf32>
    %c218 = arith.constant 218 : index
    %993 = memref.load %arg2[%c218] : memref<294xf32, #tpu.memory_space<smem>>
    %994 = vector.broadcast %993 : f32 to vector<10x16xf32>
    %995 = arith.mulf %897, %994 : vector<10x16xf32>
    %996 = arith.addf %992, %995 : vector<10x16xf32>
    %c219 = arith.constant 219 : index
    %997 = memref.load %arg2[%c219] : memref<294xf32, #tpu.memory_space<smem>>
    %998 = vector.broadcast %997 : f32 to vector<10x16xf32>
    %999 = arith.mulf %898, %998 : vector<10x16xf32>
    %1000 = arith.addf %996, %999 : vector<10x16xf32>
    %c220 = arith.constant 220 : index
    %1001 = memref.load %arg2[%c220] : memref<294xf32, #tpu.memory_space<smem>>
    %1002 = vector.broadcast %1001 : f32 to vector<10x16xf32>
    %1003 = arith.mulf %899, %1002 : vector<10x16xf32>
    %1004 = arith.addf %1000, %1003 : vector<10x16xf32>
    %c221 = arith.constant 221 : index
    %1005 = memref.load %arg2[%c221] : memref<294xf32, #tpu.memory_space<smem>>
    %1006 = vector.broadcast %1005 : f32 to vector<10x16xf32>
    %1007 = arith.mulf %900, %1006 : vector<10x16xf32>
    %1008 = arith.addf %1004, %1007 : vector<10x16xf32>
    %c222 = arith.constant 222 : index
    %1009 = memref.load %arg2[%c222] : memref<294xf32, #tpu.memory_space<smem>>
    %1010 = vector.broadcast %1009 : f32 to vector<10x16xf32>
    %1011 = arith.mulf %901, %1010 : vector<10x16xf32>
    %1012 = arith.addf %1008, %1011 : vector<10x16xf32>
    %c223 = arith.constant 223 : index
    %1013 = memref.load %arg2[%c223] : memref<294xf32, #tpu.memory_space<smem>>
    %1014 = vector.broadcast %1013 : f32 to vector<10x16xf32>
    %1015 = arith.mulf %902, %1014 : vector<10x16xf32>
    %1016 = arith.addf %1012, %1015 : vector<10x16xf32>
    %1017 = vector.extract_strided_slice %1016 {offsets = [3, 0], sizes = [4, 16], strides = [1, 1]} : vector<10x16xf32> to vector<4x16xf32>
    %1018 = arith.addf %989, %1017 : vector<4x16xf32>
    %c224 = arith.constant 224 : index
    %1019 = memref.load %arg2[%c224] : memref<294xf32, #tpu.memory_space<smem>>
    %1020 = vector.broadcast %1019 : f32 to vector<10x16xf32>
    %1021 = arith.mulf %896, %1020 : vector<10x16xf32>
    %c225 = arith.constant 225 : index
    %1022 = memref.load %arg2[%c225] : memref<294xf32, #tpu.memory_space<smem>>
    %1023 = vector.broadcast %1022 : f32 to vector<10x16xf32>
    %1024 = arith.mulf %897, %1023 : vector<10x16xf32>
    %1025 = arith.addf %1021, %1024 : vector<10x16xf32>
    %c226 = arith.constant 226 : index
    %1026 = memref.load %arg2[%c226] : memref<294xf32, #tpu.memory_space<smem>>
    %1027 = vector.broadcast %1026 : f32 to vector<10x16xf32>
    %1028 = arith.mulf %898, %1027 : vector<10x16xf32>
    %1029 = arith.addf %1025, %1028 : vector<10x16xf32>
    %c227 = arith.constant 227 : index
    %1030 = memref.load %arg2[%c227] : memref<294xf32, #tpu.memory_space<smem>>
    %1031 = vector.broadcast %1030 : f32 to vector<10x16xf32>
    %1032 = arith.mulf %899, %1031 : vector<10x16xf32>
    %1033 = arith.addf %1029, %1032 : vector<10x16xf32>
    %c228 = arith.constant 228 : index
    %1034 = memref.load %arg2[%c228] : memref<294xf32, #tpu.memory_space<smem>>
    %1035 = vector.broadcast %1034 : f32 to vector<10x16xf32>
    %1036 = arith.mulf %900, %1035 : vector<10x16xf32>
    %1037 = arith.addf %1033, %1036 : vector<10x16xf32>
    %c229 = arith.constant 229 : index
    %1038 = memref.load %arg2[%c229] : memref<294xf32, #tpu.memory_space<smem>>
    %1039 = vector.broadcast %1038 : f32 to vector<10x16xf32>
    %1040 = arith.mulf %901, %1039 : vector<10x16xf32>
    %1041 = arith.addf %1037, %1040 : vector<10x16xf32>
    %c230 = arith.constant 230 : index
    %1042 = memref.load %arg2[%c230] : memref<294xf32, #tpu.memory_space<smem>>
    %1043 = vector.broadcast %1042 : f32 to vector<10x16xf32>
    %1044 = arith.mulf %902, %1043 : vector<10x16xf32>
    %1045 = arith.addf %1041, %1044 : vector<10x16xf32>
    %1046 = vector.extract_strided_slice %1045 {offsets = [4, 0], sizes = [4, 16], strides = [1, 1]} : vector<10x16xf32> to vector<4x16xf32>
    %1047 = arith.addf %1018, %1046 : vector<4x16xf32>
    %c231 = arith.constant 231 : index
    %1048 = memref.load %arg2[%c231] : memref<294xf32, #tpu.memory_space<smem>>
    %1049 = vector.broadcast %1048 : f32 to vector<10x16xf32>
    %1050 = arith.mulf %896, %1049 : vector<10x16xf32>
    %c232 = arith.constant 232 : index
    %1051 = memref.load %arg2[%c232] : memref<294xf32, #tpu.memory_space<smem>>
    %1052 = vector.broadcast %1051 : f32 to vector<10x16xf32>
    %1053 = arith.mulf %897, %1052 : vector<10x16xf32>
    %1054 = arith.addf %1050, %1053 : vector<10x16xf32>
    %c233 = arith.constant 233 : index
    %1055 = memref.load %arg2[%c233] : memref<294xf32, #tpu.memory_space<smem>>
    %1056 = vector.broadcast %1055 : f32 to vector<10x16xf32>
    %1057 = arith.mulf %898, %1056 : vector<10x16xf32>
    %1058 = arith.addf %1054, %1057 : vector<10x16xf32>
    %c234 = arith.constant 234 : index
    %1059 = memref.load %arg2[%c234] : memref<294xf32, #tpu.memory_space<smem>>
    %1060 = vector.broadcast %1059 : f32 to vector<10x16xf32>
    %1061 = arith.mulf %899, %1060 : vector<10x16xf32>
    %1062 = arith.addf %1058, %1061 : vector<10x16xf32>
    %c235 = arith.constant 235 : index
    %1063 = memref.load %arg2[%c235] : memref<294xf32, #tpu.memory_space<smem>>
    %1064 = vector.broadcast %1063 : f32 to vector<10x16xf32>
    %1065 = arith.mulf %900, %1064 : vector<10x16xf32>
    %1066 = arith.addf %1062, %1065 : vector<10x16xf32>
    %c236 = arith.constant 236 : index
    %1067 = memref.load %arg2[%c236] : memref<294xf32, #tpu.memory_space<smem>>
    %1068 = vector.broadcast %1067 : f32 to vector<10x16xf32>
    %1069 = arith.mulf %901, %1068 : vector<10x16xf32>
    %1070 = arith.addf %1066, %1069 : vector<10x16xf32>
    %c237 = arith.constant 237 : index
    %1071 = memref.load %arg2[%c237] : memref<294xf32, #tpu.memory_space<smem>>
    %1072 = vector.broadcast %1071 : f32 to vector<10x16xf32>
    %1073 = arith.mulf %902, %1072 : vector<10x16xf32>
    %1074 = arith.addf %1070, %1073 : vector<10x16xf32>
    %1075 = vector.extract_strided_slice %1074 {offsets = [5, 0], sizes = [4, 16], strides = [1, 1]} : vector<10x16xf32> to vector<4x16xf32>
    %1076 = arith.addf %1047, %1075 : vector<4x16xf32>
    %c238 = arith.constant 238 : index
    %1077 = memref.load %arg2[%c238] : memref<294xf32, #tpu.memory_space<smem>>
    %1078 = vector.broadcast %1077 : f32 to vector<10x16xf32>
    %1079 = arith.mulf %896, %1078 : vector<10x16xf32>
    %c239 = arith.constant 239 : index
    %1080 = memref.load %arg2[%c239] : memref<294xf32, #tpu.memory_space<smem>>
    %1081 = vector.broadcast %1080 : f32 to vector<10x16xf32>
    %1082 = arith.mulf %897, %1081 : vector<10x16xf32>
    %1083 = arith.addf %1079, %1082 : vector<10x16xf32>
    %c240 = arith.constant 240 : index
    %1084 = memref.load %arg2[%c240] : memref<294xf32, #tpu.memory_space<smem>>
    %1085 = vector.broadcast %1084 : f32 to vector<10x16xf32>
    %1086 = arith.mulf %898, %1085 : vector<10x16xf32>
    %1087 = arith.addf %1083, %1086 : vector<10x16xf32>
    %c241 = arith.constant 241 : index
    %1088 = memref.load %arg2[%c241] : memref<294xf32, #tpu.memory_space<smem>>
    %1089 = vector.broadcast %1088 : f32 to vector<10x16xf32>
    %1090 = arith.mulf %899, %1089 : vector<10x16xf32>
    %1091 = arith.addf %1087, %1090 : vector<10x16xf32>
    %c242 = arith.constant 242 : index
    %1092 = memref.load %arg2[%c242] : memref<294xf32, #tpu.memory_space<smem>>
    %1093 = vector.broadcast %1092 : f32 to vector<10x16xf32>
    %1094 = arith.mulf %900, %1093 : vector<10x16xf32>
    %1095 = arith.addf %1091, %1094 : vector<10x16xf32>
    %c243 = arith.constant 243 : index
    %1096 = memref.load %arg2[%c243] : memref<294xf32, #tpu.memory_space<smem>>
    %1097 = vector.broadcast %1096 : f32 to vector<10x16xf32>
    %1098 = arith.mulf %901, %1097 : vector<10x16xf32>
    %1099 = arith.addf %1095, %1098 : vector<10x16xf32>
    %c244 = arith.constant 244 : index
    %1100 = memref.load %arg2[%c244] : memref<294xf32, #tpu.memory_space<smem>>
    %1101 = vector.broadcast %1100 : f32 to vector<10x16xf32>
    %1102 = arith.mulf %902, %1101 : vector<10x16xf32>
    %1103 = arith.addf %1099, %1102 : vector<10x16xf32>
    %1104 = vector.extract_strided_slice %1103 {offsets = [6, 0], sizes = [4, 16], strides = [1, 1]} : vector<10x16xf32> to vector<4x16xf32>
    %1105 = arith.addf %1076, %1104 : vector<4x16xf32>
    %1106 = tpu.concatenate %893, %13, %893 in 1 : vector<4x3xf32>, vector<4x16xf32>, vector<4x3xf32> -> vector<4x22xf32>
    %1107 = tpu.concatenate %892, %1106, %892 in 0 : vector<3x22xf32>, vector<4x22xf32>, vector<3x22xf32> -> vector<10x22xf32>
    %1108 = vector.extract_strided_slice %1107 {offsets = [0, 0], sizes = [10, 16], strides = [1, 1]} : vector<10x22xf32> to vector<10x16xf32>
    %1109 = vector.extract_strided_slice %1107 {offsets = [0, 1], sizes = [10, 16], strides = [1, 1]} : vector<10x22xf32> to vector<10x16xf32>
    %1110 = vector.extract_strided_slice %1107 {offsets = [0, 2], sizes = [10, 16], strides = [1, 1]} : vector<10x22xf32> to vector<10x16xf32>
    %1111 = vector.extract_strided_slice %1107 {offsets = [0, 3], sizes = [10, 16], strides = [1, 1]} : vector<10x22xf32> to vector<10x16xf32>
    %1112 = vector.extract_strided_slice %1107 {offsets = [0, 4], sizes = [10, 16], strides = [1, 1]} : vector<10x22xf32> to vector<10x16xf32>
    %1113 = vector.extract_strided_slice %1107 {offsets = [0, 5], sizes = [10, 16], strides = [1, 1]} : vector<10x22xf32> to vector<10x16xf32>
    %1114 = vector.extract_strided_slice %1107 {offsets = [0, 6], sizes = [10, 16], strides = [1, 1]} : vector<10x22xf32> to vector<10x16xf32>
    %c245 = arith.constant 245 : index
    %1115 = memref.load %arg2[%c245] : memref<294xf32, #tpu.memory_space<smem>>
    %1116 = vector.broadcast %1115 : f32 to vector<10x16xf32>
    %1117 = arith.mulf %1108, %1116 : vector<10x16xf32>
    %c246 = arith.constant 246 : index
    %1118 = memref.load %arg2[%c246] : memref<294xf32, #tpu.memory_space<smem>>
    %1119 = vector.broadcast %1118 : f32 to vector<10x16xf32>
    %1120 = arith.mulf %1109, %1119 : vector<10x16xf32>
    %1121 = arith.addf %1117, %1120 : vector<10x16xf32>
    %c247 = arith.constant 247 : index
    %1122 = memref.load %arg2[%c247] : memref<294xf32, #tpu.memory_space<smem>>
    %1123 = vector.broadcast %1122 : f32 to vector<10x16xf32>
    %1124 = arith.mulf %1110, %1123 : vector<10x16xf32>
    %1125 = arith.addf %1121, %1124 : vector<10x16xf32>
    %c248 = arith.constant 248 : index
    %1126 = memref.load %arg2[%c248] : memref<294xf32, #tpu.memory_space<smem>>
    %1127 = vector.broadcast %1126 : f32 to vector<10x16xf32>
    %1128 = arith.mulf %1111, %1127 : vector<10x16xf32>
    %1129 = arith.addf %1125, %1128 : vector<10x16xf32>
    %c249 = arith.constant 249 : index
    %1130 = memref.load %arg2[%c249] : memref<294xf32, #tpu.memory_space<smem>>
    %1131 = vector.broadcast %1130 : f32 to vector<10x16xf32>
    %1132 = arith.mulf %1112, %1131 : vector<10x16xf32>
    %1133 = arith.addf %1129, %1132 : vector<10x16xf32>
    %c250 = arith.constant 250 : index
    %1134 = memref.load %arg2[%c250] : memref<294xf32, #tpu.memory_space<smem>>
    %1135 = vector.broadcast %1134 : f32 to vector<10x16xf32>
    %1136 = arith.mulf %1113, %1135 : vector<10x16xf32>
    %1137 = arith.addf %1133, %1136 : vector<10x16xf32>
    %c251 = arith.constant 251 : index
    %1138 = memref.load %arg2[%c251] : memref<294xf32, #tpu.memory_space<smem>>
    %1139 = vector.broadcast %1138 : f32 to vector<10x16xf32>
    %1140 = arith.mulf %1114, %1139 : vector<10x16xf32>
    %1141 = arith.addf %1137, %1140 : vector<10x16xf32>
    %1142 = vector.extract_strided_slice %1141 {offsets = [0, 0], sizes = [4, 16], strides = [1, 1]} : vector<10x16xf32> to vector<4x16xf32>
    %1143 = arith.addf %1105, %1142 : vector<4x16xf32>
    %c252 = arith.constant 252 : index
    %1144 = memref.load %arg2[%c252] : memref<294xf32, #tpu.memory_space<smem>>
    %1145 = vector.broadcast %1144 : f32 to vector<10x16xf32>
    %1146 = arith.mulf %1108, %1145 : vector<10x16xf32>
    %c253 = arith.constant 253 : index
    %1147 = memref.load %arg2[%c253] : memref<294xf32, #tpu.memory_space<smem>>
    %1148 = vector.broadcast %1147 : f32 to vector<10x16xf32>
    %1149 = arith.mulf %1109, %1148 : vector<10x16xf32>
    %1150 = arith.addf %1146, %1149 : vector<10x16xf32>
    %c254 = arith.constant 254 : index
    %1151 = memref.load %arg2[%c254] : memref<294xf32, #tpu.memory_space<smem>>
    %1152 = vector.broadcast %1151 : f32 to vector<10x16xf32>
    %1153 = arith.mulf %1110, %1152 : vector<10x16xf32>
    %1154 = arith.addf %1150, %1153 : vector<10x16xf32>
    %c255 = arith.constant 255 : index
    %1155 = memref.load %arg2[%c255] : memref<294xf32, #tpu.memory_space<smem>>
    %1156 = vector.broadcast %1155 : f32 to vector<10x16xf32>
    %1157 = arith.mulf %1111, %1156 : vector<10x16xf32>
    %1158 = arith.addf %1154, %1157 : vector<10x16xf32>
    %c256 = arith.constant 256 : index
    %1159 = memref.load %arg2[%c256] : memref<294xf32, #tpu.memory_space<smem>>
    %1160 = vector.broadcast %1159 : f32 to vector<10x16xf32>
    %1161 = arith.mulf %1112, %1160 : vector<10x16xf32>
    %1162 = arith.addf %1158, %1161 : vector<10x16xf32>
    %c257 = arith.constant 257 : index
    %1163 = memref.load %arg2[%c257] : memref<294xf32, #tpu.memory_space<smem>>
    %1164 = vector.broadcast %1163 : f32 to vector<10x16xf32>
    %1165 = arith.mulf %1113, %1164 : vector<10x16xf32>
    %1166 = arith.addf %1162, %1165 : vector<10x16xf32>
    %c258 = arith.constant 258 : index
    %1167 = memref.load %arg2[%c258] : memref<294xf32, #tpu.memory_space<smem>>
    %1168 = vector.broadcast %1167 : f32 to vector<10x16xf32>
    %1169 = arith.mulf %1114, %1168 : vector<10x16xf32>
    %1170 = arith.addf %1166, %1169 : vector<10x16xf32>
    %1171 = vector.extract_strided_slice %1170 {offsets = [1, 0], sizes = [4, 16], strides = [1, 1]} : vector<10x16xf32> to vector<4x16xf32>
    %1172 = arith.addf %1143, %1171 : vector<4x16xf32>
    %c259 = arith.constant 259 : index
    %1173 = memref.load %arg2[%c259] : memref<294xf32, #tpu.memory_space<smem>>
    %1174 = vector.broadcast %1173 : f32 to vector<10x16xf32>
    %1175 = arith.mulf %1108, %1174 : vector<10x16xf32>
    %c260 = arith.constant 260 : index
    %1176 = memref.load %arg2[%c260] : memref<294xf32, #tpu.memory_space<smem>>
    %1177 = vector.broadcast %1176 : f32 to vector<10x16xf32>
    %1178 = arith.mulf %1109, %1177 : vector<10x16xf32>
    %1179 = arith.addf %1175, %1178 : vector<10x16xf32>
    %c261 = arith.constant 261 : index
    %1180 = memref.load %arg2[%c261] : memref<294xf32, #tpu.memory_space<smem>>
    %1181 = vector.broadcast %1180 : f32 to vector<10x16xf32>
    %1182 = arith.mulf %1110, %1181 : vector<10x16xf32>
    %1183 = arith.addf %1179, %1182 : vector<10x16xf32>
    %c262 = arith.constant 262 : index
    %1184 = memref.load %arg2[%c262] : memref<294xf32, #tpu.memory_space<smem>>
    %1185 = vector.broadcast %1184 : f32 to vector<10x16xf32>
    %1186 = arith.mulf %1111, %1185 : vector<10x16xf32>
    %1187 = arith.addf %1183, %1186 : vector<10x16xf32>
    %c263 = arith.constant 263 : index
    %1188 = memref.load %arg2[%c263] : memref<294xf32, #tpu.memory_space<smem>>
    %1189 = vector.broadcast %1188 : f32 to vector<10x16xf32>
    %1190 = arith.mulf %1112, %1189 : vector<10x16xf32>
    %1191 = arith.addf %1187, %1190 : vector<10x16xf32>
    %c264 = arith.constant 264 : index
    %1192 = memref.load %arg2[%c264] : memref<294xf32, #tpu.memory_space<smem>>
    %1193 = vector.broadcast %1192 : f32 to vector<10x16xf32>
    %1194 = arith.mulf %1113, %1193 : vector<10x16xf32>
    %1195 = arith.addf %1191, %1194 : vector<10x16xf32>
    %c265 = arith.constant 265 : index
    %1196 = memref.load %arg2[%c265] : memref<294xf32, #tpu.memory_space<smem>>
    %1197 = vector.broadcast %1196 : f32 to vector<10x16xf32>
    %1198 = arith.mulf %1114, %1197 : vector<10x16xf32>
    %1199 = arith.addf %1195, %1198 : vector<10x16xf32>
    %1200 = vector.extract_strided_slice %1199 {offsets = [2, 0], sizes = [4, 16], strides = [1, 1]} : vector<10x16xf32> to vector<4x16xf32>
    %1201 = arith.addf %1172, %1200 : vector<4x16xf32>
    %c266 = arith.constant 266 : index
    %1202 = memref.load %arg2[%c266] : memref<294xf32, #tpu.memory_space<smem>>
    %1203 = vector.broadcast %1202 : f32 to vector<10x16xf32>
    %1204 = arith.mulf %1108, %1203 : vector<10x16xf32>
    %c267 = arith.constant 267 : index
    %1205 = memref.load %arg2[%c267] : memref<294xf32, #tpu.memory_space<smem>>
    %1206 = vector.broadcast %1205 : f32 to vector<10x16xf32>
    %1207 = arith.mulf %1109, %1206 : vector<10x16xf32>
    %1208 = arith.addf %1204, %1207 : vector<10x16xf32>
    %c268 = arith.constant 268 : index
    %1209 = memref.load %arg2[%c268] : memref<294xf32, #tpu.memory_space<smem>>
    %1210 = vector.broadcast %1209 : f32 to vector<10x16xf32>
    %1211 = arith.mulf %1110, %1210 : vector<10x16xf32>
    %1212 = arith.addf %1208, %1211 : vector<10x16xf32>
    %c269 = arith.constant 269 : index
    %1213 = memref.load %arg2[%c269] : memref<294xf32, #tpu.memory_space<smem>>
    %1214 = vector.broadcast %1213 : f32 to vector<10x16xf32>
    %1215 = arith.mulf %1111, %1214 : vector<10x16xf32>
    %1216 = arith.addf %1212, %1215 : vector<10x16xf32>
    %c270 = arith.constant 270 : index
    %1217 = memref.load %arg2[%c270] : memref<294xf32, #tpu.memory_space<smem>>
    %1218 = vector.broadcast %1217 : f32 to vector<10x16xf32>
    %1219 = arith.mulf %1112, %1218 : vector<10x16xf32>
    %1220 = arith.addf %1216, %1219 : vector<10x16xf32>
    %c271 = arith.constant 271 : index
    %1221 = memref.load %arg2[%c271] : memref<294xf32, #tpu.memory_space<smem>>
    %1222 = vector.broadcast %1221 : f32 to vector<10x16xf32>
    %1223 = arith.mulf %1113, %1222 : vector<10x16xf32>
    %1224 = arith.addf %1220, %1223 : vector<10x16xf32>
    %c272 = arith.constant 272 : index
    %1225 = memref.load %arg2[%c272] : memref<294xf32, #tpu.memory_space<smem>>
    %1226 = vector.broadcast %1225 : f32 to vector<10x16xf32>
    %1227 = arith.mulf %1114, %1226 : vector<10x16xf32>
    %1228 = arith.addf %1224, %1227 : vector<10x16xf32>
    %1229 = vector.extract_strided_slice %1228 {offsets = [3, 0], sizes = [4, 16], strides = [1, 1]} : vector<10x16xf32> to vector<4x16xf32>
    %1230 = arith.addf %1201, %1229 : vector<4x16xf32>
    %c273 = arith.constant 273 : index
    %1231 = memref.load %arg2[%c273] : memref<294xf32, #tpu.memory_space<smem>>
    %1232 = vector.broadcast %1231 : f32 to vector<10x16xf32>
    %1233 = arith.mulf %1108, %1232 : vector<10x16xf32>
    %c274 = arith.constant 274 : index
    %1234 = memref.load %arg2[%c274] : memref<294xf32, #tpu.memory_space<smem>>
    %1235 = vector.broadcast %1234 : f32 to vector<10x16xf32>
    %1236 = arith.mulf %1109, %1235 : vector<10x16xf32>
    %1237 = arith.addf %1233, %1236 : vector<10x16xf32>
    %c275 = arith.constant 275 : index
    %1238 = memref.load %arg2[%c275] : memref<294xf32, #tpu.memory_space<smem>>
    %1239 = vector.broadcast %1238 : f32 to vector<10x16xf32>
    %1240 = arith.mulf %1110, %1239 : vector<10x16xf32>
    %1241 = arith.addf %1237, %1240 : vector<10x16xf32>
    %c276 = arith.constant 276 : index
    %1242 = memref.load %arg2[%c276] : memref<294xf32, #tpu.memory_space<smem>>
    %1243 = vector.broadcast %1242 : f32 to vector<10x16xf32>
    %1244 = arith.mulf %1111, %1243 : vector<10x16xf32>
    %1245 = arith.addf %1241, %1244 : vector<10x16xf32>
    %c277 = arith.constant 277 : index
    %1246 = memref.load %arg2[%c277] : memref<294xf32, #tpu.memory_space<smem>>
    %1247 = vector.broadcast %1246 : f32 to vector<10x16xf32>
    %1248 = arith.mulf %1112, %1247 : vector<10x16xf32>
    %1249 = arith.addf %1245, %1248 : vector<10x16xf32>
    %c278 = arith.constant 278 : index
    %1250 = memref.load %arg2[%c278] : memref<294xf32, #tpu.memory_space<smem>>
    %1251 = vector.broadcast %1250 : f32 to vector<10x16xf32>
    %1252 = arith.mulf %1113, %1251 : vector<10x16xf32>
    %1253 = arith.addf %1249, %1252 : vector<10x16xf32>
    %c279 = arith.constant 279 : index
    %1254 = memref.load %arg2[%c279] : memref<294xf32, #tpu.memory_space<smem>>
    %1255 = vector.broadcast %1254 : f32 to vector<10x16xf32>
    %1256 = arith.mulf %1114, %1255 : vector<10x16xf32>
    %1257 = arith.addf %1253, %1256 : vector<10x16xf32>
    %1258 = vector.extract_strided_slice %1257 {offsets = [4, 0], sizes = [4, 16], strides = [1, 1]} : vector<10x16xf32> to vector<4x16xf32>
    %1259 = arith.addf %1230, %1258 : vector<4x16xf32>
    %c280 = arith.constant 280 : index
    %1260 = memref.load %arg2[%c280] : memref<294xf32, #tpu.memory_space<smem>>
    %1261 = vector.broadcast %1260 : f32 to vector<10x16xf32>
    %1262 = arith.mulf %1108, %1261 : vector<10x16xf32>
    %c281 = arith.constant 281 : index
    %1263 = memref.load %arg2[%c281] : memref<294xf32, #tpu.memory_space<smem>>
    %1264 = vector.broadcast %1263 : f32 to vector<10x16xf32>
    %1265 = arith.mulf %1109, %1264 : vector<10x16xf32>
    %1266 = arith.addf %1262, %1265 : vector<10x16xf32>
    %c282 = arith.constant 282 : index
    %1267 = memref.load %arg2[%c282] : memref<294xf32, #tpu.memory_space<smem>>
    %1268 = vector.broadcast %1267 : f32 to vector<10x16xf32>
    %1269 = arith.mulf %1110, %1268 : vector<10x16xf32>
    %1270 = arith.addf %1266, %1269 : vector<10x16xf32>
    %c283 = arith.constant 283 : index
    %1271 = memref.load %arg2[%c283] : memref<294xf32, #tpu.memory_space<smem>>
    %1272 = vector.broadcast %1271 : f32 to vector<10x16xf32>
    %1273 = arith.mulf %1111, %1272 : vector<10x16xf32>
    %1274 = arith.addf %1270, %1273 : vector<10x16xf32>
    %c284 = arith.constant 284 : index
    %1275 = memref.load %arg2[%c284] : memref<294xf32, #tpu.memory_space<smem>>
    %1276 = vector.broadcast %1275 : f32 to vector<10x16xf32>
    %1277 = arith.mulf %1112, %1276 : vector<10x16xf32>
    %1278 = arith.addf %1274, %1277 : vector<10x16xf32>
    %c285 = arith.constant 285 : index
    %1279 = memref.load %arg2[%c285] : memref<294xf32, #tpu.memory_space<smem>>
    %1280 = vector.broadcast %1279 : f32 to vector<10x16xf32>
    %1281 = arith.mulf %1113, %1280 : vector<10x16xf32>
    %1282 = arith.addf %1278, %1281 : vector<10x16xf32>
    %c286 = arith.constant 286 : index
    %1283 = memref.load %arg2[%c286] : memref<294xf32, #tpu.memory_space<smem>>
    %1284 = vector.broadcast %1283 : f32 to vector<10x16xf32>
    %1285 = arith.mulf %1114, %1284 : vector<10x16xf32>
    %1286 = arith.addf %1282, %1285 : vector<10x16xf32>
    %1287 = vector.extract_strided_slice %1286 {offsets = [5, 0], sizes = [4, 16], strides = [1, 1]} : vector<10x16xf32> to vector<4x16xf32>
    %1288 = arith.addf %1259, %1287 : vector<4x16xf32>
    %c287 = arith.constant 287 : index
    %1289 = memref.load %arg2[%c287] : memref<294xf32, #tpu.memory_space<smem>>
    %1290 = vector.broadcast %1289 : f32 to vector<10x16xf32>
    %1291 = arith.mulf %1108, %1290 : vector<10x16xf32>
    %c288 = arith.constant 288 : index
    %1292 = memref.load %arg2[%c288] : memref<294xf32, #tpu.memory_space<smem>>
    %1293 = vector.broadcast %1292 : f32 to vector<10x16xf32>
    %1294 = arith.mulf %1109, %1293 : vector<10x16xf32>
    %1295 = arith.addf %1291, %1294 : vector<10x16xf32>
    %c289 = arith.constant 289 : index
    %1296 = memref.load %arg2[%c289] : memref<294xf32, #tpu.memory_space<smem>>
    %1297 = vector.broadcast %1296 : f32 to vector<10x16xf32>
    %1298 = arith.mulf %1110, %1297 : vector<10x16xf32>
    %1299 = arith.addf %1295, %1298 : vector<10x16xf32>
    %c290 = arith.constant 290 : index
    %1300 = memref.load %arg2[%c290] : memref<294xf32, #tpu.memory_space<smem>>
    %1301 = vector.broadcast %1300 : f32 to vector<10x16xf32>
    %1302 = arith.mulf %1111, %1301 : vector<10x16xf32>
    %1303 = arith.addf %1299, %1302 : vector<10x16xf32>
    %c291 = arith.constant 291 : index
    %1304 = memref.load %arg2[%c291] : memref<294xf32, #tpu.memory_space<smem>>
    %1305 = vector.broadcast %1304 : f32 to vector<10x16xf32>
    %1306 = arith.mulf %1112, %1305 : vector<10x16xf32>
    %1307 = arith.addf %1303, %1306 : vector<10x16xf32>
    %c292 = arith.constant 292 : index
    %1308 = memref.load %arg2[%c292] : memref<294xf32, #tpu.memory_space<smem>>
    %1309 = vector.broadcast %1308 : f32 to vector<10x16xf32>
    %1310 = arith.mulf %1113, %1309 : vector<10x16xf32>
    %1311 = arith.addf %1307, %1310 : vector<10x16xf32>
    %c293 = arith.constant 293 : index
    %1312 = memref.load %arg2[%c293] : memref<294xf32, #tpu.memory_space<smem>>
    %1313 = vector.broadcast %1312 : f32 to vector<10x16xf32>
    %1314 = arith.mulf %1114, %1313 : vector<10x16xf32>
    %1315 = arith.addf %1311, %1314 : vector<10x16xf32>
    %1316 = vector.extract_strided_slice %1315 {offsets = [6, 0], sizes = [4, 16], strides = [1, 1]} : vector<10x16xf32> to vector<4x16xf32>
    %1317 = arith.addf %1288, %1316 : vector<4x16xf32>
    %1318 = arith.negf %1317 : vector<4x16xf32>
    %1319 = math.exp %1318 : vector<4x16xf32>
    %cst_28 = arith.constant 1.000000e+00 : f32
    %1320 = vector.broadcast %cst_28 : f32 to vector<4x16xf32>
    %1321 = arith.addf %1320, %1319 : vector<4x16xf32>
    %1322 = arith.divf %1320, %1321 : vector<4x16xf32>
    %cst_29 = arith.constant 0.333333343 : f32
    %1323 = vector.broadcast %cst_29 : f32 to vector<4x16xf32>
    %1324 = arith.mulf %1322, %1323 : vector<4x16xf32>
    %1325 = vector.shape_cast %450 : vector<16x16xf32> to vector<1x16x16xf32>
    %1326 = vector.shape_cast %887 : vector<4x16xf32> to vector<4x1x16xf32>
    %1327 = vector.shape_cast %1324 : vector<4x16xf32> to vector<4x16x1xf32>
    %1328 = vector.broadcast %1325 : vector<1x16x16xf32> to vector<4x16x16xf32>
    %1329 = vector.broadcast %1326 : vector<4x1x16xf32> to vector<4x16x16xf32>
    %1330 = arith.addf %1328, %1329 : vector<4x16x16xf32>
    %1331 = vector.broadcast %1327 : vector<4x16x1xf32> to vector<4x16x16xf32>
    %1332 = arith.addf %1330, %1331 : vector<4x16x16xf32>
    %c0_30 = arith.constant 0 : index
    %c0_31 = arith.constant 0 : index
    %c0_32 = arith.constant 0 : index
    %c0_33 = arith.constant 0 : index
    %1333 = vector.load %arg1[%c0_30, %c0_31, %c0_32, %c0_33] : memref<1x4x16x16xf32, #tpu.memory_space<vmem>>, vector<1x4x16x16xf32>
    %1334 = vector.shape_cast %1333 : vector<1x4x16x16xf32> to vector<4x16x16xf32>
    %1335 = arith.mulf %1334, %1332 : vector<4x16x16xf32>
    %c0_34 = arith.constant 0 : index
    %c0_35 = arith.constant 0 : index
    %c0_36 = arith.constant 0 : index
    %c0_37 = arith.constant 0 : index
    %1336 = vector.load %arg4[%c0_34, %c0_35, %c0_36, %c0_37] : memref<1x4x16x16xf32, #tpu.memory_space<vmem>>, vector<1x4x16x16xf32>
    %1337 = vector.shape_cast %1336 : vector<1x4x16x16xf32> to vector<4x16x16xf32>
    %1338 = vector.shape_cast %1335 : vector<4x16x16xf32> to vector<1x4x16x16xf32>
    tpu.vector_store %arg4[%c0_34, %c0_35, %c0_36, %c0_37], %1338 {strides = array<i32>} : memref<1x4x16x16xf32, #tpu.memory_space<vmem>>, vector<1x4x16x16xf32>,
    return
  }
  func.func @transform_0(%arg0: i32) -> (i32, i32, i32, i32) {
    %c0_i32 = arith.constant 0 : i32
    %c0_i32_0 = arith.constant 0 : i32
    %c0_i32_1 = arith.constant 0 : i32
    %c0_i32_2 = arith.constant 0 : i32
    return %arg0, %c0_i32, %c0_i32_0, %c0_i32_1 : i32, i32, i32, i32
  }
  func.func @transform_1(%arg0: i32) -> i32 {
    %c0_i32 = arith.constant 0 : i32
    %c0_i32_0 = arith.constant 0 : i32
    return %c0_i32 : i32
  }
  func.func @transform_2(%arg0: i32) -> i32 {
    %c0_i32 = arith.constant 0 : i32
    %c0_i32_0 = arith.constant 0 : i32
    return %c0_i32 : i32
  }
  func.func @transform_3(%arg0: i32) -> (i32, i32, i32, i32) {
    %c0_i32 = arith.constant 0 : i32
    %c0_i32_0 = arith.constant 0 : i32
    %c0_i32_1 = arith.constant 0 : i32
    %c0_i32_2 = arith.constant 0 : i32
    return %arg0, %c0_i32, %c0_i32_0, %c0_i32_1 : i32, i32, i32, i32
  }
}

</mosaic_0001>

<llo_original>
// kernel: triplet_attention.1
$region0: #{triplet_attention.1}
  #allocation0 [shape = 'u32[]', space=smem, size = 0x4, offset = 0x4, fixed_abs, tag = 'smem constant byte address 0x4 - core index']
  #allocation1 [shape = 'u32[72,128]{1,0:T(1,128)}', space=vmem, size = 0x9000, scoped, tag = 'internal scratch']
  %s0 = inlined_call_operand.hbm [shape: f32[2,4,16,16], index: 0, kind: input, shape index: {}]
  %s1 = inlined_call_operand.hbm [shape: f32[294], index: 1, kind: input, shape index: {}]
  %s2 = inlined_call_operand.vmem [shape: f32[3], index: 2, kind: input, shape index: {}]
  %s3 = inlined_call_operand.hbm [shape: f32[2,4,16,16], index: 3, kind: output, shape index: {}]
  %s4 = sld [smem:[#allocation0]]
  $region57: #{triplet_attention.1} parent=0
    _
  %s6 = ssub.s32 1, %s4
  %s7 = scalar_select 0, %s6, %s4
  $region1: #{triplet_attention.1} parent=0
    #allocation2 [shape = 'u8[65536]{0}', space=vmem, size = 0x10000, scoped, tag = 'input window, operand 0']
    #allocation3 [shape = 's32[2]{0}', space=sflag, size = 0x8, scoped, tag = 'scoped memory for triplet_attention.1']
    #allocation4 [shape = 's32[2]{0}', space=sflag, size = 0x8, scoped, tag = 'scoped memory for triplet_attention.1']
    #allocation5 [shape = 's32[2]{0}', space=sflag, size = 0x8, scoped, tag = 'scoped memory for triplet_attention.1']
    #allocation6 [shape = 's32[2]{0}', space=sflag, size = 0x8, scoped, tag = 'scoped memory for triplet_attention.1']
    #allocation7 [shape = 'u8[1536]{0}', space=smem, size = 0x600, scoped, tag = 'input window, operand 1, single buffered']
    #allocation8 [shape = 'u8[512]{0}', space=smem, size = 0x200, scoped, tag = 'input window, operand 2, single buffered']
    #allocation9 [shape = 'u8[65536]{0}', space=vmem, size = 0x10000, scoped, tag = 'output window, operand 0']
    %8 = vsyncpa [#allocation3], 0
    %s9 = scalar_lea.sflag [#allocation3], 1
    %10 = vsyncpa %s9, 0
    %11 = vsyncpa [#allocation5], 0
    %12 = vsyncpa [#allocation6], 0
    %13 = vsyncpa [#allocation4], 0
    %s14 = scalar_lea.sflag [#allocation4], 1
    %15 = vsyncpa %s14, 0
    loop: start=0, step=1, limit=4
    $region2: #{triplet_attention.1} parent=1 // loop_pre_header
      _
    $region3: #{triplet_attention.1} parent=1 // loop_header
      %s17 = sphi 0, %s21
      %p18 = scmp.ge.s32.totalorder %s17, 4
      %s27 = sphi 0, %s29
      %s30 = sphi 0, %s27
      %s31 = sphi 0, %s30
      %s47 = sphi 0, %s31
      %s51 = sphi 0, %s51
      %s53 = sphi 0, %s51
      %s54 = sphi 0, %s53
      %s68 = sphi 0, %s54
      %s72 = sphi 0, %s72
      %s74 = sphi 0, %s72
      %s75 = sphi 0, %s74
      %s89 = sphi 0, %s75
      %s95 = sphi 0, %s97
      %s98 = sphi 0, %s95
      %s99 = sphi 0, %s98
      %s115 = sphi 0, %s99
    $region4: #{triplet_attention.1} parent=1 // loop_header_branch
      %20 = sbr.rel (%p18) target = $region8
    $region5: #{triplet_attention.1} parent=1 // loop_body
      %s22 = ssub.s32 %s17, 1
      %s23 = ssub.s32 %s17, 2
      %s24 = sadd.s32 %s17, 1
      %s25 = ssub.s32 %s17, %s24
      %p26 = scmp.eq.s32.totalorder %s25, 0
      %s28 = sadd.s32 %s27, 1
      %s29 = scalar_select %p26, %s27, %s28
      %p32 = pneg %p26
      %p33 = scmp.eq.s32.totalorder %s17, 1
      %p34 = por %p32, %p33
      %p35 = scmp.ne.s32.totalorder %s27, %s30
      %p36 = scmp.eq.s32.totalorder %s17, 0
      %p37 = por %p35, %p36
      %p38 = scmp.ne.s32.totalorder %s27, %s30
      %p39 = scmp.eq.s32.totalorder %s22, 1
      %p40 = por %p38, %p39
      %p41 = scmp.ne.s32.totalorder %s30, %s31
      %p42 = scmp.eq.s32.totalorder %s22, 0
      %p43 = por %p41, %p42
      %p44 = scmp.ne.s32.totalorder %s30, %s31
      %p45 = scmp.eq.s32.totalorder %s23, 1
      %p46 = por %p44, %p45
      %p48 = scmp.ne.s32.totalorder %s31, %s47
      %p49 = scmp.eq.s32.totalorder %s23, 0
      %p50 = por %p48, %p49
      %s52 = sadd.s32 %s51, 1
      %p55 = scmp.eq.s32.totalorder %s17, 1
      %p56 = scmp.ne.s32.totalorder %s51, %s53
      %p57 = scmp.eq.s32.totalorder %s17, 0
      %p58 = por %p56, %p57
      %p59 = scmp.ne.s32.totalorder %s51, %s53
      %p60 = scmp.eq.s32.totalorder %s22, 1
      %p61 = por %p59, %p60
      %p62 = scmp.ne.s32.totalorder %s53, %s54
      %p63 = scmp.eq.s32.totalorder %s22, 0
      %p64 = por %p62, %p63
      %p65 = scmp.ne.s32.totalorder %s53, %s54
      %p66 = scmp.eq.s32.totalorder %s23, 1
      %p67 = por %p65, %p66
      %p69 = scmp.ne.s32.totalorder %s54, %s68
      %p70 = scmp.eq.s32.totalorder %s23, 0
      %p71 = por %p69, %p70
      %s73 = sadd.s32 %s72, 1
      %p76 = scmp.eq.s32.totalorder %s17, 1
      %p77 = scmp.ne.s32.totalorder %s72, %s74
      %p78 = scmp.eq.s32.totalorder %s17, 0
      %p79 = por %p77, %p78
      %p80 = scmp.ne.s32.totalorder %s72, %s74
      %p81 = scmp.eq.s32.totalorder %s22, 1
      %p82 = por %p80, %p81
      %p83 = scmp.ne.s32.totalorder %s74, %s75
      %p84 = scmp.eq.s32.totalorder %s22, 0
      %p85 = por %p83, %p84
      %p86 = scmp.ne.s32.totalorder %s74, %s75
      %p87 = scmp.eq.s32.totalorder %s23, 1
      %p88 = por %p86, %p87
      %p90 = scmp.ne.s32.totalorder %s75, %s89
      %p91 = scmp.eq.s32.totalorder %s23, 0
      %p92 = por %p90, %p91
      %s93 = ssub.s32 %s17, %s24
      %p94 = scmp.eq.s32.totalorder %s93, 0
      %s96 = sadd.s32 %s95, 1
      %s97 = scalar_select %p94, %s95, %s96
      %p100 = pneg %p94
      %p101 = scmp.eq.s32.totalorder %s17, 1
      %p102 = por %p100, %p101
      %p103 = scmp.ne.s32.totalorder %s95, %s98
      %p104 = scmp.eq.s32.totalorder %s17, 0
      %p105 = por %p103, %p104
      %p106 = scmp.ne.s32.totalorder %s95, %s98
      %p107 = scmp.eq.s32.totalorder %s22, 1
      %p108 = por %p106, %p107
      %p109 = scmp.ne.s32.totalorder %s98, %s99
      %p110 = scmp.eq.s32.totalorder %s22, 0
      %p111 = por %p109, %p110
      %p112 = scmp.ne.s32.totalorder %s98, %s99
      %p113 = scmp.eq.s32.totalorder %s23, 1
      %p114 = por %p112, %p113
      %p116 = scmp.ne.s32.totalorder %s99, %s115
      %p117 = scmp.eq.s32.totalorder %s23, 0
      %p118 = por %p116, %p117
      %p119 = scmp.le.s32.totalorder 1, %s17
      %p120 = scmp.lt.s32.totalorder %s17, 3
      %p121 = pnand %p119, %p120
      %p122 = pneg %p121
      // Predicated region
      $region9: #{triplet_attention.1} parent=5 // pred_check
        _
      $region10: #{triplet_attention.1} parent=5 // pred_check_branch
        %124 = sbr.rel (%p121) target = $region12
      $region11: #{triplet_attention.1} parent=5 // pred_region
        %s125 = ssub.s32 %s17, 1
        // Predicated region
        $region13: #{triplet_attention.1} parent=11 // pred_check
          %p126 = pneg %p64
        $region14: #{triplet_attention.1} parent=11 // pred_check_branch
          %128 = sbr.rel (%p126) target = $region16
        $region15: #{triplet_attention.1} parent=11 // pred_region
          %130 = vsyncadd [#allocation5], 0
          %s132 = sshll.u32 %s1, 4
          %s133 = int_to_ptr.hbm [resolvable:$true] %s132
          %135 = dma.hbm_to_smem %s133, 48, [#allocation7], [#allocation5]
        $region16: #{triplet_attention.1} parent=11 // pred_fallthru
          _
        // Predicated region
        $region17: #{triplet_attention.1} parent=11 // pred_check
          %p136 = pneg %p85
        $region18: #{triplet_attention.1} parent=11 // pred_check_branch
          %138 = sbr.rel (%p136) target = $region20
        $region19: #{triplet_attention.1} parent=11 // pred_region
          %140 = vsyncadd [#allocation6], 0
          %s142 = sshll.u32 %s2, 4
          %s143 = int_to_ptr.vmem [resolvable:$true] %s142
          %145 = dma.vmem_to_smem %s143, 16, [#allocation8], [#allocation6]
        $region20: #{triplet_attention.1} parent=11 // pred_fallthru
          _
      $region12: #{triplet_attention.1} parent=5 // pred_fallthru
        _
      %p146 = scmp.lt.s32.totalorder %s17, 2
      // Predicated region
      $region21: #{triplet_attention.1} parent=5 // pred_check
        %p147 = pneg %p146
      $region22: #{triplet_attention.1} parent=5 // pred_check_branch
        %149 = sbr.rel (%p147) target = $region24
      $region23: #{triplet_attention.1} parent=5 // pred_region
        // Predicated region
        $region25: #{triplet_attention.1} parent=23 // pred_check
          %p150 = pneg %p37
        $region26: #{triplet_attention.1} parent=23 // pred_check_branch
          %152 = sbr.rel (%p150) target = $region28
        $region27: #{triplet_attention.1} parent=23 // pred_region
          %s153 = sand.u32 %s27, 1
          %s154 = scalar_lea.sflag [#allocation3], %s153
          %s155 = sand.u32 %s27, 1
          %s156 = smul.addr %s155, 64
          %s157 = scalar_lea.vmem [#allocation2], %s156
          %159 = vsyncadd %s154, 0
          %s160 = smul.addr %s17, 8
          %s161 = smul.addr %s160, 8
          %s162 = scalar_lea.hbm %s0, %s161
          %s163 = sshll.u32 %s162, 4
          %s164 = int_to_ptr.hbm [resolvable:$true] %s163
          %s165 = sshll.u32 %s157, 4
          %s166 = int_to_ptr.vmem [resolvable:$true] %s165
          %171 = dma.hbm_to_vmem [thread:$0]  %s164, 1024, %s166, %s154, 128, 128, 8
        $region28: #{triplet_attention.1} parent=23 // pred_fallthru
          _
      $region24: #{triplet_attention.1} parent=5 // pred_fallthru
        _
      %p172 = scmp.le.s32.totalorder 1, %s17
      %p173 = scmp.lt.s32.totalorder %s17, 3
      %p174 = pnand %p172, %p173
      %p175 = pneg %p174
      // Predicated region
      $region29: #{triplet_attention.1} parent=5 // pred_check
        _
      $region30: #{triplet_attention.1} parent=5 // pred_check_branch
        %177 = sbr.rel (%p174) target = $region32
      $region31: #{triplet_attention.1} parent=5 // pred_region
        %s178 = ssub.s32 %s17, 1
        %s179 = sand.u32 %s30, 1
        %s180 = scalar_lea.sflag [#allocation3], %s179
        %s181 = sand.u32 %s30, 1
        %s182 = smul.addr %s181, 64
        %s183 = scalar_lea.vmem [#allocation2], %s182
        // Predicated region
        $region33: #{triplet_attention.1} parent=31 // pred_check
          %p184 = pneg %p43
        $region34: #{triplet_attention.1} parent=31 // pred_check_branch
          %186 = sbr.rel (%p184) target = $region36
        $region35: #{triplet_attention.1} parent=31 // pred_region
          %188 = dma.done %s180, 1024
        $region36: #{triplet_attention.1} parent=31 // pred_fallthru
          _
        // Predicated region
        $region37: #{triplet_attention.1} parent=31 // pred_check
          %p189 = pneg %p64
        $region38: #{triplet_attention.1} parent=31 // pred_check_branch
          %191 = sbr.rel (%p189) target = $region40
        $region39: #{triplet_attention.1} parent=31 // pred_region
          %193 = dma.done [#allocation5], 48
        $region40: #{triplet_attention.1} parent=31 // pred_fallthru
          _
        // Predicated region
        $region41: #{triplet_attention.1} parent=31 // pred_check
          %p194 = pneg %p85
        $region42: #{triplet_attention.1} parent=31 // pred_check_branch
          %196 = sbr.rel (%p194) target = $region44
        $region43: #{triplet_attention.1} parent=31 // pred_region
          %198 = dma.done [#allocation6], 16
        $region44: #{triplet_attention.1} parent=31 // pred_fallthru
          _
        %199 = sfence
        %s200 = sand.u32 %s30, 1
        %s201 = scalar_lea.sflag [#allocation3], %s200
        %s202 = sand.u32 %s30, 1
        %s203 = smul.addr %s202, 64
        %s204 = scalar_lea.vmem [#allocation2], %s203
        %p205 = pneg %p43
        %p206 = pneg %p40
        %p207 = pneg %p64
        %p208 = pneg %p61
        %p209 = pneg %p85
        %p210 = pneg %p82
        %p211 = pneg %p111
        %p212 = pneg %p108
        %s213 = sand.u32 %s98, 1
        %s214 = scalar_lea.sflag [#allocation4], %s213
        %s215 = sand.u32 %s98, 1
        %s216 = smul.addr %s215, 64
        %s217 = scalar_lea.vmem [#allocation9], %s216
        %v218 = vld [vmem:[%s183] sm:$0xff]
        %v219 = vld [vmem:[%s183 + $0x8] sm:$0xff]
        %v220 = vld [vmem:[%s183 + $0x10] sm:$0xff]
        %v221 = vld [vmem:[%s183 + $0x18] sm:$0xff]
        %v222 = vld [vmem:[%s183 + $0x20] sm:$0xff]
        %v223 = vld [vmem:[%s183 + $0x28] sm:$0xff]
        %v224 = vld [vmem:[%s183 + $0x30] sm:$0xff]
        %v225 = vld [vmem:[%s183 + $0x38] sm:$0xff]
        %vm226 = vcmask 130048
        %v227 = vsel %vm226, %v218, -inf
        %v228 = vsel %vm226, %v220, -inf
        %v229 = vsel %vm226, %v222, -inf
        %v230 = vmax.f32 %v227, %v229
        %v231 = vsel %vm226, %v224, -inf
        %v232 = vmax.f32 %v228, %v231
        %v233 = vmax.f32 %v230, %v232
        %v234 = vsel %vm226, %v219, -inf
        %v235 = vsel %vm226, %v221, -inf
        %v236 = vsel %vm226, %v223, -inf
        %v237 = vmax.f32 %v234, %v236
        %v238 = vsel %vm226, %v225, -inf
        %v239 = vmax.f32 %v235, %v238
        %v240 = vmax.f32 %v237, %v239
        %v241 = vsel %vm226, %v218, 0.0
        %v242 = vsel %vm226, %v220, 0.0
        %v243 = vadd.f32 %v241, %v242
        %v244 = vsel %vm226, %v222, 0.0
        %v245 = vadd.f32 %v243, %v244
        %v246 = vsel %vm226, %v224, 0.0
        %v247 = vadd.f32 %v245, %v246
        %v248 = vsel %vm226, %v219, 0.0
        %v249 = vsel %vm226, %v221, 0.0
        %v250 = vadd.f32 %v248, %v249
        %v251 = vsel %vm226, %v223, 0.0
        %v252 = vadd.f32 %v250, %v251
        %v253 = vsel %vm226, %v225, 0.0
        %v254 = vadd.f32 %v252, %v253
        %v255 = vmul.f32 %v247, 0.25
        %v256 = vmul.f32 %v254, 0.25
        %v257 = vmax.f32 %v227, %v234
        %v258 = vrot.slane %v257, 4
        %v259 = vmax.f32 %v257, %v258
        %v260 = vrot.slane %v259, 2
        %v261 = vmax.f32 %v259, %v260
        %v262 = vrot.slane %v261, 1
        %v263 = vmax.f32 %v261, %v262
        %v264 = vmax.f32 %v228, %v235
        %v265 = vrot.slane %v264, 4
        %v266 = vmax.f32 %v264, %v265
        %v267 = vrot.slane %v266, 2
        %v268 = vmax.f32 %v266, %v267
        %v269 = vrot.slane %v268, 1
        %v270 = vmax.f32 %v268, %v269
        %v271 = vmax.f32 %v229, %v236
        %v272 = vrot.slane %v271, 4
        %v273 = vmax.f32 %v271, %v272
        %v274 = vrot.slane %v273, 2
        %v275 = vmax.f32 %v273, %v274
        %v276 = vrot.slane %v275, 1
        %v277 = vmax.f32 %v275, %v276
        %v278 = vmax.f32 %v231, %v238
        %v279 = vrot.slane %v278, 4
        %v280 = vmax.f32 %v278, %v279
        %v281 = vrot.slane %v280, 2
        %v282 = vmax.f32 %v280, %v281
        %v283 = vrot.slane %v282, 1
        %v284 = vmax.f32 %v282, %v283
        %v285 = vadd.f32 %v241, %v248
        %v286 = vrot.slane %v285, 4
        %v287 = vadd.f32 %v285, %v286
        %v288 = vrot.slane %v287, 2
        %v289 = vadd.f32 %v287, %v288
        %v290 = vrot.slane %v289, 1
        %v291 = vadd.f32 %v289, %v290
        %v292 = vadd.f32 %v242, %v249
        %v293 = vrot.slane %v292, 4
        %v294 = vadd.f32 %v292, %v293
        %v295 = vrot.slane %v294, 2
        %v296 = vadd.f32 %v294, %v295
        %v297 = vrot.slane %v296, 1
        %v298 = vadd.f32 %v296, %v297
        %v299 = vadd.f32 %v244, %v251
        %v300 = vrot.slane %v299, 4
        %v301 = vadd.f32 %v299, %v300
        %v302 = vrot.slane %v301, 2
        %v303 = vadd.f32 %v301, %v302
        %v304 = vrot.slane %v303, 1
        %v305 = vadd.f32 %v303, %v304
        %v306 = vadd.f32 %v246, %v253
        %v307 = vrot.slane %v306, 4
        %v308 = vadd.f32 %v306, %v307
        %v309 = vrot.slane %v308, 2
        %v310 = vadd.f32 %v308, %v309
        %v311 = vrot.slane %v310, 1
        %v312 = vadd.f32 %v310, %v311
        %v313 = vmul.f32 %v291, 0.0625
        %v314 = vmul.f32 %v298, 0.0625
        %v315 = vmul.f32 %v305, 0.0625
        %v316 = vmul.f32 %v312, 0.0625
        %317 = vmax.xlane.f32.xlu0 %v227
        %v318 = vpop.xlane.xlu0 %317
        %319 = vmax.xlane.f32.xlu0 %v234
        %v320 = vpop.xlane.xlu0 %319
        %321 = vmax.xlane.f32.xlu0 %v228
        %v322 = vpop.xlane.xlu0 %321
        %323 = vmax.xlane.f32.xlu0 %v235
        %v324 = vpop.xlane.xlu0 %323
        %325 = vmax.xlane.f32.xlu0 %v229
        %v326 = vpop.xlane.xlu0 %325
        %327 = vmax.xlane.f32.xlu0 %v236
        %v328 = vpop.xlane.xlu0 %327
        %329 = vmax.xlane.f32.xlu0 %v231
        %v330 = vpop.xlane.xlu0 %329
        %331 = vmax.xlane.f32.xlu0 %v238
        %v332 = vpop.xlane.xlu0 %331
        %333 = vadd.xlane.f32.xlu0 %v241
        %v334 = vpop.xlane.xlu0 %333
        %335 = vadd.xlane.f32.xlu0 %v248
        %v336 = vpop.xlane.xlu0 %335
        %337 = vadd.xlane.f32.xlu0 %v242
        %v338 = vpop.xlane.xlu0 %337
        %339 = vadd.xlane.f32.xlu0 %v249
        %v340 = vpop.xlane.xlu0 %339
        %341 = vadd.xlane.f32.xlu0 %v244
        %v342 = vpop.xlane.xlu0 %341
        %343 = vadd.xlane.f32.xlu0 %v251
        %v344 = vpop.xlane.xlu0 %343
        %345 = vadd.xlane.f32.xlu0 %v246
        %v346 = vpop.xlane.xlu0 %345
        %347 = vadd.xlane.f32.xlu0 %v253
        %v348 = vpop.xlane.xlu0 %347
        %v349 = vmul.f32 %v334, 0.0625
        %v350 = vmul.f32 %v336, 0.0625
        %v351 = vmul.f32 %v338, 0.0625
        %v352 = vmul.f32 %v340, 0.0625
        %v353 = vmul.f32 %v342, 0.0625
        %v354 = vmul.f32 %v344, 0.0625
        %v355 = vmul.f32 %v346, 0.0625
        %v356 = vmul.f32 %v348, 0.0625
        %s357 = sld [smem:[#allocation8]]
        %v358 = vstv %s357
        %v359 = vadd.f32 %v358, 0.0
        %362 = vrot.lane.b32.xlu0 %v233, 3
        %v363 = vpop.permute.xlu0 %362
        %364 = vrot.lane.b32.xlu0 %v240, 3
        %v365 = vpop.permute.xlu0 %364
        %vm368 = vcmask 23552
        %v369 = vsel %vm368, 0.0, %v363
        %v370 = vsel %vm368, 0.0, %v365
        %vm371 = vcmask 154624
        %v372 = vsel %vm371, %v369, 0.0
        %v373 = vsel %vm371, %v370, 0.0
        %vm376 = vcmask 1042432
        %v377 = vrot.slane %v372, 5
        %v378 = vrot.slane %v373, 5
        %v379 = vsel %vm376, %v377, %v378
        %v383 = vsel %vm376, 0.0, %v377
        %v384 = vsel %vm376, %v378, 0.0
        %s385 = sld [smem:[#allocation7]]
        %v386 = vstv %s385
        %v387 = vmul.f32 %v383, %v386
        %v388 = vmul.f32 %v379, %v386
        %s389 = sld [smem:[#allocation7 + $0x1]]
        %v390 = vstv %s389
        %v391 = vmul.f32 %v383, %v390
        %v392 = vmul.f32 %v379, %v390
        %395 = vrot.lane.b32.xlu0 %v391, 127
        %v396 = vpop.permute.xlu0 %395
        %397 = vrot.lane.b32.xlu0 %v392, 127
        %v398 = vpop.permute.xlu0 %397
        %v401 = vadd.f32 %v387, %v396
        %v402 = vadd.f32 %v388, %v398
        %s403 = sld [smem:[#allocation7 + $0x2]]
        %v404 = vstv %s403
        %v405 = vmul.f32 %v383, %v404
        %v406 = vmul.f32 %v379, %v404
        %409 = vrot.lane.b32.xlu0 %v405, 126
        %v410 = vpop.permute.xlu0 %409
        %411 = vrot.lane.b32.xlu0 %v406, 126
        %v412 = vpop.permute.xlu0 %411
        %v415 = vadd.f32 %v401, %v410
        %v416 = vadd.f32 %v402, %v412
        %s417 = sld [smem:[#allocation7 + $0x3]]
        %v418 = vstv %s417
        %v419 = vmul.f32 %v383, %v418
        %v420 = vmul.f32 %v379, %v418
        %423 = vrot.lane.b32.xlu0 %v419, 125
        %v424 = vpop.permute.xlu0 %423
        %425 = vrot.lane.b32.xlu0 %v420, 125
        %v426 = vpop.permute.xlu0 %425
        %v429 = vadd.f32 %v415, %v424
        %v430 = vadd.f32 %v416, %v426
        %s431 = sld [smem:[#allocation7 + $0x4]]
        %v432 = vstv %s431
        %v433 = vmul.f32 %v383, %v432
        %v434 = vmul.f32 %v379, %v432
        %437 = vrot.lane.b32.xlu0 %v433, 124
        %v438 = vpop.permute.xlu0 %437
        %439 = vrot.lane.b32.xlu0 %v434, 124
        %v440 = vpop.permute.xlu0 %439
        %v443 = vadd.f32 %v429, %v438
        %v444 = vadd.f32 %v430, %v440
        %s445 = sld [smem:[#allocation7 + $0x5]]
        %v446 = vstv %s445
        %v447 = vmul.f32 %v383, %v446
        %v448 = vmul.f32 %v379, %v446
        %451 = vrot.lane.b32.xlu0 %v447, 123
        %v452 = vpop.permute.xlu0 %451
        %453 = vrot.lane.b32.xlu0 %v448, 123
        %v454 = vpop.permute.xlu0 %453
        %v457 = vadd.f32 %v443, %v452
        %v458 = vadd.f32 %v444, %v454
        %s459 = sld [smem:[#allocation7 + $0x6]]
        %v460 = vstv %s459
        %v461 = vmul.f32 %v383, %v460
        %v462 = vmul.f32 %v379, %v460
        %465 = vrot.lane.b32.xlu0 %v461, 122
        %v466 = vpop.permute.xlu0 %465
        %467 = vrot.lane.b32.xlu0 %v462, 122
        %v468 = vpop.permute.xlu0 %467
        %v471 = vadd.f32 %v457, %v466
        %v472 = vadd.f32 %v458, %v468
        %v473 = vadd.f32 %v359, %v471
        %v474 = vadd.f32 %v359, %v472
        %s475 = sld [smem:[#allocation7 + $0x7]]
        %v476 = vstv %s475
        %v477 = vmul.f32 %v383, %v476
        %v478 = vmul.f32 %v379, %v476
        %v479 = vmul.f32 %v384, %v476
        %s480 = sld [smem:[#allocation7 + $0x8]]
        %v481 = vstv %s480
        %v482 = vmul.f32 %v383, %v481
        %v483 = vmul.f32 %v379, %v481
        %v484 = vmul.f32 %v384, %v481
        %488 = vrot.lane.b32.xlu0 %v482, 127
        %v489 = vpop.permute.xlu0 %488
        %490 = vrot.lane.b32.xlu0 %v483, 127
        %v491 = vpop.permute.xlu0 %490
        %492 = vrot.lane.b32.xlu0 %v484, 127
        %v493 = vpop.permute.xlu0 %492
        %v497 = vadd.f32 %v477, %v489
        %v498 = vadd.f32 %v478, %v491
        %v499 = vadd.f32 %v479, %v493
        %s500 = sld [smem:[#allocation7 + $0x9]]
        %v501 = vstv %s500
        %v502 = vmul.f32 %v383, %v501
        %v503 = vmul.f32 %v379, %v501
        %v504 = vmul.f32 %v384, %v501
        %508 = vrot.lane.b32.xlu0 %v502, 126
        %v509 = vpop.permute.xlu0 %508
        %510 = vrot.lane.b32.xlu0 %v503, 126
        %v511 = vpop.permute.xlu0 %510
        %512 = vrot.lane.b32.xlu0 %v504, 126
        %v513 = vpop.permute.xlu0 %512
        %v517 = vadd.f32 %v497, %v509
        %v518 = vadd.f32 %v498, %v511
        %v519 = vadd.f32 %v499, %v513
        %s520 = sld [smem:[#allocation7 + $0xa]]
        %v521 = vstv %s520
        %v522 = vmul.f32 %v383, %v521
        %v523 = vmul.f32 %v379, %v521
        %v524 = vmul.f32 %v384, %v521
        %528 = vrot.lane.b32.xlu0 %v522, 125
        %v529 = vpop.permute.xlu0 %528
        %530 = vrot.lane.b32.xlu0 %v523, 125
        %v531 = vpop.permute.xlu0 %530
        %532 = vrot.lane.b32.xlu0 %v524, 125
        %v533 = vpop.permute.xlu0 %532
        %v537 = vadd.f32 %v517, %v529
        %v538 = vadd.f32 %v518, %v531
        %v539 = vadd.f32 %v519, %v533
        %s540 = sld [smem:[#allocation7 + $0xb]]
        %v541 = vstv %s540
        %v542 = vmul.f32 %v383, %v541
        %v543 = vmul.f32 %v379, %v541
        %v544 = vmul.f32 %v384, %v541
        %548 = vrot.lane.b32.xlu0 %v542, 124
        %v549 = vpop.permute.xlu0 %548
        %550 = vrot.lane.b32.xlu0 %v543, 124
        %v551 = vpop.permute.xlu0 %550
        %552 = vrot.lane.b32.xlu0 %v544, 124
        %v553 = vpop.permute.xlu0 %552
        %v557 = vadd.f32 %v537, %v549
        %v558 = vadd.f32 %v538, %v551
        %v559 = vadd.f32 %v539, %v553
        %s560 = sld [smem:[#allocation7 + $0xc]]
        %v561 = vstv %s560
        %v562 = vmul.f32 %v383, %v561
        %v563 = vmul.f32 %v379, %v561
        %v564 = vmul.f32 %v384, %v561
        %568 = vrot.lane.b32.xlu0 %v562, 123
        %v569 = vpop.permute.xlu0 %568
        %570 = vrot.lane.b32.xlu0 %v563, 123
        %v571 = vpop.permute.xlu0 %570
        %572 = vrot.lane.b32.xlu0 %v564, 123
        %v573 = vpop.permute.xlu0 %572
        %v577 = vadd.f32 %v557, %v569
        %v578 = vadd.f32 %v558, %v571
        %v579 = vadd.f32 %v559, %v573
        %s580 = sld [smem:[#allocation7 + $0xd]]
        %v581 = vstv %s580
        %v582 = vmul.f32 %v383, %v581
        %v583 = vmul.f32 %v379, %v581
        %v584 = vmul.f32 %v384, %v581
        %588 = vrot.lane.b32.xlu0 %v582, 122
        %v589 = vpop.permute.xlu0 %588
        %590 = vrot.lane.b32.xlu0 %v583, 122
        %v591 = vpop.permute.xlu0 %590
        %592 = vrot.lane.b32.xlu0 %v584, 122
        %v593 = vpop.permute.xlu0 %592
        %v597 = vadd.f32 %v577, %v589
        %v598 = vadd.f32 %v578, %v591
        %v599 = vadd.f32 %v579, %v593
        %vm603 = vcmask 1046528
        %v604 = vrot.slane %v597, 1
        %v605 = vrot.slane %v598, 1
        %v606 = vsel %vm603, %v604, %v605
        %v607 = vrot.slane %v599, 1
        %v608 = vsel %vm603, %v605, %v607
        %v611 = vadd.f32 %v473, %v606
        %v612 = vadd.f32 %v474, %v608
        %s613 = sld [smem:[#allocation7 + $0xe]]
        %v614 = vstv %s613
        %v615 = vmul.f32 %v383, %v614
        %v616 = vmul.f32 %v379, %v614
        %v617 = vmul.f32 %v384, %v614
        %s618 = sld [smem:[#allocation7 + $0xf]]
        %v619 = vstv %s618
        %v620 = vmul.f32 %v383, %v619
        %v621 = vmul.f32 %v379, %v619
        %v622 = vmul.f32 %v384, %v619
        %626 = vrot.lane.b32.xlu0 %v620, 127
        %v627 = vpop.permute.xlu0 %626
        %628 = vrot.lane.b32.xlu0 %v621, 127
        %v629 = vpop.permute.xlu0 %628
        %630 = vrot.lane.b32.xlu0 %v622, 127
        %v631 = vpop.permute.xlu0 %630
        %v635 = vadd.f32 %v615, %v627
        %v636 = vadd.f32 %v616, %v629
        %v637 = vadd.f32 %v617, %v631
        %s638 = sld [smem:[#allocation7 + $0x10]]
        %v639 = vstv %s638
        %v640 = vmul.f32 %v383, %v639
        %v641 = vmul.f32 %v379, %v639
        %v642 = vmul.f32 %v384, %v639
        %646 = vrot.lane.b32.xlu0 %v640, 126
        %v647 = vpop.permute.xlu0 %646
        %648 = vrot.lane.b32.xlu0 %v641, 126
        %v649 = vpop.permute.xlu0 %648
        %650 = vrot.lane.b32.xlu0 %v642, 126
        %v651 = vpop.permute.xlu0 %650
        %v655 = vadd.f32 %v635, %v647
        %v656 = vadd.f32 %v636, %v649
        %v657 = vadd.f32 %v637, %v651
        %s658 = sld [smem:[#allocation7 + $0x11]]
        %v659 = vstv %s658
        %v660 = vmul.f32 %v383, %v659
        %v661 = vmul.f32 %v379, %v659
        %v662 = vmul.f32 %v384, %v659
        %666 = vrot.lane.b32.xlu0 %v660, 125
        %v667 = vpop.permute.xlu0 %666
        %668 = vrot.lane.b32.xlu0 %v661, 125
        %v669 = vpop.permute.xlu0 %668
        %670 = vrot.lane.b32.xlu0 %v662, 125
        %v671 = vpop.permute.xlu0 %670
        %v675 = vadd.f32 %v655, %v667
        %v676 = vadd.f32 %v656, %v669
        %v677 = vadd.f32 %v657, %v671
        %s678 = sld [smem:[#allocation7 + $0x12]]
        %v679 = vstv %s678
        %v680 = vmul.f32 %v383, %v679
        %v681 = vmul.f32 %v379, %v679
        %v682 = vmul.f32 %v384, %v679
        %686 = vrot.lane.b32.xlu0 %v680, 124
        %v687 = vpop.permute.xlu0 %686
        %688 = vrot.lane.b32.xlu0 %v681, 124
        %v689 = vpop.permute.xlu0 %688
        %690 = vrot.lane.b32.xlu0 %v682, 124
        %v691 = vpop.permute.xlu0 %690
        %v695 = vadd.f32 %v675, %v687
        %v696 = vadd.f32 %v676, %v689
        %v697 = vadd.f32 %v677, %v691
        %s698 = sld [smem:[#allocation7 + $0x13]]
        %v699 = vstv %s698
        %v700 = vmul.f32 %v383, %v699
        %v701 = vmul.f32 %v379, %v699
        %v702 = vmul.f32 %v384, %v699
        %706 = vrot.lane.b32.xlu0 %v700, 123
        %v707 = vpop.permute.xlu0 %706
        %708 = vrot.lane.b32.xlu0 %v701, 123
        %v709 = vpop.permute.xlu0 %708
        %710 = vrot.lane.b32.xlu0 %v702, 123
        %v711 = vpop.permute.xlu0 %710
        %v715 = vadd.f32 %v695, %v707
        %v716 = vadd.f32 %v696, %v709
        %v717 = vadd.f32 %v697, %v711
        %s718 = sld [smem:[#allocation7 + $0x14]]
        %v719 = vstv %s718
        %v720 = vmul.f32 %v383, %v719
        %v721 = vmul.f32 %v379, %v719
        %v722 = vmul.f32 %v384, %v719
        %726 = vrot.lane.b32.xlu0 %v720, 122
        %v727 = vpop.permute.xlu0 %726
        %728 = vrot.lane.b32.xlu0 %v721, 122
        %v729 = vpop.permute.xlu0 %728
        %730 = vrot.lane.b32.xlu0 %v722, 122
        %v731 = vpop.permute.xlu0 %730
        %v735 = vadd.f32 %v715, %v727
        %v736 = vadd.f32 %v716, %v729
        %v737 = vadd.f32 %v717, %v731
        %vm741 = vcmask 1045504
        %v742 = vrot.slane %v735, 2
        %v743 = vrot.slane %v736, 2
        %v744 = vsel %vm741, %v742, %v743
        %v745 = vrot.slane %v737, 2
        %v746 = vsel %vm741, %v743, %v745
        %v749 = vadd.f32 %v611, %v744
        %v750 = vadd.f32 %v612, %v746
        %s751 = sld [smem:[#allocation7 + $0x15]]
        %v752 = vstv %s751
        %v753 = vmul.f32 %v383, %v752
        %v754 = vmul.f32 %v379, %v752
        %v755 = vmul.f32 %v384, %v752
        %s756 = sld [smem:[#allocation7 + $0x16]]
        %v757 = vstv %s756
        %v758 = vmul.f32 %v383, %v757
        %v759 = vmul.f32 %v379, %v757
        %v760 = vmul.f32 %v384, %v757
        %764 = vrot.lane.b32.xlu0 %v758, 127
        %v765 = vpop.permute.xlu0 %764
        %766 = vrot.lane.b32.xlu0 %v759, 127
        %v767 = vpop.permute.xlu0 %766
        %768 = vrot.lane.b32.xlu0 %v760, 127
        %v769 = vpop.permute.xlu0 %768
        %v773 = vadd.f32 %v753, %v765
        %v774 = vadd.f32 %v754, %v767
        %v775 = vadd.f32 %v755, %v769
        %s776 = sld [smem:[#allocation7 + $0x17]]
        %v777 = vstv %s776
        %v778 = vmul.f32 %v383, %v777
        %v779 = vmul.f32 %v379, %v777
        %v780 = vmul.f32 %v384, %v777
        %784 = vrot.lane.b32.xlu0 %v778, 126
        %v785 = vpop.permute.xlu0 %784
        %786 = vrot.lane.b32.xlu0 %v779, 126
        %v787 = vpop.permute.xlu0 %786
        %788 = vrot.lane.b32.xlu0 %v780, 126
        %v789 = vpop.permute.xlu0 %788
        %v793 = vadd.f32 %v773, %v785
        %v794 = vadd.f32 %v774, %v787
        %v795 = vadd.f32 %v775, %v789
        %s796 = sld [smem:[#allocation7 + $0x18]]
        %v797 = vstv %s796
        %v798 = vmul.f32 %v383, %v797
        %v799 = vmul.f32 %v379, %v797
        %v800 = vmul.f32 %v384, %v797
        %804 = vrot.lane.b32.xlu0 %v798, 125
        %v805 = vpop.permute.xlu0 %804
        %806 = vrot.lane.b32.xlu0 %v799, 125
        %v807 = vpop.permute.xlu0 %806
        %808 = vrot.lane.b32.xlu0 %v800, 125
        %v809 = vpop.permute.xlu0 %808
        %v813 = vadd.f32 %v793, %v805
        %v814 = vadd.f32 %v794, %v807
        %v815 = vadd.f32 %v795, %v809
        %s816 = sld [smem:[#allocation7 + $0x19]]
        %v817 = vstv %s816
        %v818 = vmul.f32 %v383, %v817
        %v819 = vmul.f32 %v379, %v817
        %v820 = vmul.f32 %v384, %v817
        %824 = vrot.lane.b32.xlu0 %v818, 124
        %v825 = vpop.permute.xlu0 %824
        %826 = vrot.lane.b32.xlu0 %v819, 124
        %v827 = vpop.permute.xlu0 %826
        %828 = vrot.lane.b32.xlu0 %v820, 124
        %v829 = vpop.permute.xlu0 %828
        %v833 = vadd.f32 %v813, %v825
        %v834 = vadd.f32 %v814, %v827
        %v835 = vadd.f32 %v815, %v829
        %s836 = sld [smem:[#allocation7 + $0x1a]]
        %v837 = vstv %s836
        %v838 = vmul.f32 %v383, %v837
        %v839 = vmul.f32 %v379, %v837
        %v840 = vmul.f32 %v384, %v837
        %844 = vrot.lane.b32.xlu0 %v838, 123
        %v845 = vpop.permute.xlu0 %844
        %846 = vrot.lane.b32.xlu0 %v839, 123
        %v847 = vpop.permute.xlu0 %846
        %848 = vrot.lane.b32.xlu0 %v840, 123
        %v849 = vpop.permute.xlu0 %848
        %v853 = vadd.f32 %v833, %v845
        %v854 = vadd.f32 %v834, %v847
        %v855 = vadd.f32 %v835, %v849
        %s856 = sld [smem:[#allocation7 + $0x1b]]
        %v857 = vstv %s856
        %v858 = vmul.f32 %v383, %v857
        %v859 = vmul.f32 %v379, %v857
        %v860 = vmul.f32 %v384, %v857
        %864 = vrot.lane.b32.xlu0 %v858, 122
        %v865 = vpop.permute.xlu0 %864
        %866 = vrot.lane.b32.xlu0 %v859, 122
        %v867 = vpop.permute.xlu0 %866
        %868 = vrot.lane.b32.xlu0 %v860, 122
        %v869 = vpop.permute.xlu0 %868
        %v873 = vadd.f32 %v853, %v865
        %v874 = vadd.f32 %v854, %v867
        %v875 = vadd.f32 %v855, %v869
        %vm879 = vcmask 1044480
        %v880 = vrot.slane %v873, 3
        %v881 = vrot.slane %v874, 3
        %v882 = vsel %vm879, %v880, %v881
        %v883 = vrot.slane %v875, 3
        %v884 = vsel %vm879, %v881, %v883
        %v887 = vadd.f32 %v749, %v882
        %v888 = vadd.f32 %v750, %v884
        %s889 = sld [smem:[#allocation7 + $0x1c]]
        %v890 = vstv %s889
        %v891 = vmul.f32 %v383, %v890
        %v892 = vmul.f32 %v379, %v890
        %v893 = vmul.f32 %v384, %v890
        %s894 = sld [smem:[#allocation7 + $0x1d]]
        %v895 = vstv %s894
        %v896 = vmul.f32 %v383, %v895
        %v897 = vmul.f32 %v379, %v895
        %v898 = vmul.f32 %v384, %v895
        %902 = vrot.lane.b32.xlu0 %v896, 127
        %v903 = vpop.permute.xlu0 %902
        %904 = vrot.lane.b32.xlu0 %v897, 127
        %v905 = vpop.permute.xlu0 %904
        %906 = vrot.lane.b32.xlu0 %v898, 127
        %v907 = vpop.permute.xlu0 %906
        %v911 = vadd.f32 %v891, %v903
        %v912 = vadd.f32 %v892, %v905
        %v913 = vadd.f32 %v893, %v907
        %s914 = sld [smem:[#allocation7 + $0x1e]]
        %v915 = vstv %s914
        %v916 = vmul.f32 %v383, %v915
        %v917 = vmul.f32 %v379, %v915
        %v918 = vmul.f32 %v384, %v915
        %922 = vrot.lane.b32.xlu0 %v916, 126
        %v923 = vpop.permute.xlu0 %922
        %924 = vrot.lane.b32.xlu0 %v917, 126
        %v925 = vpop.permute.xlu0 %924
        %926 = vrot.lane.b32.xlu0 %v918, 126
        %v927 = vpop.permute.xlu0 %926
        %v931 = vadd.f32 %v911, %v923
        %v932 = vadd.f32 %v912, %v925
        %v933 = vadd.f32 %v913, %v927
        %s934 = sld [smem:[#allocation7 + $0x1f]]
        %v935 = vstv %s934
        %v936 = vmul.f32 %v383, %v935
        %v937 = vmul.f32 %v379, %v935
        %v938 = vmul.f32 %v384, %v935
        %942 = vrot.lane.b32.xlu0 %v936, 125
        %v943 = vpop.permute.xlu0 %942
        %944 = vrot.lane.b32.xlu0 %v937, 125
        %v945 = vpop.permute.xlu0 %944
        %946 = vrot.lane.b32.xlu0 %v938, 125
        %v947 = vpop.permute.xlu0 %946
        %v951 = vadd.f32 %v931, %v943
        %v952 = vadd.f32 %v932, %v945
        %v953 = vadd.f32 %v933, %v947
        %s954 = sld [smem:[#allocation7 + $0x20]]
        %v955 = vstv %s954
        %v956 = vmul.f32 %v383, %v955
        %v957 = vmul.f32 %v379, %v955
        %v958 = vmul.f32 %v384, %v955
        %962 = vrot.lane.b32.xlu0 %v956, 124
        %v963 = vpop.permute.xlu0 %962
        %964 = vrot.lane.b32.xlu0 %v957, 124
        %v965 = vpop.permute.xlu0 %964
        %966 = vrot.lane.b32.xlu0 %v958, 124
        %v967 = vpop.permute.xlu0 %966
        %v971 = vadd.f32 %v951, %v963
        %v972 = vadd.f32 %v952, %v965
        %v973 = vadd.f32 %v953, %v967
        %s974 = sld [smem:[#allocation7 + $0x21]]
        %v975 = vstv %s974
        %v976 = vmul.f32 %v383, %v975
        %v977 = vmul.f32 %v379, %v975
        %v978 = vmul.f32 %v384, %v975
        %982 = vrot.lane.b32.xlu0 %v976, 123
        %v983 = vpop.permute.xlu0 %982
        %984 = vrot.lane.b32.xlu0 %v977, 123
        %v985 = vpop.permute.xlu0 %984
        %986 = vrot.lane.b32.xlu0 %v978, 123
        %v987 = vpop.permute.xlu0 %986
        %v991 = vadd.f32 %v971, %v983
        %v992 = vadd.f32 %v972, %v985
        %v993 = vadd.f32 %v973, %v987
        %s994 = sld [smem:[#allocation7 + $0x22]]
        %v995 = vstv %s994
        %v996 = vmul.f32 %v383, %v995
        %v997 = vmul.f32 %v379, %v995
        %v998 = vmul.f32 %v384, %v995
        %1002 = vrot.lane.b32.xlu0 %v996, 122
        %v1003 = vpop.permute.xlu0 %1002
        %1004 = vrot.lane.b32.xlu0 %v997, 122
        %v1005 = vpop.permute.xlu0 %1004
        %1006 = vrot.lane.b32.xlu0 %v998, 122
        %v1007 = vpop.permute.xlu0 %1006
        %v1011 = vadd.f32 %v991, %v1003
        %v1012 = vadd.f32 %v992, %v1005
        %v1013 = vadd.f32 %v993, %v1007
        %vm1017 = vcmask 1043456
        %v1018 = vrot.slane %v1011, 4
        %v1019 = vrot.slane %v1012, 4
        %v1020 = vsel %vm1017, %v1018, %v1019
        %v1021 = vrot.slane %v1013, 4
        %v1022 = vsel %vm1017, %v1019, %v1021
        %v1025 = vadd.f32 %v887, %v1020
        %v1026 = vadd.f32 %v888, %v1022
        %s1027 = sld [smem:[#allocation7 + $0x23]]
        %v1028 = vstv %s1027
        %v1029 = vmul.f32 %v383, %v1028
        %v1030 = vmul.f32 %v379, %v1028
        %v1031 = vmul.f32 %v384, %v1028
        %s1032 = sld [smem:[#allocation7 + $0x24]]
        %v1033 = vstv %s1032
        %v1034 = vmul.f32 %v383, %v1033
        %v1035 = vmul.f32 %v379, %v1033
        %v1036 = vmul.f32 %v384, %v1033
        %1040 = vrot.lane.b32.xlu0 %v1034, 127
        %v1041 = vpop.permute.xlu0 %1040
        %1042 = vrot.lane.b32.xlu0 %v1035, 127
        %v1043 = vpop.permute.xlu0 %1042
        %1044 = vrot.lane.b32.xlu0 %v1036, 127
        %v1045 = vpop.permute.xlu0 %1044
        %v1049 = vadd.f32 %v1029, %v1041
        %v1050 = vadd.f32 %v1030, %v1043
        %v1051 = vadd.f32 %v1031, %v1045
        %s1052 = sld [smem:[#allocation7 + $0x25]]
        %v1053 = vstv %s1052
        %v1054 = vmul.f32 %v383, %v1053
        %v1055 = vmul.f32 %v379, %v1053
        %v1056 = vmul.f32 %v384, %v1053
        %1060 = vrot.lane.b32.xlu0 %v1054, 126
        %v1061 = vpop.permute.xlu0 %1060
        %1062 = vrot.lane.b32.xlu0 %v1055, 126
        %v1063 = vpop.permute.xlu0 %1062
        %1064 = vrot.lane.b32.xlu0 %v1056, 126
        %v1065 = vpop.permute.xlu0 %1064
        %v1069 = vadd.f32 %v1049, %v1061
        %v1070 = vadd.f32 %v1050, %v1063
        %v1071 = vadd.f32 %v1051, %v1065
        %s1072 = sld [smem:[#allocation7 + $0x26]]
        %v1073 = vstv %s1072
        %v1074 = vmul.f32 %v383, %v1073
        %v1075 = vmul.f32 %v379, %v1073
        %v1076 = vmul.f32 %v384, %v1073
        %1080 = vrot.lane.b32.xlu0 %v1074, 125
        %v1081 = vpop.permute.xlu0 %1080
        %1082 = vrot.lane.b32.xlu0 %v1075, 125
        %v1083 = vpop.permute.xlu0 %1082
        %1084 = vrot.lane.b32.xlu0 %v1076, 125
        %v1085 = vpop.permute.xlu0 %1084
        %v1089 = vadd.f32 %v1069, %v1081
        %v1090 = vadd.f32 %v1070, %v1083
        %v1091 = vadd.f32 %v1071, %v1085
        %s1092 = sld [smem:[#allocation7 + $0x27]]
        %v1093 = vstv %s1092
        %v1094 = vmul.f32 %v383, %v1093
        %v1095 = vmul.f32 %v379, %v1093
        %v1096 = vmul.f32 %v384, %v1093
        %1100 = vrot.lane.b32.xlu0 %v1094, 124
        %v1101 = vpop.permute.xlu0 %1100
        %1102 = vrot.lane.b32.xlu0 %v1095, 124
        %v1103 = vpop.permute.xlu0 %1102
        %1104 = vrot.lane.b32.xlu0 %v1096, 124
        %v1105 = vpop.permute.xlu0 %1104
        %v1109 = vadd.f32 %v1089, %v1101
        %v1110 = vadd.f32 %v1090, %v1103
        %v1111 = vadd.f32 %v1091, %v1105
        %s1112 = sld [smem:[#allocation7 + $0x28]]
        %v1113 = vstv %s1112
        %v1114 = vmul.f32 %v383, %v1113
        %v1115 = vmul.f32 %v379, %v1113
        %v1116 = vmul.f32 %v384, %v1113
        %1120 = vrot.lane.b32.xlu0 %v1114, 123
        %v1121 = vpop.permute.xlu0 %1120
        %1122 = vrot.lane.b32.xlu0 %v1115, 123
        %v1123 = vpop.permute.xlu0 %1122
        %1124 = vrot.lane.b32.xlu0 %v1116, 123
        %v1125 = vpop.permute.xlu0 %1124
        %v1129 = vadd.f32 %v1109, %v1121
        %v1130 = vadd.f32 %v1110, %v1123
        %v1131 = vadd.f32 %v1111, %v1125
        %s1132 = sld [smem:[#allocation7 + $0x29]]
        %v1133 = vstv %s1132
        %v1134 = vmul.f32 %v383, %v1133
        %v1135 = vmul.f32 %v379, %v1133
        %v1136 = vmul.f32 %v384, %v1133
        %1140 = vrot.lane.b32.xlu0 %v1134, 122
        %v1141 = vpop.permute.xlu0 %1140
        %1142 = vrot.lane.b32.xlu0 %v1135, 122
        %v1143 = vpop.permute.xlu0 %1142
        %1144 = vrot.lane.b32.xlu0 %v1136, 122
        %v1145 = vpop.permute.xlu0 %1144
        %v1149 = vadd.f32 %v1129, %v1141
        %v1150 = vadd.f32 %v1130, %v1143
        %v1151 = vadd.f32 %v1131, %v1145
        %v1155 = vrot.slane %v1149, 5
        %v1156 = vrot.slane %v1150, 5
        %v1157 = vsel %vm376, %v1155, %v1156
        %v1158 = vrot.slane %v1151, 5
        %v1159 = vsel %vm376, %v1156, %v1158
        %v1162 = vadd.f32 %v1025, %v1157
        %v1163 = vadd.f32 %v1026, %v1159
        %s1164 = sld [smem:[#allocation7 + $0x2a]]
        %v1165 = vstv %s1164
        %v1166 = vmul.f32 %v383, %v1165
        %v1167 = vmul.f32 %v379, %v1165
        %v1168 = vmul.f32 %v384, %v1165
        %s1169 = sld [smem:[#allocation7 + $0x2b]]
        %v1170 = vstv %s1169
        %v1171 = vmul.f32 %v383, %v1170
        %v1172 = vmul.f32 %v379, %v1170
        %v1173 = vmul.f32 %v384, %v1170
        %1177 = vrot.lane.b32.xlu0 %v1171, 127
        %v1178 = vpop.permute.xlu0 %1177
        %1179 = vrot.lane.b32.xlu0 %v1172, 127
        %v1180 = vpop.permute.xlu0 %1179
        %1181 = vrot.lane.b32.xlu0 %v1173, 127
        %v1182 = vpop.permute.xlu0 %1181
        %v1186 = vadd.f32 %v1166, %v1178
        %v1187 = vadd.f32 %v1167, %v1180
        %v1188 = vadd.f32 %v1168, %v1182
        %s1189 = sld [smem:[#allocation7 + $0x2c]]
        %v1190 = vstv %s1189
        %v1191 = vmul.f32 %v383, %v1190
        %v1192 = vmul.f32 %v379, %v1190
        %v1193 = vmul.f32 %v384, %v1190
        %1197 = vrot.lane.b32.xlu0 %v1191, 126
        %v1198 = vpop.permute.xlu0 %1197
        %1199 = vrot.lane.b32.xlu0 %v1192, 126
        %v1200 = vpop.permute.xlu0 %1199
        %1201 = vrot.lane.b32.xlu0 %v1193, 126
        %v1202 = vpop.permute.xlu0 %1201
        %v1206 = vadd.f32 %v1186, %v1198
        %v1207 = vadd.f32 %v1187, %v1200
        %v1208 = vadd.f32 %v1188, %v1202
        %s1209 = sld [smem:[#allocation7 + $0x2d]]
        %v1210 = vstv %s1209
        %v1211 = vmul.f32 %v383, %v1210
        %v1212 = vmul.f32 %v379, %v1210
        %v1213 = vmul.f32 %v384, %v1210
        %1217 = vrot.lane.b32.xlu0 %v1211, 125
        %v1218 = vpop.permute.xlu0 %1217
        %1219 = vrot.lane.b32.xlu0 %v1212, 125
        %v1220 = vpop.permute.xlu0 %1219
        %1221 = vrot.lane.b32.xlu0 %v1213, 125
        %v1222 = vpop.permute.xlu0 %1221
        %v1226 = vadd.f32 %v1206, %v1218
        %v1227 = vadd.f32 %v1207, %v1220
        %v1228 = vadd.f32 %v1208, %v1222
        %s1229 = sld [smem:[#allocation7 + $0x2e]]
        %v1230 = vstv %s1229
        %v1231 = vmul.f32 %v383, %v1230
        %v1232 = vmul.f32 %v379, %v1230
        %v1233 = vmul.f32 %v384, %v1230
        %1237 = vrot.lane.b32.xlu0 %v1231, 124
        %v1238 = vpop.permute.xlu0 %1237
        %1239 = vrot.lane.b32.xlu0 %v1232, 124
        %v1240 = vpop.permute.xlu0 %1239
        %1241 = vrot.lane.b32.xlu0 %v1233, 124
        %v1242 = vpop.permute.xlu0 %1241
        %v1246 = vadd.f32 %v1226, %v1238
        %v1247 = vadd.f32 %v1227, %v1240
        %v1248 = vadd.f32 %v1228, %v1242
        %s1249 = sld [smem:[#allocation7 + $0x2f]]
        %v1250 = vstv %s1249
        %v1251 = vmul.f32 %v383, %v1250
        %v1252 = vmul.f32 %v379, %v1250
        %v1253 = vmul.f32 %v384, %v1250
        %1257 = vrot.lane.b32.xlu0 %v1251, 123
        %v1258 = vpop.permute.xlu0 %1257
        %1259 = vrot.lane.b32.xlu0 %v1252, 123
        %v1260 = vpop.permute.xlu0 %1259
        %1261 = vrot.lane.b32.xlu0 %v1253, 123
        %v1262 = vpop.permute.xlu0 %1261
        %v1266 = vadd.f32 %v1246, %v1258
        %v1267 = vadd.f32 %v1247, %v1260
        %v1268 = vadd.f32 %v1248, %v1262
        %s1269 = sld [smem:[#allocation7 + $0x30]]
        %v1270 = vstv %s1269
        %v1271 = vmul.f32 %v383, %v1270
        %v1272 = vmul.f32 %v379, %v1270
        %v1273 = vmul.f32 %v384, %v1270
        %1277 = vrot.lane.b32.xlu0 %v1271, 122
        %v1278 = vpop.permute.xlu0 %1277
        %1279 = vrot.lane.b32.xlu0 %v1272, 122
        %v1280 = vpop.permute.xlu0 %1279
        %1281 = vrot.lane.b32.xlu0 %v1273, 122
        %v1282 = vpop.permute.xlu0 %1281
        %v1286 = vadd.f32 %v1266, %v1278
        %v1287 = vadd.f32 %v1267, %v1280
        %v1288 = vadd.f32 %v1268, %v1282
        %vm1292 = vcmask 1041408
        %v1293 = vrot.slane %v1286, 6
        %v1294 = vrot.slane %v1287, 6
        %v1295 = vsel %vm1292, %v1293, %v1294
        %v1296 = vrot.slane %v1288, 6
        %v1297 = vsel %vm1292, %v1294, %v1296
        %v1300 = vadd.f32 %v1162, %v1295
        %v1301 = vadd.f32 %v1163, %v1297
        %1304 = vrot.lane.b32.xlu0 %v255, 3
        %v1305 = vpop.permute.xlu0 %1304
        %1306 = vrot.lane.b32.xlu0 %v256, 3
        %v1307 = vpop.permute.xlu0 %1306
        %v1310 = vsel %vm368, 0.0, %v1305
        %v1311 = vsel %vm368, 0.0, %v1307
        %v1312 = vsel %vm371, %v1310, 0.0
        %v1313 = vsel %vm371, %v1311, 0.0
        %v1316 = vrot.slane %v1312, 5
        %v1317 = vrot.slane %v1313, 5
        %v1318 = vsel %vm376, %v1316, %v1317
        %v1322 = vsel %vm376, 0.0, %v1316
        %v1323 = vsel %vm376, %v1317, 0.0
        %s1324 = sld [smem:[#allocation7 + $0x31]]
        %v1325 = vstv %s1324
        %v1326 = vmul.f32 %v1322, %v1325
        %v1327 = vmul.f32 %v1318, %v1325
        %s1328 = sld [smem:[#allocation7 + $0x32]]
        %v1329 = vstv %s1328
        %v1330 = vmul.f32 %v1322, %v1329
        %v1331 = vmul.f32 %v1318, %v1329
        %1334 = vrot.lane.b32.xlu0 %v1330, 127
        %v1335 = vpop.permute.xlu0 %1334
        %1336 = vrot.lane.b32.xlu0 %v1331, 127
        %v1337 = vpop.permute.xlu0 %1336
        %v1340 = vadd.f32 %v1326, %v1335
        %v1341 = vadd.f32 %v1327, %v1337
        %s1342 = sld [smem:[#allocation7 + $0x33]]
        %v1343 = vstv %s1342
        %v1344 = vmul.f32 %v1322, %v1343
        %v1345 = vmul.f32 %v1318, %v1343
        %1348 = vrot.lane.b32.xlu0 %v1344, 126
        %v1349 = vpop.permute.xlu0 %1348
        %1350 = vrot.lane.b32.xlu0 %v1345, 126
        %v1351 = vpop.permute.xlu0 %1350
        %v1354 = vadd.f32 %v1340, %v1349
        %v1355 = vadd.f32 %v1341, %v1351
        %s1356 = sld [smem:[#allocation7 + $0x34]]
        %v1357 = vstv %s1356
        %v1358 = vmul.f32 %v1322, %v1357
        %v1359 = vmul.f32 %v1318, %v1357
        %1362 = vrot.lane.b32.xlu0 %v1358, 125
        %v1363 = vpop.permute.xlu0 %1362
        %1364 = vrot.lane.b32.xlu0 %v1359, 125
        %v1365 = vpop.permute.xlu0 %1364
        %v1368 = vadd.f32 %v1354, %v1363
        %v1369 = vadd.f32 %v1355, %v1365
        %s1370 = sld [smem:[#allocation7 + $0x35]]
        %v1371 = vstv %s1370
        %v1372 = vmul.f32 %v1322, %v1371
        %v1373 = vmul.f32 %v1318, %v1371
        %1376 = vrot.lane.b32.xlu0 %v1372, 124
        %v1377 = vpop.permute.xlu0 %1376
        %1378 = vrot.lane.b32.xlu0 %v1373, 124
        %v1379 = vpop.permute.xlu0 %1378
        %v1382 = vadd.f32 %v1368, %v1377
        %v1383 = vadd.f32 %v1369, %v1379
        %s1384 = sld [smem:[#allocation7 + $0x36]]
        %v1385 = vstv %s1384
        %v1386 = vmul.f32 %v1322, %v1385
        %v1387 = vmul.f32 %v1318, %v1385
        %1390 = vrot.lane.b32.xlu0 %v1386, 123
        %v1391 = vpop.permute.xlu0 %1390
        %1392 = vrot.lane.b32.xlu0 %v1387, 123
        %v1393 = vpop.permute.xlu0 %1392
        %v1396 = vadd.f32 %v1382, %v1391
        %v1397 = vadd.f32 %v1383, %v1393
        %s1398 = sld [smem:[#allocation7 + $0x37]]
        %v1399 = vstv %s1398
        %v1400 = vmul.f32 %v1322, %v1399
        %v1401 = vmul.f32 %v1318, %v1399
        %1404 = vrot.lane.b32.xlu0 %v1400, 122
        %v1405 = vpop.permute.xlu0 %1404
        %1406 = vrot.lane.b32.xlu0 %v1401, 122
        %v1407 = vpop.permute.xlu0 %1406
        %v1410 = vadd.f32 %v1396, %v1405
        %v1411 = vadd.f32 %v1397, %v1407
        %v1412 = vadd.f32 %v1300, %v1410
        %v1413 = vadd.f32 %v1301, %v1411
        %s1414 = sld [smem:[#allocation7 + $0x38]]
        %v1415 = vstv %s1414
        %v1416 = vmul.f32 %v1322, %v1415
        %v1417 = vmul.f32 %v1318, %v1415
        %v1418 = vmul.f32 %v1323, %v1415
        %s1419 = sld [smem:[#allocation7 + $0x39]]
        %v1420 = vstv %s1419
        %v1421 = vmul.f32 %v1322, %v1420
        %v1422 = vmul.f32 %v1318, %v1420
        %v1423 = vmul.f32 %v1323, %v1420
        %1427 = vrot.lane.b32.xlu0 %v1421, 127
        %v1428 = vpop.permute.xlu0 %1427
        %1429 = vrot.lane.b32.xlu0 %v1422, 127
        %v1430 = vpop.permute.xlu0 %1429
        %1431 = vrot.lane.b32.xlu0 %v1423, 127
        %v1432 = vpop.permute.xlu0 %1431
        %v1436 = vadd.f32 %v1416, %v1428
        %v1437 = vadd.f32 %v1417, %v1430
        %v1438 = vadd.f32 %v1418, %v1432
        %s1439 = sld [smem:[#allocation7 + $0x3a]]
        %v1440 = vstv %s1439
        %v1441 = vmul.f32 %v1322, %v1440
        %v1442 = vmul.f32 %v1318, %v1440
        %v1443 = vmul.f32 %v1323, %v1440
        %1447 = vrot.lane.b32.xlu0 %v1441, 126
        %v1448 = vpop.permute.xlu0 %1447
        %1449 = vrot.lane.b32.xlu0 %v1442, 126
        %v1450 = vpop.permute.xlu0 %1449
        %1451 = vrot.lane.b32.xlu0 %v1443, 126
        %v1452 = vpop.permute.xlu0 %1451
        %v1456 = vadd.f32 %v1436, %v1448
        %v1457 = vadd.f32 %v1437, %v1450
        %v1458 = vadd.f32 %v1438, %v1452
        %s1459 = sld [smem:[#allocation7 + $0x3b]]
        %v1460 = vstv %s1459
        %v1461 = vmul.f32 %v1322, %v1460
        %v1462 = vmul.f32 %v1318, %v1460
        %v1463 = vmul.f32 %v1323, %v1460
        %1467 = vrot.lane.b32.xlu0 %v1461, 125
        %v1468 = vpop.permute.xlu0 %1467
        %1469 = vrot.lane.b32.xlu0 %v1462, 125
        %v1470 = vpop.permute.xlu0 %1469
        %1471 = vrot.lane.b32.xlu0 %v1463, 125
        %v1472 = vpop.permute.xlu0 %1471
        %v1476 = vadd.f32 %v1456, %v1468
        %v1477 = vadd.f32 %v1457, %v1470
        %v1478 = vadd.f32 %v1458, %v1472
        %s1479 = sld [smem:[#allocation7 + $0x3c]]
        %v1480 = vstv %s1479
        %v1481 = vmul.f32 %v1322, %v1480
        %v1482 = vmul.f32 %v1318, %v1480
        %v1483 = vmul.f32 %v1323, %v1480
        %1487 = vrot.lane.b32.xlu0 %v1481, 124
        %v1488 = vpop.permute.xlu0 %1487
        %1489 = vrot.lane.b32.xlu0 %v1482, 124
        %v1490 = vpop.permute.xlu0 %1489
        %1491 = vrot.lane.b32.xlu0 %v1483, 124
        %v1492 = vpop.permute.xlu0 %1491
        %v1496 = vadd.f32 %v1476, %v1488
        %v1497 = vadd.f32 %v1477, %v1490
        %v1498 = vadd.f32 %v1478, %v1492
        %s1499 = sld [smem:[#allocation7 + $0x3d]]
        %v1500 = vstv %s1499
        %v1501 = vmul.f32 %v1322, %v1500
        %v1502 = vmul.f32 %v1318, %v1500
        %v1503 = vmul.f32 %v1323, %v1500
        %1507 = vrot.lane.b32.xlu0 %v1501, 123
        %v1508 = vpop.permute.xlu0 %1507
        %1509 = vrot.lane.b32.xlu0 %v1502, 123
        %v1510 = vpop.permute.xlu0 %1509
        %1511 = vrot.lane.b32.xlu0 %v1503, 123
        %v1512 = vpop.permute.xlu0 %1511
        %v1516 = vadd.f32 %v1496, %v1508
        %v1517 = vadd.f32 %v1497, %v1510
        %v1518 = vadd.f32 %v1498, %v1512
        %s1519 = sld [smem:[#allocation7 + $0x3e]]
        %v1520 = vstv %s1519
        %v1521 = vmul.f32 %v1322, %v1520
        %v1522 = vmul.f32 %v1318, %v1520
        %v1523 = vmul.f32 %v1323, %v1520
        %1527 = vrot.lane.b32.xlu0 %v1521, 122
        %v1528 = vpop.permute.xlu0 %1527
        %1529 = vrot.lane.b32.xlu0 %v1522, 122
        %v1530 = vpop.permute.xlu0 %1529
        %1531 = vrot.lane.b32.xlu0 %v1523, 122
        %v1532 = vpop.permute.xlu0 %1531
        %v1536 = vadd.f32 %v1516, %v1528
        %v1537 = vadd.f32 %v1517, %v1530
        %v1538 = vadd.f32 %v1518, %v1532
        %v1542 = vrot.slane %v1536, 1
        %v1543 = vrot.slane %v1537, 1
        %v1544 = vsel %vm603, %v1542, %v1543
        %v1545 = vrot.slane %v1538, 1
        %v1546 = vsel %vm603, %v1543, %v1545
        %v1549 = vadd.f32 %v1412, %v1544
        %v1550 = vadd.f32 %v1413, %v1546
        %s1551 = sld [smem:[#allocation7 + $0x3f]]
        %v1552 = vstv %s1551
        %v1553 = vmul.f32 %v1322, %v1552
        %v1554 = vmul.f32 %v1318, %v1552
        %v1555 = vmul.f32 %v1323, %v1552
        %s1556 = sld [smem:[#allocation7 + $0x40]]
        %v1557 = vstv %s1556
        %v1558 = vmul.f32 %v1322, %v1557
        %v1559 = vmul.f32 %v1318, %v1557
        %v1560 = vmul.f32 %v1323, %v1557
        %1564 = vrot.lane.b32.xlu0 %v1558, 127
        %v1565 = vpop.permute.xlu0 %1564
        %1566 = vrot.lane.b32.xlu0 %v1559, 127
        %v1567 = vpop.permute.xlu0 %1566
        %1568 = vrot.lane.b32.xlu0 %v1560, 127
        %v1569 = vpop.permute.xlu0 %1568
        %v1573 = vadd.f32 %v1553, %v1565
        %v1574 = vadd.f32 %v1554, %v1567
        %v1575 = vadd.f32 %v1555, %v1569
        %s1576 = sld [smem:[#allocation7 + $0x41]]
        %v1577 = vstv %s1576
        %v1578 = vmul.f32 %v1322, %v1577
        %v1579 = vmul.f32 %v1318, %v1577
        %v1580 = vmul.f32 %v1323, %v1577
        %1584 = vrot.lane.b32.xlu0 %v1578, 126
        %v1585 = vpop.permute.xlu0 %1584
        %1586 = vrot.lane.b32.xlu0 %v1579, 126
        %v1587 = vpop.permute.xlu0 %1586
        %1588 = vrot.lane.b32.xlu0 %v1580, 126
        %v1589 = vpop.permute.xlu0 %1588
        %v1593 = vadd.f32 %v1573, %v1585
        %v1594 = vadd.f32 %v1574, %v1587
        %v1595 = vadd.f32 %v1575, %v1589
        %s1596 = sld [smem:[#allocation7 + $0x42]]
        %v1597 = vstv %s1596
        %v1598 = vmul.f32 %v1322, %v1597
        %v1599 = vmul.f32 %v1318, %v1597
        %v1600 = vmul.f32 %v1323, %v1597
        %1604 = vrot.lane.b32.xlu0 %v1598, 125
        %v1605 = vpop.permute.xlu0 %1604
        %1606 = vrot.lane.b32.xlu0 %v1599, 125
        %v1607 = vpop.permute.xlu0 %1606
        %1608 = vrot.lane.b32.xlu0 %v1600, 125
        %v1609 = vpop.permute.xlu0 %1608
        %v1613 = vadd.f32 %v1593, %v1605
        %v1614 = vadd.f32 %v1594, %v1607
        %v1615 = vadd.f32 %v1595, %v1609
        %s1616 = sld [smem:[#allocation7 + $0x43]]
        %v1617 = vstv %s1616
        %v1618 = vmul.f32 %v1322, %v1617
        %v1619 = vmul.f32 %v1318, %v1617
        %v1620 = vmul.f32 %v1323, %v1617
        %1624 = vrot.lane.b32.xlu0 %v1618, 124
        %v1625 = vpop.permute.xlu0 %1624
        %1626 = vrot.lane.b32.xlu0 %v1619, 124
        %v1627 = vpop.permute.xlu0 %1626
        %1628 = vrot.lane.b32.xlu0 %v1620, 124
        %v1629 = vpop.permute.xlu0 %1628
        %v1633 = vadd.f32 %v1613, %v1625
        %v1634 = vadd.f32 %v1614, %v1627
        %v1635 = vadd.f32 %v1615, %v1629
        %s1636 = sld [smem:[#allocation7 + $0x44]]
        %v1637 = vstv %s1636
        %v1638 = vmul.f32 %v1322, %v1637
        %v1639 = vmul.f32 %v1318, %v1637
        %v1640 = vmul.f32 %v1323, %v1637
        %1644 = vrot.lane.b32.xlu0 %v1638, 123
        %v1645 = vpop.permute.xlu0 %1644
        %1646 = vrot.lane.b32.xlu0 %v1639, 123
        %v1647 = vpop.permute.xlu0 %1646
        %1648 = vrot.lane.b32.xlu0 %v1640, 123
        %v1649 = vpop.permute.xlu0 %1648
        %v1653 = vadd.f32 %v1633, %v1645
        %v1654 = vadd.f32 %v1634, %v1647
        %v1655 = vadd.f32 %v1635, %v1649
        %s1656 = sld [smem:[#allocation7 + $0x45]]
        %v1657 = vstv %s1656
        %v1658 = vmul.f32 %v1322, %v1657
        %v1659 = vmul.f32 %v1318, %v1657
        %v1660 = vmul.f32 %v1323, %v1657
        %1664 = vrot.lane.b32.xlu0 %v1658, 122
        %v1665 = vpop.permute.xlu0 %1664
        %1666 = vrot.lane.b32.xlu0 %v1659, 122
        %v1667 = vpop.permute.xlu0 %1666
        %1668 = vrot.lane.b32.xlu0 %v1660, 122
        %v1669 = vpop.permute.xlu0 %1668
        %v1673 = vadd.f32 %v1653, %v1665
        %v1674 = vadd.f32 %v1654, %v1667
        %v1675 = vadd.f32 %v1655, %v1669
        %v1679 = vrot.slane %v1673, 2
        %v1680 = vrot.slane %v1674, 2
        %v1681 = vsel %vm741, %v1679, %v1680
        %v1682 = vrot.slane %v1675, 2
        %v1683 = vsel %vm741, %v1680, %v1682
        %v1686 = vadd.f32 %v1549, %v1681
        %v1687 = vadd.f32 %v1550, %v1683
        %s1688 = sld [smem:[#allocation7 + $0x46]]
        %v1689 = vstv %s1688
        %v1690 = vmul.f32 %v1322, %v1689
        %v1691 = vmul.f32 %v1318, %v1689
        %v1692 = vmul.f32 %v1323, %v1689
        %s1693 = sld [smem:[#allocation7 + $0x47]]
        %v1694 = vstv %s1693
        %v1695 = vmul.f32 %v1322, %v1694
        %v1696 = vmul.f32 %v1318, %v1694
        %v1697 = vmul.f32 %v1323, %v1694
        %1701 = vrot.lane.b32.xlu0 %v1695, 127
        %v1702 = vpop.permute.xlu0 %1701
        %1703 = vrot.lane.b32.xlu0 %v1696, 127
        %v1704 = vpop.permute.xlu0 %1703
        %1705 = vrot.lane.b32.xlu0 %v1697, 127
        %v1706 = vpop.permute.xlu0 %1705
        %v1710 = vadd.f32 %v1690, %v1702
        %v1711 = vadd.f32 %v1691, %v1704
        %v1712 = vadd.f32 %v1692, %v1706
        %s1713 = sld [smem:[#allocation7 + $0x48]]
        %v1714 = vstv %s1713
        %v1715 = vmul.f32 %v1322, %v1714
        %v1716 = vmul.f32 %v1318, %v1714
        %v1717 = vmul.f32 %v1323, %v1714
        %1721 = vrot.lane.b32.xlu0 %v1715, 126
        %v1722 = vpop.permute.xlu0 %1721
        %1723 = vrot.lane.b32.xlu0 %v1716, 126
        %v1724 = vpop.permute.xlu0 %1723
        %1725 = vrot.lane.b32.xlu0 %v1717, 126
        %v1726 = vpop.permute.xlu0 %1725
        %v1730 = vadd.f32 %v1710, %v1722
        %v1731 = vadd.f32 %v1711, %v1724
        %v1732 = vadd.f32 %v1712, %v1726
        %s1733 = sld [smem:[#allocation7 + $0x49]]
        %v1734 = vstv %s1733
        %v1735 = vmul.f32 %v1322, %v1734
        %v1736 = vmul.f32 %v1318, %v1734
        %v1737 = vmul.f32 %v1323, %v1734
        %1741 = vrot.lane.b32.xlu0 %v1735, 125
        %v1742 = vpop.permute.xlu0 %1741
        %1743 = vrot.lane.b32.xlu0 %v1736, 125
        %v1744 = vpop.permute.xlu0 %1743
        %1745 = vrot.lane.b32.xlu0 %v1737, 125
        %v1746 = vpop.permute.xlu0 %1745
        %v1750 = vadd.f32 %v1730, %v1742
        %v1751 = vadd.f32 %v1731, %v1744
        %v1752 = vadd.f32 %v1732, %v1746
        %s1753 = sld [smem:[#allocation7 + $0x4a]]
        %v1754 = vstv %s1753
        %v1755 = vmul.f32 %v1322, %v1754
        %v1756 = vmul.f32 %v1318, %v1754
        %v1757 = vmul.f32 %v1323, %v1754
        %1761 = vrot.lane.b32.xlu0 %v1755, 124
        %v1762 = vpop.permute.xlu0 %1761
        %1763 = vrot.lane.b32.xlu0 %v1756, 124
        %v1764 = vpop.permute.xlu0 %1763
        %1765 = vrot.lane.b32.xlu0 %v1757, 124
        %v1766 = vpop.permute.xlu0 %1765
        %v1770 = vadd.f32 %v1750, %v1762
        %v1771 = vadd.f32 %v1751, %v1764
        %v1772 = vadd.f32 %v1752, %v1766
        %s1773 = sld [smem:[#allocation7 + $0x4b]]
        %v1774 = vstv %s1773
        %v1775 = vmul.f32 %v1322, %v1774
        %v1776 = vmul.f32 %v1318, %v1774
        %v1777 = vmul.f32 %v1323, %v1774
        %1781 = vrot.lane.b32.xlu0 %v1775, 123
        %v1782 = vpop.permute.xlu0 %1781
        %1783 = vrot.lane.b32.xlu0 %v1776, 123
        %v1784 = vpop.permute.xlu0 %1783
        %1785 = vrot.lane.b32.xlu0 %v1777, 123
        %v1786 = vpop.permute.xlu0 %1785
        %v1790 = vadd.f32 %v1770, %v1782
        %v1791 = vadd.f32 %v1771, %v1784
        %v1792 = vadd.f32 %v1772, %v1786
        %s1793 = sld [smem:[#allocation7 + $0x4c]]
        %v1794 = vstv %s1793
        %v1795 = vmul.f32 %v1322, %v1794
        %v1796 = vmul.f32 %v1318, %v1794
        %v1797 = vmul.f32 %v1323, %v1794
        %1801 = vrot.lane.b32.xlu0 %v1795, 122
        %v1802 = vpop.permute.xlu0 %1801
        %1803 = vrot.lane.b32.xlu0 %v1796, 122
        %v1804 = vpop.permute.xlu0 %1803
        %1805 = vrot.lane.b32.xlu0 %v1797, 122
        %v1806 = vpop.permute.xlu0 %1805
        %v1810 = vadd.f32 %v1790, %v1802
        %v1811 = vadd.f32 %v1791, %v1804
        %v1812 = vadd.f32 %v1792, %v1806
        %v1816 = vrot.slane %v1810, 3
        %v1817 = vrot.slane %v1811, 3
        %v1818 = vsel %vm879, %v1816, %v1817
        %v1819 = vrot.slane %v1812, 3
        %v1820 = vsel %vm879, %v1817, %v1819
        %v1823 = vadd.f32 %v1686, %v1818
        %v1824 = vadd.f32 %v1687, %v1820
        %s1825 = sld [smem:[#allocation7 + $0x4d]]
        %v1826 = vstv %s1825
        %v1827 = vmul.f32 %v1322, %v1826
        %v1828 = vmul.f32 %v1318, %v1826
        %v1829 = vmul.f32 %v1323, %v1826
        %s1830 = sld [smem:[#allocation7 + $0x4e]]
        %v1831 = vstv %s1830
        %v1832 = vmul.f32 %v1322, %v1831
        %v1833 = vmul.f32 %v1318, %v1831
        %v1834 = vmul.f32 %v1323, %v1831
        %1838 = vrot.lane.b32.xlu0 %v1832, 127
        %v1839 = vpop.permute.xlu0 %1838
        %1840 = vrot.lane.b32.xlu0 %v1833, 127
        %v1841 = vpop.permute.xlu0 %1840
        %1842 = vrot.lane.b32.xlu0 %v1834, 127
        %v1843 = vpop.permute.xlu0 %1842
        %v1847 = vadd.f32 %v1827, %v1839
        %v1848 = vadd.f32 %v1828, %v1841
        %v1849 = vadd.f32 %v1829, %v1843
        %s1850 = sld [smem:[#allocation7 + $0x4f]]
        %v1851 = vstv %s1850
        %v1852 = vmul.f32 %v1322, %v1851
        %v1853 = vmul.f32 %v1318, %v1851
        %v1854 = vmul.f32 %v1323, %v1851
        %1858 = vrot.lane.b32.xlu0 %v1852, 126
        %v1859 = vpop.permute.xlu0 %1858
        %1860 = vrot.lane.b32.xlu0 %v1853, 126
        %v1861 = vpop.permute.xlu0 %1860
        %1862 = vrot.lane.b32.xlu0 %v1854, 126
        %v1863 = vpop.permute.xlu0 %1862
        %v1867 = vadd.f32 %v1847, %v1859
        %v1868 = vadd.f32 %v1848, %v1861
        %v1869 = vadd.f32 %v1849, %v1863
        %s1870 = sld [smem:[#allocation7 + $0x50]]
        %v1871 = vstv %s1870
        %v1872 = vmul.f32 %v1322, %v1871
        %v1873 = vmul.f32 %v1318, %v1871
        %v1874 = vmul.f32 %v1323, %v1871
        %1878 = vrot.lane.b32.xlu0 %v1872, 125
        %v1879 = vpop.permute.xlu0 %1878
        %1880 = vrot.lane.b32.xlu0 %v1873, 125
        %v1881 = vpop.permute.xlu0 %1880
        %1882 = vrot.lane.b32.xlu0 %v1874, 125
        %v1883 = vpop.permute.xlu0 %1882
        %v1887 = vadd.f32 %v1867, %v1879
        %v1888 = vadd.f32 %v1868, %v1881
        %v1889 = vadd.f32 %v1869, %v1883
        %s1890 = sld [smem:[#allocation7 + $0x51]]
        %v1891 = vstv %s1890
        %v1892 = vmul.f32 %v1322, %v1891
        %v1893 = vmul.f32 %v1318, %v1891
        %v1894 = vmul.f32 %v1323, %v1891
        %1898 = vrot.lane.b32.xlu0 %v1892, 124
        %v1899 = vpop.permute.xlu0 %1898
        %1900 = vrot.lane.b32.xlu0 %v1893, 124
        %v1901 = vpop.permute.xlu0 %1900
        %1902 = vrot.lane.b32.xlu0 %v1894, 124
        %v1903 = vpop.permute.xlu0 %1902
        %v1907 = vadd.f32 %v1887, %v1899
        %v1908 = vadd.f32 %v1888, %v1901
        %v1909 = vadd.f32 %v1889, %v1903
        %s1910 = sld [smem:[#allocation7 + $0x52]]
        %v1911 = vstv %s1910
        %v1912 = vmul.f32 %v1322, %v1911
        %v1913 = vmul.f32 %v1318, %v1911
        %v1914 = vmul.f32 %v1323, %v1911
        %1918 = vrot.lane.b32.xlu0 %v1912, 123
        %v1919 = vpop.permute.xlu0 %1918
        %1920 = vrot.lane.b32.xlu0 %v1913, 123
        %v1921 = vpop.permute.xlu0 %1920
        %1922 = vrot.lane.b32.xlu0 %v1914, 123
        %v1923 = vpop.permute.xlu0 %1922
        %v1927 = vadd.f32 %v1907, %v1919
        %v1928 = vadd.f32 %v1908, %v1921
        %v1929 = vadd.f32 %v1909, %v1923
        %s1930 = sld [smem:[#allocation7 + $0x53]]
        %v1931 = vstv %s1930
        %v1932 = vmul.f32 %v1322, %v1931
        %v1933 = vmul.f32 %v1318, %v1931
        %v1934 = vmul.f32 %v1323, %v1931
        %1938 = vrot.lane.b32.xlu0 %v1932, 122
        %v1939 = vpop.permute.xlu0 %1938
        %1940 = vrot.lane.b32.xlu0 %v1933, 122
        %v1941 = vpop.permute.xlu0 %1940
        %1942 = vrot.lane.b32.xlu0 %v1934, 122
        %v1943 = vpop.permute.xlu0 %1942
        %v1947 = vadd.f32 %v1927, %v1939
        %v1948 = vadd.f32 %v1928, %v1941
        %v1949 = vadd.f32 %v1929, %v1943
        %v1953 = vrot.slane %v1947, 4
        %v1954 = vrot.slane %v1948, 4
        %v1955 = vsel %vm1017, %v1953, %v1954
        %v1956 = vrot.slane %v1949, 4
        %v1957 = vsel %vm1017, %v1954, %v1956
        %v1960 = vadd.f32 %v1823, %v1955
        %v1961 = vadd.f32 %v1824, %v1957
        %s1962 = sld [smem:[#allocation7 + $0x54]]
        %v1963 = vstv %s1962
        %v1964 = vmul.f32 %v1322, %v1963
        %v1965 = vmul.f32 %v1318, %v1963
        %v1966 = vmul.f32 %v1323, %v1963
        %s1967 = sld [smem:[#allocation7 + $0x55]]
        %v1968 = vstv %s1967
        %v1969 = vmul.f32 %v1322, %v1968
        %v1970 = vmul.f32 %v1318, %v1968
        %v1971 = vmul.f32 %v1323, %v1968
        %1975 = vrot.lane.b32.xlu0 %v1969, 127
        %v1976 = vpop.permute.xlu0 %1975
        %1977 = vrot.lane.b32.xlu0 %v1970, 127
        %v1978 = vpop.permute.xlu0 %1977
        %1979 = vrot.lane.b32.xlu0 %v1971, 127
        %v1980 = vpop.permute.xlu0 %1979
        %v1984 = vadd.f32 %v1964, %v1976
        %v1985 = vadd.f32 %v1965, %v1978
        %v1986 = vadd.f32 %v1966, %v1980
        %s1987 = sld [smem:[#allocation7 + $0x56]]
        %v1988 = vstv %s1987
        %v1989 = vmul.f32 %v1322, %v1988
        %v1990 = vmul.f32 %v1318, %v1988
        %v1991 = vmul.f32 %v1323, %v1988
        %1995 = vrot.lane.b32.xlu0 %v1989, 126
        %v1996 = vpop.permute.xlu0 %1995
        %1997 = vrot.lane.b32.xlu0 %v1990, 126
        %v1998 = vpop.permute.xlu0 %1997
        %1999 = vrot.lane.b32.xlu0 %v1991, 126
        %v2000 = vpop.permute.xlu0 %1999
        %v2004 = vadd.f32 %v1984, %v1996
        %v2005 = vadd.f32 %v1985, %v1998
        %v2006 = vadd.f32 %v1986, %v2000
        %s2007 = sld [smem:[#allocation7 + $0x57]]
        %v2008 = vstv %s2007
        %v2009 = vmul.f32 %v1322, %v2008
        %v2010 = vmul.f32 %v1318, %v2008
        %v2011 = vmul.f32 %v1323, %v2008
        %2015 = vrot.lane.b32.xlu0 %v2009, 125
        %v2016 = vpop.permute.xlu0 %2015
        %2017 = vrot.lane.b32.xlu0 %v2010, 125
        %v2018 = vpop.permute.xlu0 %2017
        %2019 = vrot.lane.b32.xlu0 %v2011, 125
        %v2020 = vpop.permute.xlu0 %2019
        %v2024 = vadd.f32 %v2004, %v2016
        %v2025 = vadd.f32 %v2005, %v2018
        %v2026 = vadd.f32 %v2006, %v2020
        %s2027 = sld [smem:[#allocation7 + $0x58]]
        %v2028 = vstv %s2027
        %v2029 = vmul.f32 %v1322, %v2028
        %v2030 = vmul.f32 %v1318, %v2028
        %v2031 = vmul.f32 %v1323, %v2028
        %2035 = vrot.lane.b32.xlu0 %v2029, 124
        %v2036 = vpop.permute.xlu0 %2035
        %2037 = vrot.lane.b32.xlu0 %v2030, 124
        %v2038 = vpop.permute.xlu0 %2037
        %2039 = vrot.lane.b32.xlu0 %v2031, 124
        %v2040 = vpop.permute.xlu0 %2039
        %v2044 = vadd.f32 %v2024, %v2036
        %v2045 = vadd.f32 %v2025, %v2038
        %v2046 = vadd.f32 %v2026, %v2040
        %s2047 = sld [smem:[#allocation7 + $0x59]]
        %v2048 = vstv %s2047
        %v2049 = vmul.f32 %v1322, %v2048
        %v2050 = vmul.f32 %v1318, %v2048
        %v2051 = vmul.f32 %v1323, %v2048
        %2055 = vrot.lane.b32.xlu0 %v2049, 123
        %v2056 = vpop.permute.xlu0 %2055
        %2057 = vrot.lane.b32.xlu0 %v2050, 123
        %v2058 = vpop.permute.xlu0 %2057
        %2059 = vrot.lane.b32.xlu0 %v2051, 123
        %v2060 = vpop.permute.xlu0 %2059
        %v2064 = vadd.f32 %v2044, %v2056
        %v2065 = vadd.f32 %v2045, %v2058
        %v2066 = vadd.f32 %v2046, %v2060
        %s2067 = sld [smem:[#allocation7 + $0x5a]]
        %v2068 = vstv %s2067
        %v2069 = vmul.f32 %v1322, %v2068
        %v2070 = vmul.f32 %v1318, %v2068
        %v2071 = vmul.f32 %v1323, %v2068
        %2075 = vrot.lane.b32.xlu0 %v2069, 122
        %v2076 = vpop.permute.xlu0 %2075
        %2077 = vrot.lane.b32.xlu0 %v2070, 122
        %v2078 = vpop.permute.xlu0 %2077
        %2079 = vrot.lane.b32.xlu0 %v2071, 122
        %v2080 = vpop.permute.xlu0 %2079
        %v2084 = vadd.f32 %v2064, %v2076
        %v2085 = vadd.f32 %v2065, %v2078
        %v2086 = vadd.f32 %v2066, %v2080
        %v2090 = vrot.slane %v2084, 5
        %v2091 = vrot.slane %v2085, 5
        %v2092 = vsel %vm376, %v2090, %v2091
        %v2093 = vrot.slane %v2086, 5
        %v2094 = vsel %vm376, %v2091, %v2093
        %v2097 = vadd.f32 %v1960, %v2092
        %v2098 = vadd.f32 %v1961, %v2094
        %s2099 = sld [smem:[#allocation7 + $0x5b]]
        %v2100 = vstv %s2099
        %v2101 = vmul.f32 %v1322, %v2100
        %v2102 = vmul.f32 %v1318, %v2100
        %v2103 = vmul.f32 %v1323, %v2100
        %s2104 = sld [smem:[#allocation7 + $0x5c]]
        %v2105 = vstv %s2104
        %v2106 = vmul.f32 %v1322, %v2105
        %v2107 = vmul.f32 %v1318, %v2105
        %v2108 = vmul.f32 %v1323, %v2105
        %2112 = vrot.lane.b32.xlu0 %v2106, 127
        %v2113 = vpop.permute.xlu0 %2112
        %2114 = vrot.lane.b32.xlu0 %v2107, 127
        %v2115 = vpop.permute.xlu0 %2114
        %2116 = vrot.lane.b32.xlu0 %v2108, 127
        %v2117 = vpop.permute.xlu0 %2116
        %v2121 = vadd.f32 %v2101, %v2113
        %v2122 = vadd.f32 %v2102, %v2115
        %v2123 = vadd.f32 %v2103, %v2117
        %s2124 = sld [smem:[#allocation7 + $0x5d]]
        %v2125 = vstv %s2124
        %v2126 = vmul.f32 %v1322, %v2125
        %v2127 = vmul.f32 %v1318, %v2125
        %v2128 = vmul.f32 %v1323, %v2125
        %2132 = vrot.lane.b32.xlu0 %v2126, 126
        %v2133 = vpop.permute.xlu0 %2132
        %2134 = vrot.lane.b32.xlu0 %v2127, 126
        %v2135 = vpop.permute.xlu0 %2134
        %2136 = vrot.lane.b32.xlu0 %v2128, 126
        %v2137 = vpop.permute.xlu0 %2136
        %v2141 = vadd.f32 %v2121, %v2133
        %v2142 = vadd.f32 %v2122, %v2135
        %v2143 = vadd.f32 %v2123, %v2137
        %s2144 = sld [smem:[#allocation7 + $0x5e]]
        %v2145 = vstv %s2144
        %v2146 = vmul.f32 %v1322, %v2145
        %v2147 = vmul.f32 %v1318, %v2145
        %v2148 = vmul.f32 %v1323, %v2145
        %2152 = vrot.lane.b32.xlu0 %v2146, 125
        %v2153 = vpop.permute.xlu0 %2152
        %2154 = vrot.lane.b32.xlu0 %v2147, 125
        %v2155 = vpop.permute.xlu0 %2154
        %2156 = vrot.lane.b32.xlu0 %v2148, 125
        %v2157 = vpop.permute.xlu0 %2156
        %v2161 = vadd.f32 %v2141, %v2153
        %v2162 = vadd.f32 %v2142, %v2155
        %v2163 = vadd.f32 %v2143, %v2157
        %s2164 = sld [smem:[#allocation7 + $0x5f]]
        %v2165 = vstv %s2164
        %v2166 = vmul.f32 %v1322, %v2165
        %v2167 = vmul.f32 %v1318, %v2165
        %v2168 = vmul.f32 %v1323, %v2165
        %2172 = vrot.lane.b32.xlu0 %v2166, 124
        %v2173 = vpop.permute.xlu0 %2172
        %2174 = vrot.lane.b32.xlu0 %v2167, 124
        %v2175 = vpop.permute.xlu0 %2174
        %2176 = vrot.lane.b32.xlu0 %v2168, 124
        %v2177 = vpop.permute.xlu0 %2176
        %v2181 = vadd.f32 %v2161, %v2173
        %v2182 = vadd.f32 %v2162, %v2175
        %v2183 = vadd.f32 %v2163, %v2177
        %s2184 = sld [smem:[#allocation7 + $0x60]]
        %v2185 = vstv %s2184
        %v2186 = vmul.f32 %v1322, %v2185
        %v2187 = vmul.f32 %v1318, %v2185
        %v2188 = vmul.f32 %v1323, %v2185
        %2192 = vrot.lane.b32.xlu0 %v2186, 123
        %v2193 = vpop.permute.xlu0 %2192
        %2194 = vrot.lane.b32.xlu0 %v2187, 123
        %v2195 = vpop.permute.xlu0 %2194
        %2196 = vrot.lane.b32.xlu0 %v2188, 123
        %v2197 = vpop.permute.xlu0 %2196
        %v2201 = vadd.f32 %v2181, %v2193
        %v2202 = vadd.f32 %v2182, %v2195
        %v2203 = vadd.f32 %v2183, %v2197
        %s2204 = sld [smem:[#allocation7 + $0x61]]
        %v2205 = vstv %s2204
        %v2206 = vmul.f32 %v1322, %v2205
        %v2207 = vmul.f32 %v1318, %v2205
        %v2208 = vmul.f32 %v1323, %v2205
        %2212 = vrot.lane.b32.xlu0 %v2206, 122
        %v2213 = vpop.permute.xlu0 %2212
        %2214 = vrot.lane.b32.xlu0 %v2207, 122
        %v2215 = vpop.permute.xlu0 %2214
        %2216 = vrot.lane.b32.xlu0 %v2208, 122
        %v2217 = vpop.permute.xlu0 %2216
        %v2221 = vadd.f32 %v2201, %v2213
        %v2222 = vadd.f32 %v2202, %v2215
        %v2223 = vadd.f32 %v2203, %v2217
        %v2227 = vrot.slane %v2221, 6
        %v2228 = vrot.slane %v2222, 6
        %v2229 = vsel %vm1292, %v2227, %v2228
        %v2230 = vrot.slane %v2223, 6
        %v2231 = vsel %vm1292, %v2228, %v2230
        %v2234 = vadd.f32 %v2097, %v2229
        %v2235 = vadd.f32 %v2098, %v2231
        %v2236 = vxor.u32 %v2234, 2147483648
        %v2237 = vxor.u32 %v2235, 2147483648
        %v2238 = vmul.f32 %v2236, 1.442695
        %v2239 = vpow.pop %v2238
        %v2240 = vmul.f32 %v2237, 1.442695
        %v2241 = vpow.pop %v2240
        %v2242 = vadd.f32 %v2239, 1.0
        %v2243 = vadd.f32 %v2241, 1.0
        %v2244 = vrcp.pop %v2242
        %v2245 = vmul.f32 %v2242, %v2244
        %v2246 = vsub.f32 1.0, %v2245
        %v2247 = vmul.f32 %v2244, %v2246
        %v2248 = vadd.f32 %v2244, %v2247
        %vm2249 = vweird.f32 %v2242
        %vm2250 = vweird.f32 %v2244
        %vm2251 = vmor %vm2249, %vm2250
        %v2252 = vsel %vm2251, %v2244, %v2248
        %v2253 = vand.u32 2147483647, %v2242
        %vm2254 = vcmp.eq.f32.partialorder %v2253, 8.507059e+37
        %v2255 = vand.u32 %v2242, 2147483648
        %v2256 = vor.u32 1.1754944e-38, %v2255
        %v2257 = vsel %vm2254, %v2256, %v2252
        %v2258 = vmul.f32 1.0, %v2257
        %v2259 = vrcp.pop %v2243
        %v2260 = vmul.f32 %v2243, %v2259
        %v2261 = vsub.f32 1.0, %v2260
        %v2262 = vmul.f32 %v2259, %v2261
        %v2263 = vadd.f32 %v2259, %v2262
        %vm2264 = vweird.f32 %v2243
        %vm2265 = vweird.f32 %v2259
        %vm2266 = vmor %vm2264, %vm2265
        %v2267 = vsel %vm2266, %v2259, %v2263
        %v2268 = vand.u32 2147483647, %v2243
        %vm2269 = vcmp.eq.f32.partialorder %v2268, 8.507059e+37
        %v2270 = vand.u32 %v2243, 2147483648
        %v2271 = vor.u32 1.1754944e-38, %v2270
        %v2272 = vsel %vm2269, %v2271, %v2267
        %v2273 = vmul.f32 1.0, %v2272
        %v2274 = vmul.f32 %v2258, 0.33333334
        %v2275 = vmul.f32 %v2273, 0.33333334
        %s2276 = sld [smem:[#allocation8 + $0x1]]
        %v2277 = vstv %s2276
        %v2278 = vadd.f32 %v2277, 0.0
        %vm2283 = vcmask 1041409
        %v2284 = vsel %vm2283, %v270, %v263
        %vm2285 = vcmask 1042434
        %v2286 = vsel %vm2285, %v277, %v2284
        %vm2287 = vcmask 1043459
        %v2288 = vsel %vm2287, %v284, %v2286
        %2289 = vrot.lane.b32.xlu0 %v2288, 3
        %v2290 = vpop.permute.xlu0 %2289
        %v2292 = vsel %vm368, 0.0, %v2290
        %v2293 = vsel %vm371, %v2292, 0.0
        %v2295 = vrot.slane %v2293, 5
        %v2297 = vsel %vm376, 0.0, %v2295
        %v2298 = vsel %vm603, %v2297, 0.0
        %s2299 = sld [smem:[#allocation7 + $0x62]]
        %v2300 = vstv %s2299
        %v2301 = vmul.f32 %v2298, %v2300
        %s2302 = sld [smem:[#allocation7 + $0x63]]
        %v2303 = vstv %s2302
        %v2304 = vmul.f32 %v2298, %v2303
        %2306 = vrot.lane.b32.xlu0 %v2304, 127
        %v2307 = vpop.permute.xlu0 %2306
        %v2309 = vadd.f32 %v2301, %v2307
        %s2310 = sld [smem:[#allocation7 + $0x64]]
        %v2311 = vstv %s2310
        %v2312 = vmul.f32 %v2298, %v2311
        %2314 = vrot.lane.b32.xlu0 %v2312, 126
        %v2315 = vpop.permute.xlu0 %2314
        %v2317 = vadd.f32 %v2309, %v2315
        %s2318 = sld [smem:[#allocation7 + $0x65]]
        %v2319 = vstv %s2318
        %v2320 = vmul.f32 %v2298, %v2319
        %2322 = vrot.lane.b32.xlu0 %v2320, 125
        %v2323 = vpop.permute.xlu0 %2322
        %v2325 = vadd.f32 %v2317, %v2323
        %s2326 = sld [smem:[#allocation7 + $0x66]]
        %v2327 = vstv %s2326
        %v2328 = vmul.f32 %v2298, %v2327
        %2330 = vrot.lane.b32.xlu0 %v2328, 124
        %v2331 = vpop.permute.xlu0 %2330
        %v2333 = vadd.f32 %v2325, %v2331
        %s2334 = sld [smem:[#allocation7 + $0x67]]
        %v2335 = vstv %s2334
        %v2336 = vmul.f32 %v2298, %v2335
        %2338 = vrot.lane.b32.xlu0 %v2336, 123
        %v2339 = vpop.permute.xlu0 %2338
        %v2341 = vadd.f32 %v2333, %v2339
        %s2342 = sld [smem:[#allocation7 + $0x68]]
        %v2343 = vstv %s2342
        %v2344 = vmul.f32 %v2298, %v2343
        %2346 = vrot.lane.b32.xlu0 %v2344, 122
        %v2347 = vpop.permute.xlu0 %2346
        %v2349 = vadd.f32 %v2341, %v2347
        %v2350 = vadd.f32 %v2278, %v2349
        %s2351 = sld [smem:[#allocation7 + $0x69]]
        %v2352 = vstv %s2351
        %v2353 = vmul.f32 %v2298, %v2352
        %s2354 = sld [smem:[#allocation7 + $0x6a]]
        %v2355 = vstv %s2354
        %v2356 = vmul.f32 %v2298, %v2355
        %2358 = vrot.lane.b32.xlu0 %v2356, 127
        %v2359 = vpop.permute.xlu0 %2358
        %v2361 = vadd.f32 %v2353, %v2359
        %s2362 = sld [smem:[#allocation7 + $0x6b]]
        %v2363 = vstv %s2362
        %v2364 = vmul.f32 %v2298, %v2363
        %2366 = vrot.lane.b32.xlu0 %v2364, 126
        %v2367 = vpop.permute.xlu0 %2366
        %v2369 = vadd.f32 %v2361, %v2367
        %s2370 = sld [smem:[#allocation7 + $0x6c]]
        %v2371 = vstv %s2370
        %v2372 = vmul.f32 %v2298, %v2371
        %2374 = vrot.lane.b32.xlu0 %v2372, 125
        %v2375 = vpop.permute.xlu0 %2374
        %v2377 = vadd.f32 %v2369, %v2375
        %s2378 = sld [smem:[#allocation7 + $0x6d]]
        %v2379 = vstv %s2378
        %v2380 = vmul.f32 %v2298, %v2379
        %2382 = vrot.lane.b32.xlu0 %v2380, 124
        %v2383 = vpop.permute.xlu0 %2382
        %v2385 = vadd.f32 %v2377, %v2383
        %s2386 = sld [smem:[#allocation7 + $0x6e]]
        %v2387 = vstv %s2386
        %v2388 = vmul.f32 %v2298, %v2387
        %2390 = vrot.lane.b32.xlu0 %v2388, 123
        %v2391 = vpop.permute.xlu0 %2390
        %v2393 = vadd.f32 %v2385, %v2391
        %s2394 = sld [smem:[#allocation7 + $0x6f]]
        %v2395 = vstv %s2394
        %v2396 = vmul.f32 %v2298, %v2395
        %2398 = vrot.lane.b32.xlu0 %v2396, 122
        %v2399 = vpop.permute.xlu0 %2398
        %v2401 = vadd.f32 %v2393, %v2399
        %v2403 = vrot.slane %v2401, 1
        %v2405 = vadd.f32 %v2350, %v2403
        %s2406 = sld [smem:[#allocation7 + $0x70]]
        %v2407 = vstv %s2406
        %v2408 = vmul.f32 %v2298, %v2407
        %s2409 = sld [smem:[#allocation7 + $0x71]]
        %v2410 = vstv %s2409
        %v2411 = vmul.f32 %v2298, %v2410
        %2413 = vrot.lane.b32.xlu0 %v2411, 127
        %v2414 = vpop.permute.xlu0 %2413
        %v2416 = vadd.f32 %v2408, %v2414
        %s2417 = sld [smem:[#allocation7 + $0x72]]
        %v2418 = vstv %s2417
        %v2419 = vmul.f32 %v2298, %v2418
        %2421 = vrot.lane.b32.xlu0 %v2419, 126
        %v2422 = vpop.permute.xlu0 %2421
        %v2424 = vadd.f32 %v2416, %v2422
        %s2425 = sld [smem:[#allocation7 + $0x73]]
        %v2426 = vstv %s2425
        %v2427 = vmul.f32 %v2298, %v2426
        %2429 = vrot.lane.b32.xlu0 %v2427, 125
        %v2430 = vpop.permute.xlu0 %2429
        %v2432 = vadd.f32 %v2424, %v2430
        %s2433 = sld [smem:[#allocation7 + $0x74]]
        %v2434 = vstv %s2433
        %v2435 = vmul.f32 %v2298, %v2434
        %2437 = vrot.lane.b32.xlu0 %v2435, 124
        %v2438 = vpop.permute.xlu0 %2437
        %v2440 = vadd.f32 %v2432, %v2438
        %s2441 = sld [smem:[#allocation7 + $0x75]]
        %v2442 = vstv %s2441
        %v2443 = vmul.f32 %v2298, %v2442
        %2445 = vrot.lane.b32.xlu0 %v2443, 123
        %v2446 = vpop.permute.xlu0 %2445
        %v2448 = vadd.f32 %v2440, %v2446
        %s2449 = sld [smem:[#allocation7 + $0x76]]
        %v2450 = vstv %s2449
        %v2451 = vmul.f32 %v2298, %v2450
        %2453 = vrot.lane.b32.xlu0 %v2451, 122
        %v2454 = vpop.permute.xlu0 %2453
        %v2456 = vadd.f32 %v2448, %v2454
        %v2458 = vrot.slane %v2456, 2
        %v2460 = vadd.f32 %v2405, %v2458
        %s2461 = sld [smem:[#allocation7 + $0x77]]
        %v2462 = vstv %s2461
        %v2463 = vmul.f32 %v2298, %v2462
        %s2464 = sld [smem:[#allocation7 + $0x78]]
        %v2465 = vstv %s2464
        %v2466 = vmul.f32 %v2298, %v2465
        %2468 = vrot.lane.b32.xlu0 %v2466, 127
        %v2469 = vpop.permute.xlu0 %2468
        %v2471 = vadd.f32 %v2463, %v2469
        %s2472 = sld [smem:[#allocation7 + $0x79]]
        %v2473 = vstv %s2472
        %v2474 = vmul.f32 %v2298, %v2473
        %2476 = vrot.lane.b32.xlu0 %v2474, 126
        %v2477 = vpop.permute.xlu0 %2476
        %v2479 = vadd.f32 %v2471, %v2477
        %s2480 = sld [smem:[#allocation7 + $0x7a]]
        %v2481 = vstv %s2480
        %v2482 = vmul.f32 %v2298, %v2481
        %2484 = vrot.lane.b32.xlu0 %v2482, 125
        %v2485 = vpop.permute.xlu0 %2484
        %v2487 = vadd.f32 %v2479, %v2485
        %s2488 = sld [smem:[#allocation7 + $0x7b]]
        %v2489 = vstv %s2488
        %v2490 = vmul.f32 %v2298, %v2489
        %2492 = vrot.lane.b32.xlu0 %v2490, 124
        %v2493 = vpop.permute.xlu0 %2492
        %v2495 = vadd.f32 %v2487, %v2493
        %s2496 = sld [smem:[#allocation7 + $0x7c]]
        %v2497 = vstv %s2496
        %v2498 = vmul.f32 %v2298, %v2497
        %2500 = vrot.lane.b32.xlu0 %v2498, 123
        %v2501 = vpop.permute.xlu0 %2500
        %v2503 = vadd.f32 %v2495, %v2501
        %s2504 = sld [smem:[#allocation7 + $0x7d]]
        %v2505 = vstv %s2504
        %v2506 = vmul.f32 %v2298, %v2505
        %2508 = vrot.lane.b32.xlu0 %v2506, 122
        %v2509 = vpop.permute.xlu0 %2508
        %v2511 = vadd.f32 %v2503, %v2509
        %v2513 = vrot.slane %v2511, 3
        %v2515 = vadd.f32 %v2460, %v2513
        %s2516 = sld [smem:[#allocation7 + $0x7e]]
        %v2517 = vstv %s2516
        %v2518 = vmul.f32 %v2298, %v2517
        %s2519 = sld [smem:[#allocation7 + $0x7f]]
        %v2520 = vstv %s2519
        %v2521 = vmul.f32 %v2298, %v2520
        %2523 = vrot.lane.b32.xlu0 %v2521, 127
        %v2524 = vpop.permute.xlu0 %2523
        %v2526 = vadd.f32 %v2518, %v2524
        %s2527 = sld [smem:[#allocation7 + $0x80]]
        %v2528 = vstv %s2527
        %v2529 = vmul.f32 %v2298, %v2528
        %2531 = vrot.lane.b32.xlu0 %v2529, 126
        %v2532 = vpop.permute.xlu0 %2531
        %v2534 = vadd.f32 %v2526, %v2532
        %s2535 = sld [smem:[#allocation7 + $0x81]]
        %v2536 = vstv %s2535
        %v2537 = vmul.f32 %v2298, %v2536
        %2539 = vrot.lane.b32.xlu0 %v2537, 125
        %v2540 = vpop.permute.xlu0 %2539
        %v2542 = vadd.f32 %v2534, %v2540
        %s2543 = sld [smem:[#allocation7 + $0x82]]
        %v2544 = vstv %s2543
        %v2545 = vmul.f32 %v2298, %v2544
        %2547 = vrot.lane.b32.xlu0 %v2545, 124
        %v2548 = vpop.permute.xlu0 %2547
        %v2550 = vadd.f32 %v2542, %v2548
        %s2551 = sld [smem:[#allocation7 + $0x83]]
        %v2552 = vstv %s2551
        %v2553 = vmul.f32 %v2298, %v2552
        %2555 = vrot.lane.b32.xlu0 %v2553, 123
        %v2556 = vpop.permute.xlu0 %2555
        %v2558 = vadd.f32 %v2550, %v2556
        %s2559 = sld [smem:[#allocation7 + $0x84]]
        %v2560 = vstv %s2559
        %v2561 = vmul.f32 %v2298, %v2560
        %2563 = vrot.lane.b32.xlu0 %v2561, 122
        %v2564 = vpop.permute.xlu0 %2563
        %v2566 = vadd.f32 %v2558, %v2564
        %v2568 = vrot.slane %v2566, 4
        %v2570 = vadd.f32 %v2515, %v2568
        %s2571 = sld [smem:[#allocation7 + $0x85]]
        %v2572 = vstv %s2571
        %v2573 = vmul.f32 %v2298, %v2572
        %v2574 = vmul.f32 %v2572, 0.0
        %s2575 = sld [smem:[#allocation7 + $0x86]]
        %v2576 = vstv %s2575
        %v2577 = vmul.f32 %v2298, %v2576
        %v2578 = vmul.f32 %v2576, 0.0
        %2581 = vrot.lane.b32.xlu0 %v2577, 127
        %v2582 = vpop.permute.xlu0 %2581
        %2583 = vrot.lane.b32.xlu0 %v2578, 127
        %v2584 = vpop.permute.xlu0 %2583
        %v2587 = vadd.f32 %v2573, %v2582
        %v2588 = vadd.f32 %v2574, %v2584
        %s2589 = sld [smem:[#allocation7 + $0x87]]
        %v2590 = vstv %s2589
        %v2591 = vmul.f32 %v2298, %v2590
        %v2592 = vmul.f32 %v2590, 0.0
        %2595 = vrot.lane.b32.xlu0 %v2591, 126
        %v2596 = vpop.permute.xlu0 %2595
        %2597 = vrot.lane.b32.xlu0 %v2592, 126
        %v2598 = vpop.permute.xlu0 %2597
        %v2601 = vadd.f32 %v2587, %v2596
        %v2602 = vadd.f32 %v2588, %v2598
        %s2603 = sld [smem:[#allocation7 + $0x88]]
        %v2604 = vstv %s2603
        %v2605 = vmul.f32 %v2298, %v2604
        %v2606 = vmul.f32 %v2604, 0.0
        %2609 = vrot.lane.b32.xlu0 %v2605, 125
        %v2610 = vpop.permute.xlu0 %2609
        %2611 = vrot.lane.b32.xlu0 %v2606, 125
        %v2612 = vpop.permute.xlu0 %2611
        %v2615 = vadd.f32 %v2601, %v2610
        %v2616 = vadd.f32 %v2602, %v2612
        %s2617 = sld [smem:[#allocation7 + $0x89]]
        %v2618 = vstv %s2617
        %v2619 = vmul.f32 %v2298, %v2618
        %v2620 = vmul.f32 %v2618, 0.0
        %2623 = vrot.lane.b32.xlu0 %v2619, 124
        %v2624 = vpop.permute.xlu0 %2623
        %2625 = vrot.lane.b32.xlu0 %v2620, 124
        %v2626 = vpop.permute.xlu0 %2625
        %v2629 = vadd.f32 %v2615, %v2624
        %v2630 = vadd.f32 %v2616, %v2626
        %s2631 = sld [smem:[#allocation7 + $0x8a]]
        %v2632 = vstv %s2631
        %v2633 = vmul.f32 %v2298, %v2632
        %v2634 = vmul.f32 %v2632, 0.0
        %2637 = vrot.lane.b32.xlu0 %v2633, 123
        %v2638 = vpop.permute.xlu0 %2637
        %2639 = vrot.lane.b32.xlu0 %v2634, 123
        %v2640 = vpop.permute.xlu0 %2639
        %v2643 = vadd.f32 %v2629, %v2638
        %v2644 = vadd.f32 %v2630, %v2640
        %s2645 = sld [smem:[#allocation7 + $0x8b]]
        %v2646 = vstv %s2645
        %v2647 = vmul.f32 %v2298, %v2646
        %v2648 = vmul.f32 %v2646, 0.0
        %2651 = vrot.lane.b32.xlu0 %v2647, 122
        %v2652 = vpop.permute.xlu0 %2651
        %2653 = vrot.lane.b32.xlu0 %v2648, 122
        %v2654 = vpop.permute.xlu0 %2653
        %v2657 = vadd.f32 %v2643, %v2652
        %v2658 = vadd.f32 %v2644, %v2654
        %v2661 = vrot.slane %v2657, 5
        %v2662 = vrot.slane %v2658, 5
        %v2663 = vsel %vm376, %v2661, %v2662
        %v2665 = vadd.f32 %v2570, %v2663
        %s2666 = sld [smem:[#allocation7 + $0x8c]]
        %v2667 = vstv %s2666
        %v2668 = vmul.f32 %v2298, %v2667
        %v2669 = vmul.f32 %v2667, 0.0
        %s2670 = sld [smem:[#allocation7 + $0x8d]]
        %v2671 = vstv %s2670
        %v2672 = vmul.f32 %v2298, %v2671
        %v2673 = vmul.f32 %v2671, 0.0
        %2676 = vrot.lane.b32.xlu0 %v2672, 127
        %v2677 = vpop.permute.xlu0 %2676
        %2678 = vrot.lane.b32.xlu0 %v2673, 127
        %v2679 = vpop.permute.xlu0 %2678
        %v2682 = vadd.f32 %v2668, %v2677
        %v2683 = vadd.f32 %v2669, %v2679
        %s2684 = sld [smem:[#allocation7 + $0x8e]]
        %v2685 = vstv %s2684
        %v2686 = vmul.f32 %v2298, %v2685
        %v2687 = vmul.f32 %v2685, 0.0
        %2690 = vrot.lane.b32.xlu0 %v2686, 126
        %v2691 = vpop.permute.xlu0 %2690
        %2692 = vrot.lane.b32.xlu0 %v2687, 126
        %v2693 = vpop.permute.xlu0 %2692
        %v2696 = vadd.f32 %v2682, %v2691
        %v2697 = vadd.f32 %v2683, %v2693
        %s2698 = sld [smem:[#allocation7 + $0x8f]]
        %v2699 = vstv %s2698
        %v2700 = vmul.f32 %v2298, %v2699
        %v2701 = vmul.f32 %v2699, 0.0
        %2704 = vrot.lane.b32.xlu0 %v2700, 125
        %v2705 = vpop.permute.xlu0 %2704
        %2706 = vrot.lane.b32.xlu0 %v2701, 125
        %v2707 = vpop.permute.xlu0 %2706
        %v2710 = vadd.f32 %v2696, %v2705
        %v2711 = vadd.f32 %v2697, %v2707
        %s2712 = sld [smem:[#allocation7 + $0x90]]
        %v2713 = vstv %s2712
        %v2714 = vmul.f32 %v2298, %v2713
        %v2715 = vmul.f32 %v2713, 0.0
        %2718 = vrot.lane.b32.xlu0 %v2714, 124
        %v2719 = vpop.permute.xlu0 %2718
        %2720 = vrot.lane.b32.xlu0 %v2715, 124
        %v2721 = vpop.permute.xlu0 %2720
        %v2724 = vadd.f32 %v2710, %v2719
        %v2725 = vadd.f32 %v2711, %v2721
        %s2726 = sld [smem:[#allocation7 + $0x91]]
        %v2727 = vstv %s2726
        %v2728 = vmul.f32 %v2298, %v2727
        %v2729 = vmul.f32 %v2727, 0.0
        %2732 = vrot.lane.b32.xlu0 %v2728, 123
        %v2733 = vpop.permute.xlu0 %2732
        %2734 = vrot.lane.b32.xlu0 %v2729, 123
        %v2735 = vpop.permute.xlu0 %2734
        %v2738 = vadd.f32 %v2724, %v2733
        %v2739 = vadd.f32 %v2725, %v2735
        %s2740 = sld [smem:[#allocation7 + $0x92]]
        %v2741 = vstv %s2740
        %v2742 = vmul.f32 %v2298, %v2741
        %v2743 = vmul.f32 %v2741, 0.0
        %2746 = vrot.lane.b32.xlu0 %v2742, 122
        %v2747 = vpop.permute.xlu0 %2746
        %2748 = vrot.lane.b32.xlu0 %v2743, 122
        %v2749 = vpop.permute.xlu0 %2748
        %v2752 = vadd.f32 %v2738, %v2747
        %v2753 = vadd.f32 %v2739, %v2749
        %v2756 = vrot.slane %v2752, 6
        %v2757 = vrot.slane %v2753, 6
        %v2758 = vsel %vm1292, %v2756, %v2757
        %v2760 = vadd.f32 %v2665, %v2758
        %v2765 = vsel %vm2283, %v314, %v313
        %v2766 = vsel %vm2285, %v315, %v2765
        %v2767 = vsel %vm2287, %v316, %v2766
        %2768 = vrot.lane.b32.xlu0 %v2767, 3
        %v2769 = vpop.permute.xlu0 %2768
        %v2771 = vsel %vm368, 0.0, %v2769
        %v2772 = vsel %vm371, %v2771, 0.0
        %v2774 = vrot.slane %v2772, 5
        %v2776 = vsel %vm376, 0.0, %v2774
        %v2777 = vsel %vm603, %v2776, 0.0
        %s2778 = sld [smem:[#allocation7 + $0x93]]
        %v2779 = vstv %s2778
        %v2780 = vmul.f32 %v2777, %v2779
        %s2781 = sld [smem:[#allocation7 + $0x94]]
        %v2782 = vstv %s2781
        %v2783 = vmul.f32 %v2777, %v2782
        %2785 = vrot.lane.b32.xlu0 %v2783, 127
        %v2786 = vpop.permute.xlu0 %2785
        %v2788 = vadd.f32 %v2780, %v2786
        %s2789 = sld [smem:[#allocation7 + $0x95]]
        %v2790 = vstv %s2789
        %v2791 = vmul.f32 %v2777, %v2790
        %2793 = vrot.lane.b32.xlu0 %v2791, 126
        %v2794 = vpop.permute.xlu0 %2793
        %v2796 = vadd.f32 %v2788, %v2794
        %s2797 = sld [smem:[#allocation7 + $0x96]]
        %v2798 = vstv %s2797
        %v2799 = vmul.f32 %v2777, %v2798
        %2801 = vrot.lane.b32.xlu0 %v2799, 125
        %v2802 = vpop.permute.xlu0 %2801
        %v2804 = vadd.f32 %v2796, %v2802
        %s2805 = sld [smem:[#allocation7 + $0x97]]
        %v2806 = vstv %s2805
        %v2807 = vmul.f32 %v2777, %v2806
        %2809 = vrot.lane.b32.xlu0 %v2807, 124
        %v2810 = vpop.permute.xlu0 %2809
        %v2812 = vadd.f32 %v2804, %v2810
        %s2813 = sld [smem:[#allocation7 + $0x98]]
        %v2814 = vstv %s2813
        %v2815 = vmul.f32 %v2777, %v2814
        %2817 = vrot.lane.b32.xlu0 %v2815, 123
        %v2818 = vpop.permute.xlu0 %2817
        %v2820 = vadd.f32 %v2812, %v2818
        %s2821 = sld [smem:[#allocation7 + $0x99]]
        %v2822 = vstv %s2821
        %v2823 = vmul.f32 %v2777, %v2822
        %2825 = vrot.lane.b32.xlu0 %v2823, 122
        %v2826 = vpop.permute.xlu0 %2825
        %v2828 = vadd.f32 %v2820, %v2826
        %v2829 = vadd.f32 %v2760, %v2828
        %s2830 = sld [smem:[#allocation7 + $0x9a]]
        %v2831 = vstv %s2830
        %v2832 = vmul.f32 %v2777, %v2831
        %s2833 = sld [smem:[#allocation7 + $0x9b]]
        %v2834 = vstv %s2833
        %v2835 = vmul.f32 %v2777, %v2834
        %2837 = vrot.lane.b32.xlu0 %v2835, 127
        %v2838 = vpop.permute.xlu0 %2837
        %v2840 = vadd.f32 %v2832, %v2838
        %s2841 = sld [smem:[#allocation7 + $0x9c]]
        %v2842 = vstv %s2841
        %v2843 = vmul.f32 %v2777, %v2842
        %2845 = vrot.lane.b32.xlu0 %v2843, 126
        %v2846 = vpop.permute.xlu0 %2845
        %v2848 = vadd.f32 %v2840, %v2846
        %s2849 = sld [smem:[#allocation7 + $0x9d]]
        %v2850 = vstv %s2849
        %v2851 = vmul.f32 %v2777, %v2850
        %2853 = vrot.lane.b32.xlu0 %v2851, 125
        %v2854 = vpop.permute.xlu0 %2853
        %v2856 = vadd.f32 %v2848, %v2854
        %s2857 = sld [smem:[#allocation7 + $0x9e]]
        %v2858 = vstv %s2857
        %v2859 = vmul.f32 %v2777, %v2858
        %2861 = vrot.lane.b32.xlu0 %v2859, 124
        %v2862 = vpop.permute.xlu0 %2861
        %v2864 = vadd.f32 %v2856, %v2862
        %s2865 = sld [smem:[#allocation7 + $0x9f]]
        %v2866 = vstv %s2865
        %v2867 = vmul.f32 %v2777, %v2866
        %2869 = vrot.lane.b32.xlu0 %v2867, 123
        %v2870 = vpop.permute.xlu0 %2869
        %v2872 = vadd.f32 %v2864, %v2870
        %s2873 = sld [smem:[#allocation7 + $0xa0]]
        %v2874 = vstv %s2873
        %v2875 = vmul.f32 %v2777, %v2874
        %2877 = vrot.lane.b32.xlu0 %v2875, 122
        %v2878 = vpop.permute.xlu0 %2877
        %v2880 = vadd.f32 %v2872, %v2878
        %v2882 = vrot.slane %v2880, 1
        %v2884 = vadd.f32 %v2829, %v2882
        %s2885 = sld [smem:[#allocation7 + $0xa1]]
        %v2886 = vstv %s2885
        %v2887 = vmul.f32 %v2777, %v2886
        %s2888 = sld [smem:[#allocation7 + $0xa2]]
        %v2889 = vstv %s2888
        %v2890 = vmul.f32 %v2777, %v2889
        %2892 = vrot.lane.b32.xlu0 %v2890, 127
        %v2893 = vpop.permute.xlu0 %2892
        %v2895 = vadd.f32 %v2887, %v2893
        %s2896 = sld [smem:[#allocation7 + $0xa3]]
        %v2897 = vstv %s2896
        %v2898 = vmul.f32 %v2777, %v2897
        %2900 = vrot.lane.b32.xlu0 %v2898, 126
        %v2901 = vpop.permute.xlu0 %2900
        %v2903 = vadd.f32 %v2895, %v2901
        %s2904 = sld [smem:[#allocation7 + $0xa4]]
        %v2905 = vstv %s2904
        %v2906 = vmul.f32 %v2777, %v2905
        %2908 = vrot.lane.b32.xlu0 %v2906, 125
        %v2909 = vpop.permute.xlu0 %2908
        %v2911 = vadd.f32 %v2903, %v2909
        %s2912 = sld [smem:[#allocation7 + $0xa5]]
        %v2913 = vstv %s2912
        %v2914 = vmul.f32 %v2777, %v2913
        %2916 = vrot.lane.b32.xlu0 %v2914, 124
        %v2917 = vpop.permute.xlu0 %2916
        %v2919 = vadd.f32 %v2911, %v2917
        %s2920 = sld [smem:[#allocation7 + $0xa6]]
        %v2921 = vstv %s2920
        %v2922 = vmul.f32 %v2777, %v2921
        %2924 = vrot.lane.b32.xlu0 %v2922, 123
        %v2925 = vpop.permute.xlu0 %2924
        %v2927 = vadd.f32 %v2919, %v2925
        %s2928 = sld [smem:[#allocation7 + $0xa7]]
        %v2929 = vstv %s2928
        %v2930 = vmul.f32 %v2777, %v2929
        %2932 = vrot.lane.b32.xlu0 %v2930, 122
        %v2933 = vpop.permute.xlu0 %2932
        %v2935 = vadd.f32 %v2927, %v2933
        %v2937 = vrot.slane %v2935, 2
        %v2939 = vadd.f32 %v2884, %v2937
        %s2940 = sld [smem:[#allocation7 + $0xa8]]
        %v2941 = vstv %s2940
        %v2942 = vmul.f32 %v2777, %v2941
        %s2943 = sld [smem:[#allocation7 + $0xa9]]
        %v2944 = vstv %s2943
        %v2945 = vmul.f32 %v2777, %v2944
        %2947 = vrot.lane.b32.xlu0 %v2945, 127
        %v2948 = vpop.permute.xlu0 %2947
        %v2950 = vadd.f32 %v2942, %v2948
        %s2951 = sld [smem:[#allocation7 + $0xaa]]
        %v2952 = vstv %s2951
        %v2953 = vmul.f32 %v2777, %v2952
        %2955 = vrot.lane.b32.xlu0 %v2953, 126
        %v2956 = vpop.permute.xlu0 %2955
        %v2958 = vadd.f32 %v2950, %v2956
        %s2959 = sld [smem:[#allocation7 + $0xab]]
        %v2960 = vstv %s2959
        %v2961 = vmul.f32 %v2777, %v2960
        %2963 = vrot.lane.b32.xlu0 %v2961, 125
        %v2964 = vpop.permute.xlu0 %2963
        %v2966 = vadd.f32 %v2958, %v2964
        %s2967 = sld [smem:[#allocation7 + $0xac]]
        %v2968 = vstv %s2967
        %v2969 = vmul.f32 %v2777, %v2968
        %2971 = vrot.lane.b32.xlu0 %v2969, 124
        %v2972 = vpop.permute.xlu0 %2971
        %v2974 = vadd.f32 %v2966, %v2972
        %s2975 = sld [smem:[#allocation7 + $0xad]]
        %v2976 = vstv %s2975
        %v2977 = vmul.f32 %v2777, %v2976
        %2979 = vrot.lane.b32.xlu0 %v2977, 123
        %v2980 = vpop.permute.xlu0 %2979
        %v2982 = vadd.f32 %v2974, %v2980
        %s2983 = sld [smem:[#allocation7 + $0xae]]
        %v2984 = vstv %s2983
        %v2985 = vmul.f32 %v2777, %v2984
        %2987 = vrot.lane.b32.xlu0 %v2985, 122
        %v2988 = vpop.permute.xlu0 %2987
        %v2990 = vadd.f32 %v2982, %v2988
        %v2992 = vrot.slane %v2990, 3
        %v2994 = vadd.f32 %v2939, %v2992
        %s2995 = sld [smem:[#allocation7 + $0xaf]]
        %v2996 = vstv %s2995
        %v2997 = vmul.f32 %v2777, %v2996
        %s2998 = sld [smem:[#allocation7 + $0xb0]]
        %v2999 = vstv %s2998
        %v3000 = vmul.f32 %v2777, %v2999
        %3002 = vrot.lane.b32.xlu0 %v3000, 127
        %v3003 = vpop.permute.xlu0 %3002
        %v3005 = vadd.f32 %v2997, %v3003
        %s3006 = sld [smem:[#allocation7 + $0xb1]]
        %v3007 = vstv %s3006
        %v3008 = vmul.f32 %v2777, %v3007
        %3010 = vrot.lane.b32.xlu0 %v3008, 126
        %v3011 = vpop.permute.xlu0 %3010
        %v3013 = vadd.f32 %v3005, %v3011
        %s3014 = sld [smem:[#allocation7 + $0xb2]]
        %v3015 = vstv %s3014
        %v3016 = vmul.f32 %v2777, %v3015
        %3018 = vrot.lane.b32.xlu0 %v3016, 125
        %v3019 = vpop.permute.xlu0 %3018
        %v3021 = vadd.f32 %v3013, %v3019
        %s3022 = sld [smem:[#allocation7 + $0xb3]]
        %v3023 = vstv %s3022
        %v3024 = vmul.f32 %v2777, %v3023
        %3026 = vrot.lane.b32.xlu0 %v3024, 124
        %v3027 = vpop.permute.xlu0 %3026
        %v3029 = vadd.f32 %v3021, %v3027
        %s3030 = sld [smem:[#allocation7 + $0xb4]]
        %v3031 = vstv %s3030
        %v3032 = vmul.f32 %v2777, %v3031
        %3034 = vrot.lane.b32.xlu0 %v3032, 123
        %v3035 = vpop.permute.xlu0 %3034
        %v3037 = vadd.f32 %v3029, %v3035
        %s3038 = sld [smem:[#allocation7 + $0xb5]]
        %v3039 = vstv %s3038
        %v3040 = vmul.f32 %v2777, %v3039
        %3042 = vrot.lane.b32.xlu0 %v3040, 122
        %v3043 = vpop.permute.xlu0 %3042
        %v3045 = vadd.f32 %v3037, %v3043
        %v3047 = vrot.slane %v3045, 4
        %v3049 = vadd.f32 %v2994, %v3047
        %s3050 = sld [smem:[#allocation7 + $0xb6]]
        %v3051 = vstv %s3050
        %v3052 = vmul.f32 %v2777, %v3051
        %v3053 = vmul.f32 %v3051, 0.0
        %s3054 = sld [smem:[#allocation7 + $0xb7]]
        %v3055 = vstv %s3054
        %v3056 = vmul.f32 %v2777, %v3055
        %v3057 = vmul.f32 %v3055, 0.0
        %3060 = vrot.lane.b32.xlu0 %v3056, 127
        %v3061 = vpop.permute.xlu0 %3060
        %3062 = vrot.lane.b32.xlu0 %v3057, 127
        %v3063 = vpop.permute.xlu0 %3062
        %v3066 = vadd.f32 %v3052, %v3061
        %v3067 = vadd.f32 %v3053, %v3063
        %s3068 = sld [smem:[#allocation7 + $0xb8]]
        %v3069 = vstv %s3068
        %v3070 = vmul.f32 %v2777, %v3069
        %v3071 = vmul.f32 %v3069, 0.0
        %3074 = vrot.lane.b32.xlu0 %v3070, 126
        %v3075 = vpop.permute.xlu0 %3074
        %3076 = vrot.lane.b32.xlu0 %v3071, 126
        %v3077 = vpop.permute.xlu0 %3076
        %v3080 = vadd.f32 %v3066, %v3075
        %v3081 = vadd.f32 %v3067, %v3077
        %s3082 = sld [smem:[#allocation7 + $0xb9]]
        %v3083 = vstv %s3082
        %v3084 = vmul.f32 %v2777, %v3083
        %v3085 = vmul.f32 %v3083, 0.0
        %3088 = vrot.lane.b32.xlu0 %v3084, 125
        %v3089 = vpop.permute.xlu0 %3088
        %3090 = vrot.lane.b32.xlu0 %v3085, 125
        %v3091 = vpop.permute.xlu0 %3090
        %v3094 = vadd.f32 %v3080, %v3089
        %v3095 = vadd.f32 %v3081, %v3091
        %s3096 = sld [smem:[#allocation7 + $0xba]]
        %v3097 = vstv %s3096
        %v3098 = vmul.f32 %v2777, %v3097
        %v3099 = vmul.f32 %v3097, 0.0
        %3102 = vrot.lane.b32.xlu0 %v3098, 124
        %v3103 = vpop.permute.xlu0 %3102
        %3104 = vrot.lane.b32.xlu0 %v3099, 124
        %v3105 = vpop.permute.xlu0 %3104
        %v3108 = vadd.f32 %v3094, %v3103
        %v3109 = vadd.f32 %v3095, %v3105
        %s3110 = sld [smem:[#allocation7 + $0xbb]]
        %v3111 = vstv %s3110
        %v3112 = vmul.f32 %v2777, %v3111
        %v3113 = vmul.f32 %v3111, 0.0
        %3116 = vrot.lane.b32.xlu0 %v3112, 123
        %v3117 = vpop.permute.xlu0 %3116
        %3118 = vrot.lane.b32.xlu0 %v3113, 123
        %v3119 = vpop.permute.xlu0 %3118
        %v3122 = vadd.f32 %v3108, %v3117
        %v3123 = vadd.f32 %v3109, %v3119
        %s3124 = sld [smem:[#allocation7 + $0xbc]]
        %v3125 = vstv %s3124
        %v3126 = vmul.f32 %v2777, %v3125
        %v3127 = vmul.f32 %v3125, 0.0
        %3130 = vrot.lane.b32.xlu0 %v3126, 122
        %v3131 = vpop.permute.xlu0 %3130
        %3132 = vrot.lane.b32.xlu0 %v3127, 122
        %v3133 = vpop.permute.xlu0 %3132
        %v3136 = vadd.f32 %v3122, %v3131
        %v3137 = vadd.f32 %v3123, %v3133
        %v3140 = vrot.slane %v3136, 5
        %v3141 = vrot.slane %v3137, 5
        %v3142 = vsel %vm376, %v3140, %v3141
        %v3144 = vadd.f32 %v3049, %v3142
        %s3145 = sld [smem:[#allocation7 + $0xbd]]
        %v3146 = vstv %s3145
        %v3147 = vmul.f32 %v2777, %v3146
        %v3148 = vmul.f32 %v3146, 0.0
        %s3149 = sld [smem:[#allocation7 + $0xbe]]
        %v3150 = vstv %s3149
        %v3151 = vmul.f32 %v2777, %v3150
        %v3152 = vmul.f32 %v3150, 0.0
        %3155 = vrot.lane.b32.xlu0 %v3151, 127
        %v3156 = vpop.permute.xlu0 %3155
        %3157 = vrot.lane.b32.xlu0 %v3152, 127
        %v3158 = vpop.permute.xlu0 %3157
        %v3161 = vadd.f32 %v3147, %v3156
        %v3162 = vadd.f32 %v3148, %v3158
        %s3163 = sld [smem:[#allocation7 + $0xbf]]
        %v3164 = vstv %s3163
        %v3165 = vmul.f32 %v2777, %v3164
        %v3166 = vmul.f32 %v3164, 0.0
        %3169 = vrot.lane.b32.xlu0 %v3165, 126
        %v3170 = vpop.permute.xlu0 %3169
        %3171 = vrot.lane.b32.xlu0 %v3166, 126
        %v3172 = vpop.permute.xlu0 %3171
        %v3175 = vadd.f32 %v3161, %v3170
        %v3176 = vadd.f32 %v3162, %v3172
        %s3177 = sld [smem:[#allocation7 + $0xc0]]
        %v3178 = vstv %s3177
        %v3179 = vmul.f32 %v2777, %v3178
        %v3180 = vmul.f32 %v3178, 0.0
        %3183 = vrot.lane.b32.xlu0 %v3179, 125
        %v3184 = vpop.permute.xlu0 %3183
        %3185 = vrot.lane.b32.xlu0 %v3180, 125
        %v3186 = vpop.permute.xlu0 %3185
        %v3189 = vadd.f32 %v3175, %v3184
        %v3190 = vadd.f32 %v3176, %v3186
        %s3191 = sld [smem:[#allocation7 + $0xc1]]
        %v3192 = vstv %s3191
        %v3193 = vmul.f32 %v2777, %v3192
        %v3194 = vmul.f32 %v3192, 0.0
        %3197 = vrot.lane.b32.xlu0 %v3193, 124
        %v3198 = vpop.permute.xlu0 %3197
        %3199 = vrot.lane.b32.xlu0 %v3194, 124
        %v3200 = vpop.permute.xlu0 %3199
        %v3203 = vadd.f32 %v3189, %v3198
        %v3204 = vadd.f32 %v3190, %v3200
        %s3205 = sld [smem:[#allocation7 + $0xc2]]
        %v3206 = vstv %s3205
        %v3207 = vmul.f32 %v2777, %v3206
        %v3208 = vmul.f32 %v3206, 0.0
        %3211 = vrot.lane.b32.xlu0 %v3207, 123
        %v3212 = vpop.permute.xlu0 %3211
        %3213 = vrot.lane.b32.xlu0 %v3208, 123
        %v3214 = vpop.permute.xlu0 %3213
        %v3217 = vadd.f32 %v3203, %v3212
        %v3218 = vadd.f32 %v3204, %v3214
        %s3219 = sld [smem:[#allocation7 + $0xc3]]
        %v3220 = vstv %s3219
        %v3221 = vmul.f32 %v2777, %v3220
        %v3222 = vmul.f32 %v3220, 0.0
        %3225 = vrot.lane.b32.xlu0 %v3221, 122
        %v3226 = vpop.permute.xlu0 %3225
        %3227 = vrot.lane.b32.xlu0 %v3222, 122
        %v3228 = vpop.permute.xlu0 %3227
        %v3231 = vadd.f32 %v3217, %v3226
        %v3232 = vadd.f32 %v3218, %v3228
        %v3235 = vrot.slane %v3231, 6
        %v3236 = vrot.slane %v3232, 6
        %v3237 = vsel %vm1292, %v3235, %v3236
        %v3239 = vadd.f32 %v3144, %v3237
        %v3240 = vxor.u32 %v3239, 2147483648
        %v3241 = vmul.f32 %v3240, 1.442695
        %v3242 = vpow.pop %v3241
        %v3243 = vadd.f32 %v3242, 1.0
        %v3244 = vrcp.pop %v3243
        %v3245 = vmul.f32 %v3243, %v3244
        %v3246 = vsub.f32 1.0, %v3245
        %v3247 = vmul.f32 %v3244, %v3246
        %v3248 = vadd.f32 %v3244, %v3247
        %vm3249 = vweird.f32 %v3243
        %vm3250 = vweird.f32 %v3244
        %vm3251 = vmor %vm3249, %vm3250
        %v3252 = vsel %vm3251, %v3244, %v3248
        %v3253 = vand.u32 2147483647, %v3243
        %vm3254 = vcmp.eq.f32.partialorder %v3253, 8.507059e+37
        %v3255 = vand.u32 %v3243, 2147483648
        %v3256 = vor.u32 1.1754944e-38, %v3255
        %v3257 = vsel %vm3254, %v3256, %v3252
        %v3258 = vmul.f32 1.0, %v3257
        %v3259 = vmul.f32 %v3258, 0.33333334
        %s3260 = sld [smem:[#allocation8 + $0x2]]
        %v3261 = vstv %s3260
        %v3262 = vadd.f32 %v3261, 0.0
        %v3271 = vlaneseq
        %v3272 = vand.u32 %v3271, 127
        %v3273 = vadd.s32 %v3272, 4294967293
        %v3274 = vperm.slane %v318, %v3273
        %v3275 = vadd.s32 %v3272, 4294967285
        %v3276 = vperm.slane %v320, %v3275
        %vm3277 = vcmask 154712
        %v3278 = vsel %vm3277, %v3276, %v3274
        %v3279 = vperm.slane %v322, %v3273
        %v3280 = vperm.slane %v324, %v3275
        %v3281 = vsel %vm3277, %v3280, %v3279
        %v3282 = vperm.slane %v326, %v3273
        %v3283 = vperm.slane %v328, %v3275
        %v3284 = vsel %vm3277, %v3283, %v3282
        %v3285 = vperm.slane %v330, %v3273
        %v3286 = vperm.slane %v332, %v3275
        %v3287 = vsel %vm3277, %v3286, %v3285
        %v3288 = vsel %vm2283, %v3281, %v3278
        %v3289 = vsel %vm2285, %v3284, %v3288
        %v3290 = vsel %vm2287, %v3287, %v3289
        %v3292 = vsel %vm368, 0.0, %v3290
        %v3293 = vsel %vm371, %v3292, 0.0
        %v3295 = vrot.slane %v3293, 5
        %v3297 = vsel %vm376, 0.0, %v3295
        %v3298 = vsel %vm603, %v3297, 0.0
        %s3299 = sld [smem:[#allocation7 + $0xc4]]
        %v3300 = vstv %s3299
        %v3301 = vmul.f32 %v3298, %v3300
        %s3302 = sld [smem:[#allocation7 + $0xc5]]
        %v3303 = vstv %s3302
        %v3304 = vmul.f32 %v3298, %v3303
        %3306 = vrot.lane.b32.xlu0 %v3304, 127
        %v3307 = vpop.permute.xlu0 %3306
        %v3309 = vadd.f32 %v3301, %v3307
        %s3310 = sld [smem:[#allocation7 + $0xc6]]
        %v3311 = vstv %s3310
        %v3312 = vmul.f32 %v3298, %v3311
        %3314 = vrot.lane.b32.xlu0 %v3312, 126
        %v3315 = vpop.permute.xlu0 %3314
        %v3317 = vadd.f32 %v3309, %v3315
        %s3318 = sld [smem:[#allocation7 + $0xc7]]
        %v3319 = vstv %s3318
        %v3320 = vmul.f32 %v3298, %v3319
        %3322 = vrot.lane.b32.xlu0 %v3320, 125
        %v3323 = vpop.permute.xlu0 %3322
        %v3325 = vadd.f32 %v3317, %v3323
        %s3326 = sld [smem:[#allocation7 + $0xc8]]
        %v3327 = vstv %s3326
        %v3328 = vmul.f32 %v3298, %v3327
        %3330 = vrot.lane.b32.xlu0 %v3328, 124
        %v3331 = vpop.permute.xlu0 %3330
        %v3333 = vadd.f32 %v3325, %v3331
        %s3334 = sld [smem:[#allocation7 + $0xc9]]
        %v3335 = vstv %s3334
        %v3336 = vmul.f32 %v3298, %v3335
        %3338 = vrot.lane.b32.xlu0 %v3336, 123
        %v3339 = vpop.permute.xlu0 %3338
        %v3341 = vadd.f32 %v3333, %v3339
        %s3342 = sld [smem:[#allocation7 + $0xca]]
        %v3343 = vstv %s3342
        %v3344 = vmul.f32 %v3298, %v3343
        %3346 = vrot.lane.b32.xlu0 %v3344, 122
        %v3347 = vpop.permute.xlu0 %3346
        %v3349 = vadd.f32 %v3341, %v3347
        %v3350 = vadd.f32 %v3262, %v3349
        %s3351 = sld [smem:[#allocation7 + $0xcb]]
        %v3352 = vstv %s3351
        %v3353 = vmul.f32 %v3298, %v3352
        %s3354 = sld [smem:[#allocation7 + $0xcc]]
        %v3355 = vstv %s3354
        %v3356 = vmul.f32 %v3298, %v3355
        %3358 = vrot.lane.b32.xlu0 %v3356, 127
        %v3359 = vpop.permute.xlu0 %3358
        %v3361 = vadd.f32 %v3353, %v3359
        %s3362 = sld [smem:[#allocation7 + $0xcd]]
        %v3363 = vstv %s3362
        %v3364 = vmul.f32 %v3298, %v3363
        %3366 = vrot.lane.b32.xlu0 %v3364, 126
        %v3367 = vpop.permute.xlu0 %3366
        %v3369 = vadd.f32 %v3361, %v3367
        %s3370 = sld [smem:[#allocation7 + $0xce]]
        %v3371 = vstv %s3370
        %v3372 = vmul.f32 %v3298, %v3371
        %3374 = vrot.lane.b32.xlu0 %v3372, 125
        %v3375 = vpop.permute.xlu0 %3374
        %v3377 = vadd.f32 %v3369, %v3375
        %s3378 = sld [smem:[#allocation7 + $0xcf]]
        %v3379 = vstv %s3378
        %v3380 = vmul.f32 %v3298, %v3379
        %3382 = vrot.lane.b32.xlu0 %v3380, 124
        %v3383 = vpop.permute.xlu0 %3382
        %v3385 = vadd.f32 %v3377, %v3383
        %s3386 = sld [smem:[#allocation7 + $0xd0]]
        %v3387 = vstv %s3386
        %v3388 = vmul.f32 %v3298, %v3387
        %3390 = vrot.lane.b32.xlu0 %v3388, 123
        %v3391 = vpop.permute.xlu0 %3390
        %v3393 = vadd.f32 %v3385, %v3391
        %s3394 = sld [smem:[#allocation7 + $0xd1]]
        %v3395 = vstv %s3394
        %v3396 = vmul.f32 %v3298, %v3395
        %3398 = vrot.lane.b32.xlu0 %v3396, 122
        %v3399 = vpop.permute.xlu0 %3398
        %v3401 = vadd.f32 %v3393, %v3399
        %v3403 = vrot.slane %v3401, 1
        %v3405 = vadd.f32 %v3350, %v3403
        %s3406 = sld [smem:[#allocation7 + $0xd2]]
        %v3407 = vstv %s3406
        %v3408 = vmul.f32 %v3298, %v3407
        %s3409 = sld [smem:[#allocation7 + $0xd3]]
        %v3410 = vstv %s3409
        %v3411 = vmul.f32 %v3298, %v3410
        %3413 = vrot.lane.b32.xlu0 %v3411, 127
        %v3414 = vpop.permute.xlu0 %3413
        %v3416 = vadd.f32 %v3408, %v3414
        %s3417 = sld [smem:[#allocation7 + $0xd4]]
        %v3418 = vstv %s3417
        %v3419 = vmul.f32 %v3298, %v3418
        %3421 = vrot.lane.b32.xlu0 %v3419, 126
        %v3422 = vpop.permute.xlu0 %3421
        %v3424 = vadd.f32 %v3416, %v3422
        %s3425 = sld [smem:[#allocation7 + $0xd5]]
        %v3426 = vstv %s3425
        %v3427 = vmul.f32 %v3298, %v3426
        %3429 = vrot.lane.b32.xlu0 %v3427, 125
        %v3430 = vpop.permute.xlu0 %3429
        %v3432 = vadd.f32 %v3424, %v3430
        %s3433 = sld [smem:[#allocation7 + $0xd6]]
        %v3434 = vstv %s3433
        %v3435 = vmul.f32 %v3298, %v3434
        %3437 = vrot.lane.b32.xlu0 %v3435, 124
        %v3438 = vpop.permute.xlu0 %3437
        %v3440 = vadd.f32 %v3432, %v3438
        %s3441 = sld [smem:[#allocation7 + $0xd7]]
        %v3442 = vstv %s3441
        %v3443 = vmul.f32 %v3298, %v3442
        %3445 = vrot.lane.b32.xlu0 %v3443, 123
        %v3446 = vpop.permute.xlu0 %3445
        %v3448 = vadd.f32 %v3440, %v3446
        %s3449 = sld [smem:[#allocation7 + $0xd8]]
        %v3450 = vstv %s3449
        %v3451 = vmul.f32 %v3298, %v3450
        %3453 = vrot.lane.b32.xlu0 %v3451, 122
        %v3454 = vpop.permute.xlu0 %3453
        %v3456 = vadd.f32 %v3448, %v3454
        %v3458 = vrot.slane %v3456, 2
        %v3460 = vadd.f32 %v3405, %v3458
        %s3461 = sld [smem:[#allocation7 + $0xd9]]
        %v3462 = vstv %s3461
        %v3463 = vmul.f32 %v3298, %v3462
        %s3464 = sld [smem:[#allocation7 + $0xda]]
        %v3465 = vstv %s3464
        %v3466 = vmul.f32 %v3298, %v3465
        %3468 = vrot.lane.b32.xlu0 %v3466, 127
        %v3469 = vpop.permute.xlu0 %3468
        %v3471 = vadd.f32 %v3463, %v3469
        %s3472 = sld [smem:[#allocation7 + $0xdb]]
        %v3473 = vstv %s3472
        %v3474 = vmul.f32 %v3298, %v3473
        %3476 = vrot.lane.b32.xlu0 %v3474, 126
        %v3477 = vpop.permute.xlu0 %3476
        %v3479 = vadd.f32 %v3471, %v3477
        %s3480 = sld [smem:[#allocation7 + $0xdc]]
        %v3481 = vstv %s3480
        %v3482 = vmul.f32 %v3298, %v3481
        %3484 = vrot.lane.b32.xlu0 %v3482, 125
        %v3485 = vpop.permute.xlu0 %3484
        %v3487 = vadd.f32 %v3479, %v3485
        %s3488 = sld [smem:[#allocation7 + $0xdd]]
        %v3489 = vstv %s3488
        %v3490 = vmul.f32 %v3298, %v3489
        %3492 = vrot.lane.b32.xlu0 %v3490, 124
        %v3493 = vpop.permute.xlu0 %3492
        %v3495 = vadd.f32 %v3487, %v3493
        %s3496 = sld [smem:[#allocation7 + $0xde]]
        %v3497 = vstv %s3496
        %v3498 = vmul.f32 %v3298, %v3497
        %3500 = vrot.lane.b32.xlu0 %v3498, 123
        %v3501 = vpop.permute.xlu0 %3500
        %v3503 = vadd.f32 %v3495, %v3501
        %s3504 = sld [smem:[#allocation7 + $0xdf]]
        %v3505 = vstv %s3504
        %v3506 = vmul.f32 %v3298, %v3505
        %3508 = vrot.lane.b32.xlu0 %v3506, 122
        %v3509 = vpop.permute.xlu0 %3508
        %v3511 = vadd.f32 %v3503, %v3509
        %v3513 = vrot.slane %v3511, 3
        %v3515 = vadd.f32 %v3460, %v3513
        %s3516 = sld [smem:[#allocation7 + $0xe0]]
        %v3517 = vstv %s3516
        %v3518 = vmul.f32 %v3298, %v3517
        %s3519 = sld [smem:[#allocation7 + $0xe1]]
        %v3520 = vstv %s3519
        %v3521 = vmul.f32 %v3298, %v3520
        %3523 = vrot.lane.b32.xlu0 %v3521, 127
        %v3524 = vpop.permute.xlu0 %3523
        %v3526 = vadd.f32 %v3518, %v3524
        %s3527 = sld [smem:[#allocation7 + $0xe2]]
        %v3528 = vstv %s3527
        %v3529 = vmul.f32 %v3298, %v3528
        %3531 = vrot.lane.b32.xlu0 %v3529, 126
        %v3532 = vpop.permute.xlu0 %3531
        %v3534 = vadd.f32 %v3526, %v3532
        %s3535 = sld [smem:[#allocation7 + $0xe3]]
        %v3536 = vstv %s3535
        %v3537 = vmul.f32 %v3298, %v3536
        %3539 = vrot.lane.b32.xlu0 %v3537, 125
        %v3540 = vpop.permute.xlu0 %3539
        %v3542 = vadd.f32 %v3534, %v3540
        %s3543 = sld [smem:[#allocation7 + $0xe4]]
        %v3544 = vstv %s3543
        %v3545 = vmul.f32 %v3298, %v3544
        %3547 = vrot.lane.b32.xlu0 %v3545, 124
        %v3548 = vpop.permute.xlu0 %3547
        %v3550 = vadd.f32 %v3542, %v3548
        %s3551 = sld [smem:[#allocation7 + $0xe5]]
        %v3552 = vstv %s3551
        %v3553 = vmul.f32 %v3298, %v3552
        %3555 = vrot.lane.b32.xlu0 %v3553, 123
        %v3556 = vpop.permute.xlu0 %3555
        %v3558 = vadd.f32 %v3550, %v3556
        %s3559 = sld [smem:[#allocation7 + $0xe6]]
        %v3560 = vstv %s3559
        %v3561 = vmul.f32 %v3298, %v3560
        %3563 = vrot.lane.b32.xlu0 %v3561, 122
        %v3564 = vpop.permute.xlu0 %3563
        %v3566 = vadd.f32 %v3558, %v3564
        %v3568 = vrot.slane %v3566, 4
        %v3570 = vadd.f32 %v3515, %v3568
        %s3571 = sld [smem:[#allocation7 + $0xe7]]
        %v3572 = vstv %s3571
        %v3573 = vmul.f32 %v3298, %v3572
        %v3574 = vmul.f32 %v3572, 0.0
        %s3575 = sld [smem:[#allocation7 + $0xe8]]
        %v3576 = vstv %s3575
        %v3577 = vmul.f32 %v3298, %v3576
        %v3578 = vmul.f32 %v3576, 0.0
        %3581 = vrot.lane.b32.xlu0 %v3577, 127
        %v3582 = vpop.permute.xlu0 %3581
        %3583 = vrot.lane.b32.xlu0 %v3578, 127
        %v3584 = vpop.permute.xlu0 %3583
        %v3587 = vadd.f32 %v3573, %v3582
        %v3588 = vadd.f32 %v3574, %v3584
        %s3589 = sld [smem:[#allocation7 + $0xe9]]
        %v3590 = vstv %s3589
        %v3591 = vmul.f32 %v3298, %v3590
        %v3592 = vmul.f32 %v3590, 0.0
        %3595 = vrot.lane.b32.xlu0 %v3591, 126
        %v3596 = vpop.permute.xlu0 %3595
        %3597 = vrot.lane.b32.xlu0 %v3592, 126
        %v3598 = vpop.permute.xlu0 %3597
        %v3601 = vadd.f32 %v3587, %v3596
        %v3602 = vadd.f32 %v3588, %v3598
        %s3603 = sld [smem:[#allocation7 + $0xea]]
        %v3604 = vstv %s3603
        %v3605 = vmul.f32 %v3298, %v3604
        %v3606 = vmul.f32 %v3604, 0.0
        %3609 = vrot.lane.b32.xlu0 %v3605, 125
        %v3610 = vpop.permute.xlu0 %3609
        %3611 = vrot.lane.b32.xlu0 %v3606, 125
        %v3612 = vpop.permute.xlu0 %3611
        %v3615 = vadd.f32 %v3601, %v3610
        %v3616 = vadd.f32 %v3602, %v3612
        %s3617 = sld [smem:[#allocation7 + $0xeb]]
        %v3618 = vstv %s3617
        %v3619 = vmul.f32 %v3298, %v3618
        %v3620 = vmul.f32 %v3618, 0.0
        %3623 = vrot.lane.b32.xlu0 %v3619, 124
        %v3624 = vpop.permute.xlu0 %3623
        %3625 = vrot.lane.b32.xlu0 %v3620, 124
        %v3626 = vpop.permute.xlu0 %3625
        %v3629 = vadd.f32 %v3615, %v3624
        %v3630 = vadd.f32 %v3616, %v3626
        %s3631 = sld [smem:[#allocation7 + $0xec]]
        %v3632 = vstv %s3631
        %v3633 = vmul.f32 %v3298, %v3632
        %v3634 = vmul.f32 %v3632, 0.0
        %3637 = vrot.lane.b32.xlu0 %v3633, 123
        %v3638 = vpop.permute.xlu0 %3637
        %3639 = vrot.lane.b32.xlu0 %v3634, 123
        %v3640 = vpop.permute.xlu0 %3639
        %v3643 = vadd.f32 %v3629, %v3638
        %v3644 = vadd.f32 %v3630, %v3640
        %s3645 = sld [smem:[#allocation7 + $0xed]]
        %v3646 = vstv %s3645
        %v3647 = vmul.f32 %v3298, %v3646
        %v3648 = vmul.f32 %v3646, 0.0
        %3651 = vrot.lane.b32.xlu0 %v3647, 122
        %v3652 = vpop.permute.xlu0 %3651
        %3653 = vrot.lane.b32.xlu0 %v3648, 122
        %v3654 = vpop.permute.xlu0 %3653
        %v3657 = vadd.f32 %v3643, %v3652
        %v3658 = vadd.f32 %v3644, %v3654
        %v3661 = vrot.slane %v3657, 5
        %v3662 = vrot.slane %v3658, 5
        %v3663 = vsel %vm376, %v3661, %v3662
        %v3665 = vadd.f32 %v3570, %v3663
        %s3666 = sld [smem:[#allocation7 + $0xee]]
        %v3667 = vstv %s3666
        %v3668 = vmul.f32 %v3298, %v3667
        %v3669 = vmul.f32 %v3667, 0.0
        %s3670 = sld [smem:[#allocation7 + $0xef]]
        %v3671 = vstv %s3670
        %v3672 = vmul.f32 %v3298, %v3671
        %v3673 = vmul.f32 %v3671, 0.0
        %3676 = vrot.lane.b32.xlu0 %v3672, 127
        %v3677 = vpop.permute.xlu0 %3676
        %3678 = vrot.lane.b32.xlu0 %v3673, 127
        %v3679 = vpop.permute.xlu0 %3678
        %v3682 = vadd.f32 %v3668, %v3677
        %v3683 = vadd.f32 %v3669, %v3679
        %s3684 = sld [smem:[#allocation7 + $0xf0]]
        %v3685 = vstv %s3684
        %v3686 = vmul.f32 %v3298, %v3685
        %v3687 = vmul.f32 %v3685, 0.0
        %3690 = vrot.lane.b32.xlu0 %v3686, 126
        %v3691 = vpop.permute.xlu0 %3690
        %3692 = vrot.lane.b32.xlu0 %v3687, 126
        %v3693 = vpop.permute.xlu0 %3692
        %v3696 = vadd.f32 %v3682, %v3691
        %v3697 = vadd.f32 %v3683, %v3693
        %s3698 = sld [smem:[#allocation7 + $0xf1]]
        %v3699 = vstv %s3698
        %v3700 = vmul.f32 %v3298, %v3699
        %v3701 = vmul.f32 %v3699, 0.0
        %3704 = vrot.lane.b32.xlu0 %v3700, 125
        %v3705 = vpop.permute.xlu0 %3704
        %3706 = vrot.lane.b32.xlu0 %v3701, 125
        %v3707 = vpop.permute.xlu0 %3706
        %v3710 = vadd.f32 %v3696, %v3705
        %v3711 = vadd.f32 %v3697, %v3707
        %s3712 = sld [smem:[#allocation7 + $0xf2]]
        %v3713 = vstv %s3712
        %v3714 = vmul.f32 %v3298, %v3713
        %v3715 = vmul.f32 %v3713, 0.0
        %3718 = vrot.lane.b32.xlu0 %v3714, 124
        %v3719 = vpop.permute.xlu0 %3718
        %3720 = vrot.lane.b32.xlu0 %v3715, 124
        %v3721 = vpop.permute.xlu0 %3720
        %v3724 = vadd.f32 %v3710, %v3719
        %v3725 = vadd.f32 %v3711, %v3721
        %s3726 = sld [smem:[#allocation7 + $0xf3]]
        %v3727 = vstv %s3726
        %v3728 = vmul.f32 %v3298, %v3727
        %v3729 = vmul.f32 %v3727, 0.0
        %3732 = vrot.lane.b32.xlu0 %v3728, 123
        %v3733 = vpop.permute.xlu0 %3732
        %3734 = vrot.lane.b32.xlu0 %v3729, 123
        %v3735 = vpop.permute.xlu0 %3734
        %v3738 = vadd.f32 %v3724, %v3733
        %v3739 = vadd.f32 %v3725, %v3735
        %s3740 = sld [smem:[#allocation7 + $0xf4]]
        %v3741 = vstv %s3740
        %v3742 = vmul.f32 %v3298, %v3741
        %v3743 = vmul.f32 %v3741, 0.0
        %3746 = vrot.lane.b32.xlu0 %v3742, 122
        %v3747 = vpop.permute.xlu0 %3746
        %3748 = vrot.lane.b32.xlu0 %v3743, 122
        %v3749 = vpop.permute.xlu0 %3748
        %v3752 = vadd.f32 %v3738, %v3747
        %v3753 = vadd.f32 %v3739, %v3749
        %v3756 = vrot.slane %v3752, 6
        %v3757 = vrot.slane %v3753, 6
        %v3758 = vsel %vm1292, %v3756, %v3757
        %v3760 = vadd.f32 %v3665, %v3758
        %v3769 = vperm.slane %v349, %v3273
        %v3770 = vperm.slane %v350, %v3275
        %v3771 = vsel %vm3277, %v3770, %v3769
        %v3772 = vperm.slane %v351, %v3273
        %v3773 = vperm.slane %v352, %v3275
        %v3774 = vsel %vm3277, %v3773, %v3772
        %v3775 = vperm.slane %v353, %v3273
        %v3776 = vperm.slane %v354, %v3275
        %v3777 = vsel %vm3277, %v3776, %v3775
        %v3778 = vperm.slane %v355, %v3273
        %v3779 = vperm.slane %v356, %v3275
        %v3780 = vsel %vm3277, %v3779, %v3778
        %v3781 = vsel %vm2283, %v3774, %v3771
        %v3782 = vsel %vm2285, %v3777, %v3781
        %v3783 = vsel %vm2287, %v3780, %v3782
        %v3785 = vsel %vm368, 0.0, %v3783
        %v3786 = vsel %vm371, %v3785, 0.0
        %v3788 = vrot.slane %v3786, 5
        %v3790 = vsel %vm376, 0.0, %v3788
        %v3791 = vsel %vm603, %v3790, 0.0
        %s3792 = sld [smem:[#allocation7 + $0xf5]]
        %v3793 = vstv %s3792
        %v3794 = vmul.f32 %v3791, %v3793
        %s3795 = sld [smem:[#allocation7 + $0xf6]]
        %v3796 = vstv %s3795
        %v3797 = vmul.f32 %v3791, %v3796
        %3799 = vrot.lane.b32.xlu0 %v3797, 127
        %v3800 = vpop.permute.xlu0 %3799
        %v3802 = vadd.f32 %v3794, %v3800
        %s3803 = sld [smem:[#allocation7 + $0xf7]]
        %v3804 = vstv %s3803
        %v3805 = vmul.f32 %v3791, %v3804
        %3807 = vrot.lane.b32.xlu0 %v3805, 126
        %v3808 = vpop.permute.xlu0 %3807
        %v3810 = vadd.f32 %v3802, %v3808
        %s3811 = sld [smem:[#allocation7 + $0xf8]]
        %v3812 = vstv %s3811
        %v3813 = vmul.f32 %v3791, %v3812
        %3815 = vrot.lane.b32.xlu0 %v3813, 125
        %v3816 = vpop.permute.xlu0 %3815
        %v3818 = vadd.f32 %v3810, %v3816
        %s3819 = sld [smem:[#allocation7 + $0xf9]]
        %v3820 = vstv %s3819
        %v3821 = vmul.f32 %v3791, %v3820
        %3823 = vrot.lane.b32.xlu0 %v3821, 124
        %v3824 = vpop.permute.xlu0 %3823
        %v3826 = vadd.f32 %v3818, %v3824
        %s3827 = sld [smem:[#allocation7 + $0xfa]]
        %v3828 = vstv %s3827
        %v3829 = vmul.f32 %v3791, %v3828
        %3831 = vrot.lane.b32.xlu0 %v3829, 123
        %v3832 = vpop.permute.xlu0 %3831
        %v3834 = vadd.f32 %v3826, %v3832
        %s3835 = sld [smem:[#allocation7 + $0xfb]]
        %v3836 = vstv %s3835
        %v3837 = vmul.f32 %v3791, %v3836
        %3839 = vrot.lane.b32.xlu0 %v3837, 122
        %v3840 = vpop.permute.xlu0 %3839
        %v3842 = vadd.f32 %v3834, %v3840
        %v3843 = vadd.f32 %v3760, %v3842
        %s3844 = sld [smem:[#allocation7 + $0xfc]]
        %v3845 = vstv %s3844
        %v3846 = vmul.f32 %v3791, %v3845
        %s3847 = sld [smem:[#allocation7 + $0xfd]]
        %v3848 = vstv %s3847
        %v3849 = vmul.f32 %v3791, %v3848
        %3851 = vrot.lane.b32.xlu0 %v3849, 127
        %v3852 = vpop.permute.xlu0 %3851
        %v3854 = vadd.f32 %v3846, %v3852
        %s3855 = sld [smem:[#allocation7 + $0xfe]]
        %v3856 = vstv %s3855
        %v3857 = vmul.f32 %v3791, %v3856
        %3859 = vrot.lane.b32.xlu0 %v3857, 126
        %v3860 = vpop.permute.xlu0 %3859
        %v3862 = vadd.f32 %v3854, %v3860
        %s3863 = sld [smem:[#allocation7 + $0xff]]
        %v3864 = vstv %s3863
        %v3865 = vmul.f32 %v3791, %v3864
        %3867 = vrot.lane.b32.xlu0 %v3865, 125
        %v3868 = vpop.permute.xlu0 %3867
        %v3870 = vadd.f32 %v3862, %v3868
        %s3871 = sld [smem:[#allocation7 + $0x100]]
        %v3872 = vstv %s3871
        %v3873 = vmul.f32 %v3791, %v3872
        %3875 = vrot.lane.b32.xlu0 %v3873, 124
        %v3876 = vpop.permute.xlu0 %3875
        %v3878 = vadd.f32 %v3870, %v3876
        %s3879 = sld [smem:[#allocation7 + $0x101]]
        %v3880 = vstv %s3879
        %v3881 = vmul.f32 %v3791, %v3880
        %3883 = vrot.lane.b32.xlu0 %v3881, 123
        %v3884 = vpop.permute.xlu0 %3883
        %v3886 = vadd.f32 %v3878, %v3884
        %s3887 = sld [smem:[#allocation7 + $0x102]]
        %v3888 = vstv %s3887
        %v3889 = vmul.f32 %v3791, %v3888
        %3891 = vrot.lane.b32.xlu0 %v3889, 122
        %v3892 = vpop.permute.xlu0 %3891
        %v3894 = vadd.f32 %v3886, %v3892
        %v3896 = vrot.slane %v3894, 1
        %v3898 = vadd.f32 %v3843, %v3896
        %s3899 = sld [smem:[#allocation7 + $0x103]]
        %v3900 = vstv %s3899
        %v3901 = vmul.f32 %v3791, %v3900
        %s3902 = sld [smem:[#allocation7 + $0x104]]
        %v3903 = vstv %s3902
        %v3904 = vmul.f32 %v3791, %v3903
        %3906 = vrot.lane.b32.xlu0 %v3904, 127
        %v3907 = vpop.permute.xlu0 %3906
        %v3909 = vadd.f32 %v3901, %v3907
        %s3910 = sld [smem:[#allocation7 + $0x105]]
        %v3911 = vstv %s3910
        %v3912 = vmul.f32 %v3791, %v3911
        %3914 = vrot.lane.b32.xlu0 %v3912, 126
        %v3915 = vpop.permute.xlu0 %3914
        %v3917 = vadd.f32 %v3909, %v3915
        %s3918 = sld [smem:[#allocation7 + $0x106]]
        %v3919 = vstv %s3918
        %v3920 = vmul.f32 %v3791, %v3919
        %3922 = vrot.lane.b32.xlu0 %v3920, 125
        %v3923 = vpop.permute.xlu0 %3922
        %v3925 = vadd.f32 %v3917, %v3923
        %s3926 = sld [smem:[#allocation7 + $0x107]]
        %v3927 = vstv %s3926
        %v3928 = vmul.f32 %v3791, %v3927
        %3930 = vrot.lane.b32.xlu0 %v3928, 124
        %v3931 = vpop.permute.xlu0 %3930
        %v3933 = vadd.f32 %v3925, %v3931
        %s3934 = sld [smem:[#allocation7 + $0x108]]
        %v3935 = vstv %s3934
        %v3936 = vmul.f32 %v3791, %v3935
        %3938 = vrot.lane.b32.xlu0 %v3936, 123
        %v3939 = vpop.permute.xlu0 %3938
        %v3941 = vadd.f32 %v3933, %v3939
        %s3942 = sld [smem:[#allocation7 + $0x109]]
        %v3943 = vstv %s3942
        %v3944 = vmul.f32 %v3791, %v3943
        %3946 = vrot.lane.b32.xlu0 %v3944, 122
        %v3947 = vpop.permute.xlu0 %3946
        %v3949 = vadd.f32 %v3941, %v3947
        %v3951 = vrot.slane %v3949, 2
        %v3953 = vadd.f32 %v3898, %v3951
        %s3954 = sld [smem:[#allocation7 + $0x10a]]
        %v3955 = vstv %s3954
        %v3956 = vmul.f32 %v3791, %v3955
        %s3957 = sld [smem:[#allocation7 + $0x10b]]
        %v3958 = vstv %s3957
        %v3959 = vmul.f32 %v3791, %v3958
        %3961 = vrot.lane.b32.xlu0 %v3959, 127
        %v3962 = vpop.permute.xlu0 %3961
        %v3964 = vadd.f32 %v3956, %v3962
        %s3965 = sld [smem:[#allocation7 + $0x10c]]
        %v3966 = vstv %s3965
        %v3967 = vmul.f32 %v3791, %v3966
        %3969 = vrot.lane.b32.xlu0 %v3967, 126
        %v3970 = vpop.permute.xlu0 %3969
        %v3972 = vadd.f32 %v3964, %v3970
        %s3973 = sld [smem:[#allocation7 + $0x10d]]
        %v3974 = vstv %s3973
        %v3975 = vmul.f32 %v3791, %v3974
        %3977 = vrot.lane.b32.xlu0 %v3975, 125
        %v3978 = vpop.permute.xlu0 %3977
        %v3980 = vadd.f32 %v3972, %v3978
        %s3981 = sld [smem:[#allocation7 + $0x10e]]
        %v3982 = vstv %s3981
        %v3983 = vmul.f32 %v3791, %v3982
        %3985 = vrot.lane.b32.xlu0 %v3983, 124
        %v3986 = vpop.permute.xlu0 %3985
        %v3988 = vadd.f32 %v3980, %v3986
        %s3989 = sld [smem:[#allocation7 + $0x10f]]
        %v3990 = vstv %s3989
        %v3991 = vmul.f32 %v3791, %v3990
        %3993 = vrot.lane.b32.xlu0 %v3991, 123
        %v3994 = vpop.permute.xlu0 %3993
        %v3996 = vadd.f32 %v3988, %v3994
        %s3997 = sld [smem:[#allocation7 + $0x110]]
        %v3998 = vstv %s3997
        %v3999 = vmul.f32 %v3791, %v3998
        %4001 = vrot.lane.b32.xlu0 %v3999, 122
        %v4002 = vpop.permute.xlu0 %4001
        %v4004 = vadd.f32 %v3996, %v4002
        %v4006 = vrot.slane %v4004, 3
        %v4008 = vadd.f32 %v3953, %v4006
        %s4009 = sld [smem:[#allocation7 + $0x111]]
        %v4010 = vstv %s4009
        %v4011 = vmul.f32 %v3791, %v4010
        %s4012 = sld [smem:[#allocation7 + $0x112]]
        %v4013 = vstv %s4012
        %v4014 = vmul.f32 %v3791, %v4013
        %4016 = vrot.lane.b32.xlu0 %v4014, 127
        %v4017 = vpop.permute.xlu0 %4016
        %v4019 = vadd.f32 %v4011, %v4017
        %s4020 = sld [smem:[#allocation7 + $0x113]]
        %v4021 = vstv %s4020
        %v4022 = vmul.f32 %v3791, %v4021
        %4024 = vrot.lane.b32.xlu0 %v4022, 126
        %v4025 = vpop.permute.xlu0 %4024
        %v4027 = vadd.f32 %v4019, %v4025
        %s4028 = sld [smem:[#allocation7 + $0x114]]
        %v4029 = vstv %s4028
        %v4030 = vmul.f32 %v3791, %v4029
        %4032 = vrot.lane.b32.xlu0 %v4030, 125
        %v4033 = vpop.permute.xlu0 %4032
        %v4035 = vadd.f32 %v4027, %v4033
        %s4036 = sld [smem:[#allocation7 + $0x115]]
        %v4037 = vstv %s4036
        %v4038 = vmul.f32 %v3791, %v4037
        %4040 = vrot.lane.b32.xlu0 %v4038, 124
        %v4041 = vpop.permute.xlu0 %4040
        %v4043 = vadd.f32 %v4035, %v4041
        %s4044 = sld [smem:[#allocation7 + $0x116]]
        %v4045 = vstv %s4044
        %v4046 = vmul.f32 %v3791, %v4045
        %4048 = vrot.lane.b32.xlu0 %v4046, 123
        %v4049 = vpop.permute.xlu0 %4048
        %v4051 = vadd.f32 %v4043, %v4049
        %s4052 = sld [smem:[#allocation7 + $0x117]]
        %v4053 = vstv %s4052
        %v4054 = vmul.f32 %v3791, %v4053
        %4056 = vrot.lane.b32.xlu0 %v4054, 122
        %v4057 = vpop.permute.xlu0 %4056
        %v4059 = vadd.f32 %v4051, %v4057
        %v4061 = vrot.slane %v4059, 4
        %v4063 = vadd.f32 %v4008, %v4061
        %s4064 = sld [smem:[#allocation7 + $0x118]]
        %v4065 = vstv %s4064
        %v4066 = vmul.f32 %v3791, %v4065
        %v4067 = vmul.f32 %v4065, 0.0
        %s4068 = sld [smem:[#allocation7 + $0x119]]
        %v4069 = vstv %s4068
        %v4070 = vmul.f32 %v3791, %v4069
        %v4071 = vmul.f32 %v4069, 0.0
        %4074 = vrot.lane.b32.xlu0 %v4070, 127
        %v4075 = vpop.permute.xlu0 %4074
        %4076 = vrot.lane.b32.xlu0 %v4071, 127
        %v4077 = vpop.permute.xlu0 %4076
        %v4080 = vadd.f32 %v4066, %v4075
        %v4081 = vadd.f32 %v4067, %v4077
        %s4082 = sld [smem:[#allocation7 + $0x11a]]
        %v4083 = vstv %s4082
        %v4084 = vmul.f32 %v3791, %v4083
        %v4085 = vmul.f32 %v4083, 0.0
        %4088 = vrot.lane.b32.xlu0 %v4084, 126
        %v4089 = vpop.permute.xlu0 %4088
        %4090 = vrot.lane.b32.xlu0 %v4085, 126
        %v4091 = vpop.permute.xlu0 %4090
        %v4094 = vadd.f32 %v4080, %v4089
        %v4095 = vadd.f32 %v4081, %v4091
        %s4096 = sld [smem:[#allocation7 + $0x11b]]
        %v4097 = vstv %s4096
        %v4098 = vmul.f32 %v3791, %v4097
        %v4099 = vmul.f32 %v4097, 0.0
        %4102 = vrot.lane.b32.xlu0 %v4098, 125
        %v4103 = vpop.permute.xlu0 %4102
        %4104 = vrot.lane.b32.xlu0 %v4099, 125
        %v4105 = vpop.permute.xlu0 %4104
        %v4108 = vadd.f32 %v4094, %v4103
        %v4109 = vadd.f32 %v4095, %v4105
        %s4110 = sld [smem:[#allocation7 + $0x11c]]
        %v4111 = vstv %s4110
        %v4112 = vmul.f32 %v3791, %v4111
        %v4113 = vmul.f32 %v4111, 0.0
        %4116 = vrot.lane.b32.xlu0 %v4112, 124
        %v4117 = vpop.permute.xlu0 %4116
        %4118 = vrot.lane.b32.xlu0 %v4113, 124
        %v4119 = vpop.permute.xlu0 %4118
        %v4122 = vadd.f32 %v4108, %v4117
        %v4123 = vadd.f32 %v4109, %v4119
        %s4124 = sld [smem:[#allocation7 + $0x11d]]
        %v4125 = vstv %s4124
        %v4126 = vmul.f32 %v3791, %v4125
        %v4127 = vmul.f32 %v4125, 0.0
        %4130 = vrot.lane.b32.xlu0 %v4126, 123
        %v4131 = vpop.permute.xlu0 %4130
        %4132 = vrot.lane.b32.xlu0 %v4127, 123
        %v4133 = vpop.permute.xlu0 %4132
        %v4136 = vadd.f32 %v4122, %v4131
        %v4137 = vadd.f32 %v4123, %v4133
        %s4138 = sld [smem:[#allocation7 + $0x11e]]
        %v4139 = vstv %s4138
        %v4140 = vmul.f32 %v3791, %v4139
        %v4141 = vmul.f32 %v4139, 0.0
        %4144 = vrot.lane.b32.xlu0 %v4140, 122
        %v4145 = vpop.permute.xlu0 %4144
        %4146 = vrot.lane.b32.xlu0 %v4141, 122
        %v4147 = vpop.permute.xlu0 %4146
        %v4150 = vadd.f32 %v4136, %v4145
        %v4151 = vadd.f32 %v4137, %v4147
        %v4154 = vrot.slane %v4150, 5
        %v4155 = vrot.slane %v4151, 5
        %v4156 = vsel %vm376, %v4154, %v4155
        %v4158 = vadd.f32 %v4063, %v4156
        %s4159 = sld [smem:[#allocation7 + $0x11f]]
        %v4160 = vstv %s4159
        %v4161 = vmul.f32 %v3791, %v4160
        %v4162 = vmul.f32 %v4160, 0.0
        %s4163 = sld [smem:[#allocation7 + $0x120]]
        %v4164 = vstv %s4163
        %v4165 = vmul.f32 %v3791, %v4164
        %v4166 = vmul.f32 %v4164, 0.0
        %4169 = vrot.lane.b32.xlu0 %v4165, 127
        %v4170 = vpop.permute.xlu0 %4169
        %4171 = vrot.lane.b32.xlu0 %v4166, 127
        %v4172 = vpop.permute.xlu0 %4171
        %v4175 = vadd.f32 %v4161, %v4170
        %v4176 = vadd.f32 %v4162, %v4172
        %s4177 = sld [smem:[#allocation7 + $0x121]]
        %v4178 = vstv %s4177
        %v4179 = vmul.f32 %v3791, %v4178
        %v4180 = vmul.f32 %v4178, 0.0
        %4183 = vrot.lane.b32.xlu0 %v4179, 126
        %v4184 = vpop.permute.xlu0 %4183
        %4185 = vrot.lane.b32.xlu0 %v4180, 126
        %v4186 = vpop.permute.xlu0 %4185
        %v4189 = vadd.f32 %v4175, %v4184
        %v4190 = vadd.f32 %v4176, %v4186
        %s4191 = sld [smem:[#allocation7 + $0x122]]
        %v4192 = vstv %s4191
        %v4193 = vmul.f32 %v3791, %v4192
        %v4194 = vmul.f32 %v4192, 0.0
        %4197 = vrot.lane.b32.xlu0 %v4193, 125
        %v4198 = vpop.permute.xlu0 %4197
        %4199 = vrot.lane.b32.xlu0 %v4194, 125
        %v4200 = vpop.permute.xlu0 %4199
        %v4203 = vadd.f32 %v4189, %v4198
        %v4204 = vadd.f32 %v4190, %v4200
        %s4205 = sld [smem:[#allocation7 + $0x123]]
        %v4206 = vstv %s4205
        %v4207 = vmul.f32 %v3791, %v4206
        %v4208 = vmul.f32 %v4206, 0.0
        %4211 = vrot.lane.b32.xlu0 %v4207, 124
        %v4212 = vpop.permute.xlu0 %4211
        %4213 = vrot.lane.b32.xlu0 %v4208, 124
        %v4214 = vpop.permute.xlu0 %4213
        %v4217 = vadd.f32 %v4203, %v4212
        %v4218 = vadd.f32 %v4204, %v4214
        %s4219 = sld [smem:[#allocation7 + $0x124]]
        %v4220 = vstv %s4219
        %v4221 = vmul.f32 %v3791, %v4220
        %v4222 = vmul.f32 %v4220, 0.0
        %4225 = vrot.lane.b32.xlu0 %v4221, 123
        %v4226 = vpop.permute.xlu0 %4225
        %4227 = vrot.lane.b32.xlu0 %v4222, 123
        %v4228 = vpop.permute.xlu0 %4227
        %v4231 = vadd.f32 %v4217, %v4226
        %v4232 = vadd.f32 %v4218, %v4228
        %s4233 = sld [smem:[#allocation7 + $0x125]]
        %v4234 = vstv %s4233
        %v4235 = vmul.f32 %v3791, %v4234
        %v4236 = vmul.f32 %v4234, 0.0
        %4239 = vrot.lane.b32.xlu0 %v4235, 122
        %v4240 = vpop.permute.xlu0 %4239
        %4241 = vrot.lane.b32.xlu0 %v4236, 122
        %v4242 = vpop.permute.xlu0 %4241
        %v4245 = vadd.f32 %v4231, %v4240
        %v4246 = vadd.f32 %v4232, %v4242
        %v4249 = vrot.slane %v4245, 6
        %v4250 = vrot.slane %v4246, 6
        %v4251 = vsel %vm1292, %v4249, %v4250
        %v4253 = vadd.f32 %v4158, %v4251
        %v4254 = vxor.u32 %v4253, 2147483648
        %v4255 = vmul.f32 %v4254, 1.442695
        %v4256 = vpow.pop %v4255
        %v4257 = vadd.f32 %v4256, 1.0
        %v4258 = vrcp.pop %v4257
        %v4259 = vmul.f32 %v4257, %v4258
        %v4260 = vsub.f32 1.0, %v4259
        %v4261 = vmul.f32 %v4258, %v4260
        %v4262 = vadd.f32 %v4258, %v4261
        %vm4263 = vweird.f32 %v4257
        %vm4264 = vweird.f32 %v4258
        %vm4265 = vmor %vm4263, %vm4264
        %v4266 = vsel %vm4265, %v4258, %v4262
        %v4267 = vand.u32 2147483647, %v4257
        %vm4268 = vcmp.eq.f32.partialorder %v4267, 8.507059e+37
        %v4269 = vand.u32 %v4257, 2147483648
        %v4270 = vor.u32 1.1754944e-38, %v4269
        %v4271 = vsel %vm4268, %v4270, %v4266
        %v4272 = vmul.f32 1.0, %v4271
        %v4273 = vmul.f32 %v4272, 0.33333334
        %v4275 = vrot.slane %v3259, 1
        %v4276 = vrot.slane %v3259, 2
        %v4277 = vrot.slane %v3259, 3
        %v4278 = vperm.slane %v4273, 0
        %v4279 = vlaneseq
        %v4280 = vshrl.u32 %v4279, 7
        %4282 = vset.pattern.permute.xlu0 %v4280
        %4283 = vperm.xlu0 %4282, %v4278
        %v4284 = vpop.permute.xlu0 %4283
        %v4285 = vlaneseq
        %v4286 = vshrl.u32 %v4285, 7
        %v4287 = vadd.s32 %v4286, 8
        %4288 = vset.pattern.permute.xlu0 %v4287
        %4289 = vperm.xlu0 %4288, %v4278
        %v4290 = vpop.permute.xlu0 %4289
        %v4291 = vperm.slane %v4273, 1
        %v4292 = vlaneseq
        %v4293 = vshrl.u32 %v4292, 7
        %4295 = vset.pattern.permute.xlu0 %v4293
        %4296 = vperm.xlu0 %4295, %v4291
        %v4297 = vpop.permute.xlu0 %4296
        %v4298 = vlaneseq
        %v4299 = vshrl.u32 %v4298, 7
        %v4300 = vadd.s32 %v4299, 8
        %4301 = vset.pattern.permute.xlu0 %v4300
        %4302 = vperm.xlu0 %4301, %v4291
        %v4303 = vpop.permute.xlu0 %4302
        %v4304 = vperm.slane %v4273, 2
        %v4305 = vlaneseq
        %v4306 = vshrl.u32 %v4305, 7
        %4308 = vset.pattern.permute.xlu0 %v4306
        %4309 = vperm.xlu0 %4308, %v4304
        %v4310 = vpop.permute.xlu0 %4309
        %v4311 = vlaneseq
        %v4312 = vshrl.u32 %v4311, 7
        %v4313 = vadd.s32 %v4312, 8
        %4314 = vset.pattern.permute.xlu0 %v4313
        %4315 = vperm.xlu0 %4314, %v4304
        %v4316 = vpop.permute.xlu0 %4315
        %v4317 = vperm.slane %v4273, 3
        %v4318 = vlaneseq
        %v4319 = vshrl.u32 %v4318, 7
        %4321 = vset.pattern.permute.xlu0 %v4319
        %4322 = vperm.xlu0 %4321, %v4317
        %v4323 = vpop.permute.xlu0 %4322
        %v4324 = vlaneseq
        %v4325 = vshrl.u32 %v4324, 7
        %v4326 = vadd.s32 %v4325, 8
        %4327 = vset.pattern.permute.xlu0 %v4326
        %4328 = vperm.xlu0 %4327, %v4317
        %v4329 = vpop.permute.xlu0 %4328
        %v4330 = vperm.slane %v3259, 0
        %v4331 = vperm.slane %v4275, 0
        %v4332 = vperm.slane %v4276, 0
        %v4333 = vperm.slane %v4277, 0
        %v4338 = vadd.f32 %v2274, %v4330
        %v4339 = vadd.f32 %v2275, %v4330
        %v4340 = vadd.f32 %v2274, %v4331
        %v4341 = vadd.f32 %v2275, %v4331
        %v4342 = vadd.f32 %v2274, %v4332
        %v4343 = vadd.f32 %v2275, %v4332
        %v4344 = vadd.f32 %v2274, %v4333
        %v4345 = vadd.f32 %v2275, %v4333
        %v4346 = vadd.f32 %v4338, %v4284
        %v4347 = vadd.f32 %v4339, %v4290
        %v4348 = vadd.f32 %v4340, %v4297
        %v4349 = vadd.f32 %v4341, %v4303
        %v4350 = vadd.f32 %v4342, %v4310
        %v4351 = vadd.f32 %v4343, %v4316
        %v4352 = vadd.f32 %v4344, %v4323
        %v4353 = vadd.f32 %v4345, %v4329
        %v4354 = vmul.f32 %v218, %v4346
        %v4355 = vmul.f32 %v219, %v4347
        %v4356 = vmul.f32 %v220, %v4348
        %v4357 = vmul.f32 %v221, %v4349
        %v4358 = vmul.f32 %v222, %v4350
        %v4359 = vmul.f32 %v223, %v4351
        %v4360 = vmul.f32 %v224, %v4352
        %v4361 = vmul.f32 %v225, %v4353
        %4362 = vst.msk [vmem:[%s217] sm:$0xff] %vm226, %v4354
        %4363 = vst.msk [vmem:[%s217 + $0x8] sm:$0xff] %vm226, %v4355
        %4364 = vst.msk [vmem:[%s217 + $0x10] sm:$0xff] %vm226, %v4356
        %4365 = vst.msk [vmem:[%s217 + $0x18] sm:$0xff] %vm226, %v4357
        %4366 = vst.msk [vmem:[%s217 + $0x20] sm:$0xff] %vm226, %v4358
        %4367 = vst.msk [vmem:[%s217 + $0x28] sm:$0xff] %vm226, %v4359
        %4368 = vst.msk [vmem:[%s217 + $0x30] sm:$0xff] %vm226, %v4360
        %4369 = vst.msk [vmem:[%s217 + $0x38] sm:$0xff] %vm226, %v4361
        %s4370 = sand.u32 %s98, 1
        %s4371 = scalar_lea.sflag [#allocation4], %s4370
        %s4372 = sand.u32 %s98, 1
        %s4373 = smul.addr %s4372, 64
        %s4374 = scalar_lea.vmem [#allocation9], %s4373
        // Predicated region
        $region45: #{triplet_attention.1} parent=31 // pred_check
          %p4375 = pneg %p108
        $region46: #{triplet_attention.1} parent=31 // pred_check_branch
          %4377 = sbr.rel (%p4375) target = $region48
        $region47: #{triplet_attention.1} parent=31 // pred_region
          %4379 = vsyncadd %s4371, 0
          %s4380 = smul.addr %s22, 8
          %s4381 = smul.addr %s4380, 8
          %s4382 = scalar_lea.hbm %s3, %s4381
          %s4383 = sshll.u32 %s4374, 4
          %s4384 = int_to_ptr.vmem [resolvable:$true] %s4383
          %s4385 = sshll.u32 %s4382, 4
          %s4386 = int_to_ptr.hbm [resolvable:$true] %s4385
          %4391 = dma.vmem_to_hbm [thread:$0]  %s4384, 1024, %s4386, %s4371, 128, 128, 8
        $region48: #{triplet_attention.1} parent=31 // pred_fallthru
          _
      $region32: #{triplet_attention.1} parent=5 // pred_fallthru
        _
      %p4392 = scmp.le.s32.totalorder 2, %s17
      // Predicated region
      $region49: #{triplet_attention.1} parent=5 // pred_check
        %p4393 = pneg %p4392
      $region50: #{triplet_attention.1} parent=5 // pred_check_branch
        %4395 = sbr.rel (%p4393) target = $region52
      $region51: #{triplet_attention.1} parent=5 // pred_region
        %s4396 = ssub.s32 %s17, 2
        // Predicated region
        $region53: #{triplet_attention.1} parent=51 // pred_check
          %p4397 = pneg %p114
        $region54: #{triplet_attention.1} parent=51 // pred_check_branch
          %4399 = sbr.rel (%p4397) target = $region56
        $region55: #{triplet_attention.1} parent=51 // pred_region
          %s4400 = sand.u32 %s99, 1
          %s4401 = scalar_lea.sflag [#allocation4], %s4400
          %s4402 = sand.u32 %s99, 1
          %s4403 = smul.addr %s4402, 64
          %s4404 = scalar_lea.vmem [#allocation9], %s4403
          %4406 = dma.done %s4401, 1024
        $region56: #{triplet_attention.1} parent=51 // pred_fallthru
          _
      $region52: #{triplet_attention.1} parent=5 // pred_fallthru
        _
    $region6: #{triplet_attention.1} parent=1 // loop_footer
      %s21 = sadd.s32 1, %s17
    $region7: #{triplet_attention.1} parent=1 // loop_footer_branch
      %16 = sbr.rel target = $region3
    $region8: #{triplet_attention.1} parent=1 // loop_exit
      _
    %4407 = vsyncpa [#allocation3], 1
    %s4408 = scalar_lea.sflag [#allocation3], 1
    %4409 = vsyncpa %s4408, 1
    %4410 = vsyncpa [#allocation4], 1
    %s4411 = scalar_lea.sflag [#allocation4], 1
    %4412 = vsyncpa %s4411, 1
    %4413 = vsyncpa [#allocation5], 1
    %s4414 = scalar_lea.sflag [#allocation5], 1
    %4415 = vsyncpa %s4414, 1
    %4416 = vsyncpa [#allocation6], 1
    %s4417 = scalar_lea.sflag [#allocation6], 1
    %4418 = vsyncpa %s4417, 1

</llo_original>
